<compile_context>
chip_gen: v7x
topology: tpu7x:2x2x1
jax: 0.10.0
libtpu: 0.0.40
codegen_flags: <defaults>
</compile_context>

<pallas_src>
import functools
import math

import jax
import jax.numpy as jnp
from jax.experimental import pallas as pl
from jax.experimental.pallas import tpu as pltpu


MASK_NEG = -1e30   # finite "minus infinity": fully-masked rows stay NaN-free


# ----------------------------------------------------------------------------
# Fused Pallas kernel: all transformer layers + output head, one batch block
# ----------------------------------------------------------------------------
def sakt_fused_kernel(q_ref, y0_ref, valid_ref, w_ref, vec_ref, ow_ref, ob_ref,
                      out_ref, *, n_layers, n_heads, d_k, block_b, seq_len):
    """Full SAKT forward for a block of `block_b` batch elements.

    q_ref, y0_ref : (Bt, L, D)    query sequence / initial key-value sequence (f32)
    valid_ref     : (Bt, 1, L)    1.0 where label != -1, else 0.0
    w_ref         : (NL, D, 6D)   bf16 [Wq | Wk | Wv | Wo | W1 | W2] (pre-transposed)
    vec_ref       : (NL, 10, D)   f32  [bq,bk,bv,bo,g1,be1,b1,b2,g2,be2]
    ow_ref, ob_ref: (D, Qpad), (1, Qpad)   lane-dense (padded) question head
    out_ref       : (Bt, L, Qpad)
    """
    f32 = jnp.float32
    bf16 = jnp.bfloat16
    Bt, L = block_b, seq_len
    D = n_heads * d_k
    N = Bt * L
    scale = 1.0 / math.sqrt(d_k)

    # Flatten (Bt, L, D) -> (Bt*L, D): projections / FFN / out head become single
    # dense 2-D matmuls over all rows of the batch block.
    q2 = q_ref[...].reshape(N, D)            # original query, reused by every layer
    y = y0_ref[...].reshape(N, D)            # key/value stream (updated per layer)
    q2_mm = q2.astype(bf16)                  # hoisted matmul operand (constant)

    # Additive attention bias built in-kernel (no [B, L, L] HBM traffic):
    # keep (i, j) iff j <= i (causal, mask_val=1 lower-tri incl. diag) AND key j valid.
    row = jax.lax.broadcasted_iota(jnp.int32, (L, L), 0)
    col = jax.lax.broadcasted_iota(jnp.int32, (L, L), 1)
    causal = row >= col                                    # (L, L)
    validk = valid_ref[...] > 0.5                          # (Bt, 1, L)
    keep = jnp.logical_and(causal[None, :, :], validk)     # (Bt, L, L)
    bias = jnp.where(keep, 0.0, MASK_NEG).astype(f32)      # shared by all layers/heads

    for l in range(n_layers):                              # static unroll over layers
        Wl = w_ref[l]                                      # (D, 6D) bf16
        wq = Wl[:, 0 * D:1 * D]
        wkv = Wl[:, 1 * D:3 * D]
        wo = Wl[:, 3 * D:4 * D]
        w1 = Wl[:, 4 * D:5 * D]
        w2 = Wl[:, 5 * D:6 * D]
        V = vec_ref[l]                                     # (10, D) f32
        bq, bk, bv, bo = V[0:1], V[1:2], V[2:3], V[3:4]
        g1, be1, b1, b2 = V[4:5], V[5:6], V[6:7], V[7:8]
        g2, be2 = V[8:9], V[9:10]

        # fused projections: one (N,D)@(D,D) for Q, one (N,D)@(D,2D) for K|V
        y_mm = y.astype(bf16)
        qh = jnp.dot(q2_mm, wq, preferred_element_type=f32) + bq     # (N, D)
        kvh = jnp.dot(y_mm, wkv, preferred_element_type=f32)         # (N, 2D)
        kh = kvh[:, :D] + bk
        vh = kvh[:, D:] + bv

        qb = qh.reshape(Bt, L, D)
        kb = kh.reshape(Bt, L, D)
        vb = vh.reshape(Bt, L, D)

        # per-head attention, batched over the whole batch block (single leading
        # batch dim -> supported dot_general), masked softmax in f32.
        ctx_parts = []
        for h in range(n_heads):
            lo = h * d_k
            hi = lo + d_k
            s = jnp.einsum("bqd,bkd->bqk", qb[:, :, lo:hi], kb[:, :, lo:hi],
                           preferred_element_type=f32) * scale + bias
            m = jnp.max(s, axis=-1, keepdims=True)
            p = jnp.exp(s - m)
            denom = jnp.sum(p, axis=-1, keepdims=True)
            attn = p * pl.reciprocal(denom, approx=True)
            ctx_parts.append(jnp.einsum("bqk,bkd->bqd", attn, vb[:, :, lo:hi],
                                        preferred_element_type=f32))
        ctx = jnp.concatenate(ctx_parts, axis=-1).reshape(N, D)      # concat heads

        # "concat heads + out_proj" folded into one (N,D)@(D,D) matmul
        attn_out = jnp.dot(ctx.astype(bf16), wo, preferred_element_type=f32) + bo

        # residual against the ORIGINAL query (per SAKT) + LayerNorm 1
        x = q2 + attn_out
        mu = jnp.mean(x, axis=-1, keepdims=True)
        var = jnp.mean((x - mu) * (x - mu), axis=-1, keepdims=True)
        x = (x - mu) * jax.lax.rsqrt(var + 1e-5) * g1 + be1

        # feed-forward (d_ff == d_model in SAKT)
        h1 = jnp.maximum(jnp.dot(x.astype(bf16), w1, preferred_element_type=f32) + b1, 0.0)
        ff = jnp.dot(h1.astype(bf16), w2, preferred_element_type=f32) + b2

        # residual + LayerNorm 2 -> new key/value stream
        x2 = x + ff
        mu2 = jnp.mean(x2, axis=-1, keepdims=True)
        var2 = jnp.mean((x2 - mu2) * (x2 - mu2), axis=-1, keepdims=True)
        y = (x2 - mu2) * jax.lax.rsqrt(var2 + 1e-5) * g2 + be2

    # question-logit head (lane-dense, padded to Qpad lanes) + sigmoid
    logits = jnp.dot(y.astype(bf16), ow_ref[...], preferred_element_type=f32) + ob_ref[...]
    probs = pl.reciprocal(1.0 + jnp.exp(-logits), approx=True)
    out_ref[...] = probs.reshape(Bt, L, out_ref.shape[-1]).astype(out_ref.dtype)


# ----------------------------------------------------------------------------
# pallas_call wrapper
# ----------------------------------------------------------------------------
def _pick_block_b(batch, seq_len, block_b=None, max_rows=2048):
    """Largest divisor of `batch` keeping Bt*L rows bounded (VMEM-friendly)."""
    if block_b is not None:
        assert batch % block_b == 0, "block_b must divide batch"
        return block_b
    best = 1
    for cand in range(1, batch + 1):
        if batch % cand == 0 and cand * seq_len <= max_rows:
            best = cand
    return best


def run_sakt_fused(q_data, y0, valid, packed, num_head, *, block_b=None):
    B, L, D = q_data.shape
    d_k = D // num_head
    n_layers = packed["big_w"].shape[0]
    q_pad = packed["out_w"].shape[1]

    Bt = _pick_block_b(B, L, block_b)
    grid = (B // Bt,)          # for v7x, prefer B/Bt even so both TCs stay busy

    def blk(shape):
        nd = len(shape)
        return pl.BlockSpec((Bt,) + tuple(shape[1:]),
                            lambda i, _nd=nd: (i,) + (0,) * (_nd - 1))

    def const(shape):
        nd = len(shape)
        return pl.BlockSpec(tuple(shape), lambda i, _nd=nd: (0,) * _nd)

    in_specs = [blk(q_data.shape), blk(y0.shape), blk(valid.shape),
                const(packed["big_w"].shape), const(packed["vecs"].shape),
                const(packed["out_w"].shape), const(packed["out_b"].shape)]

    kernel = functools.partial(sakt_fused_kernel, n_layers=n_layers,
                               n_heads=num_head, d_k=d_k, block_b=Bt, seq_len=L)

    # Per-step VMEM footprint estimate: double-buffered I/O blocks + weights +
    # live f32 activation slabs.  Only raise the scoped limit when it would
    # exceed v5e's 16 MiB default (cap at 64 MiB for v7x's smaller VMEM).
    n_rows = Bt * L
    wbytes = (packed["big_w"].size * packed["big_w"].dtype.itemsize
              + packed["vecs"].size * packed["vecs"].dtype.itemsize
              + packed["out_w"].size * packed["out_w"].dtype.itemsize
              + packed["out_b"].size * packed["out_b"].dtype.itemsize)
    io_bytes = 2 * (2 * n_rows * D * 4 + Bt * L * 4 + n_rows * q_pad * 4)
    act_bytes = 10 * n_rows * D * 4 + 3 * num_head * Bt * L * L * 4 + n_rows * q_pad * 4
    est = 2 * wbytes + io_bytes + act_bytes
    cp_kwargs = {"dimension_semantics": ("parallel",)}
    if est > 16 * 1024 * 1024:
        cp_kwargs["vmem_limit_bytes"] = int(min(est + (8 << 20), 64 * 1024 * 1024))

    return pl.pallas_call(
        kernel,
        out_shape=jax.ShapeDtypeStruct((B, L, q_pad), jnp.float32),
        grid=grid,
        in_specs=in_specs,
        out_specs=pl.BlockSpec((Bt, L, q_pad), lambda i: (i, 0, 0)),
        compiler_params=pltpu.CompilerParams(**cp_kwargs),
    )(q_data, y0, valid, packed["big_w"], packed["vecs"],
      packed["out_w"], packed["out_b"])


# ----------------------------------------------------------------------------
# Full SAKT forward (plain-JAX glue around the fused kernel)
# ----------------------------------------------------------------------------
def sakt_forward(params, packed, feed_dict, *, skill_num, num_head, block_b=None):
    skill_seq = feed_dict["inter_seq"]       # [B, L] int32
    question_seq = feed_dict["quest_seq"]    # [B, L] int32
    labels = feed_dict["label_seq"]          # [B, L] int32 in {-1, 0, 1}
    B, L = labels.shape
    Q = params["out_w"].shape[0]

    # interaction / question embeddings (skills_as_keys=True)
    mask_labels = labels * (labels > -1).astype(labels.dtype)
    seq_idx = skill_seq + mask_labels * skill_num
    seq_data = jnp.take(params["inter_emb"], seq_idx, axis=0)     # [B, L, D]
    q_data = jnp.take(params["q_emb"], question_seq, axis=0)      # [B, L, D]

    # shift q_data left by one, pad last position with zeros
    zero_data = jnp.zeros_like(q_data[:, :1, :])
    q_data = jnp.concatenate([q_data[:, 1:, :], zero_data], axis=1)

    pos = params["pos_emb"][:L]                                   # [L, D]
    seq_data = seq_data + pos[None]

    # padding flags only; the causal+padding bias is built inside the kernel
    valid = (labels != -1).astype(jnp.float32).reshape(B, 1, L)

    full_pad = run_sakt_fused(q_data, seq_data, valid, packed, num_head,
                              block_b=block_b)                    # [B, L, Qpad]
    full_output = full_pad[:, :, :Q]                              # [B, L, Q]

    # torch.gather(dim=-1, index of shape [B, L-1, 1]) only reads the first
    # L-1 sequence positions.
    target_item = question_seq[:, 1:, None]                       # [B, L-1, 1]
    tr_preds = jnp.take_along_axis(full_output[:, :L - 1, :], target_item, axis=-1)[..., 0]
    target_labels = labels[:, 1:].astype(jnp.float32)

    return {"prediction": tr_preds, "label": target_labels, "full_output": full_output}


# ----------------------------------------------------------------------------
# Parameter construction (PyTorch layouts) + kernel re-layout
# ----------------------------------------------------------------------------
def make_params(key, *, num_layer, skill_num, question_num, emb_size, max_seq_length):
    D = emb_size
    keys = jax.random.split(key, 6 + num_layer)

    def normal(k, shape, s=0.05):
        return (s * jax.random.normal(k, shape)).astype(jnp.float32)

    params = {
        "inter_emb": normal(keys[0], (skill_num * 2, D)),
        "q_emb": normal(keys[1], (question_num, D)),
        "pos_emb": normal(keys[2], (max_seq_length, D)),
        "out_w": normal(keys[3], (question_num, D)),   # nn.Linear weight [out, in]
        "out_b": normal(keys[4], (question_num,), 0.01),
        "layers": [],
    }
    for li in range(num_layer):
        lk = jax.random.split(keys[5 + li], 12)
        layer = {
            "wq": normal(lk[0], (D, D)), "bq": normal(lk[1], (D,), 0.01),
            "wk": normal(lk[2], (D, D)), "bk": normal(lk[3], (D,), 0.01),
            "wv": normal(lk[4], (D, D)), "bv": normal(lk[5], (D,), 0.01),
            "wo": normal(lk[6], (D, D)), "bo": normal(lk[7], (D,), 0.01),
            "g1": jnp.ones((D,), jnp.float32), "be1": jnp.zeros((D,), jnp.float32),
            "w1": normal(lk[8], (D, D)), "b1": normal(lk[9], (D,), 0.01),   # d_ff == d_model
            "w2": normal(lk[10], (D, D)), "b2": normal(lk[11], (D,), 0.01),
            "g2": jnp.ones((D,), jnp.float32), "be2": jnp.zeros((D,), jnp.float32),
        }
        params["layers"].append(layer)
    return params


def pack_params(params):
    """Re-layout PyTorch-style weights into stacked, fused kernel form.

    big_w : (NL, D, 6D)  bf16, lane-concatenated [Wq.T | Wk.T | Wv.T | Wo.T | W1.T | W2.T]
    vecs  : (NL, 10, D)  f32,  [bq, bk, bv, bo, g1, be1, b1, b2, g2, be2]
    out_w : (D, Qpad)    bf16, lane-dense padded question head
    out_b : (1, Qpad)    f32
    """
    D = params["q_emb"].shape[1]
    Q = params["out_w"].shape[0]
    q_pad = ((Q + 127) // 128) * 128

    big_w, vecs = [], []
    for lw in params["layers"]:
        big_w.append(jnp.concatenate(
            [lw["wq"].T, lw["wk"].T, lw["wv"].T, lw["wo"].T, lw["w1"].T, lw["w2"].T],
            axis=1))                                               # (D, 6D)
        vecs.append(jnp.stack(
            [lw["bq"], lw["bk"], lw["bv"], lw["bo"],
             lw["g1"], lw["be1"], lw["b1"], lw["b2"], lw["g2"], lw["be2"]],
            axis=0))                                               # (10, D)

    packed = {
        "big_w": jnp.stack(big_w, axis=0).astype(jnp.bfloat16),    # (NL, D, 6D)
        "vecs": jnp.stack(vecs, axis=0).astype(jnp.float32),       # (NL, 10, D)
        "out_w": jnp.zeros((D, q_pad), jnp.bfloat16).at[:, :Q].set(
            params["out_w"].T.astype(jnp.bfloat16)),
        "out_b": jnp.zeros((1, q_pad), jnp.float32).at[0, :Q].set(params["out_b"]),
    }
    return packed


# ----------------------------------------------------------------------------
if __name__ == "__main__":
    # small SAKT config
    NUM_LAYER = 2
    NUM_HEAD = 4
    SKILL_NUM = 5
    QUESTION_NUM = 7
    EMB_SIZE = 32          # d_model (time_model=False)
    MAX_SEQ_LEN = 8
    B, L = 2, MAX_SEQ_LEN

    root = jax.random.PRNGKey(0)
    kp, k1, k2, k3 = jax.random.split(root, 4)

    params = make_params(
        kp, num_layer=NUM_LAYER, skill_num=SKILL_NUM,
        question_num=QUESTION_NUM, emb_size=EMB_SIZE, max_seq_length=MAX_SEQ_LEN,
    )
    packed = pack_params(params)

    skill_seq = jax.random.randint(k1, (B, L), 0, SKILL_NUM, dtype=jnp.int32)
    quest_seq = jax.random.randint(k2, (B, L), 0, QUESTION_NUM, dtype=jnp.int32)
    labels = jax.random.randint(k3, (B, L), 0, 2, dtype=jnp.int32)
    # mark the last two positions of batch element 1 as padding (-1)
    labels = labels.at[1, -2:].set(-1)
    seconds = jnp.zeros((B, L), jnp.float32)   # unused (time_model=False)

    feed_dict = {
        "inter_seq": skill_seq,
        "quest_seq": quest_seq,
        "label_seq": labels,
        "seconds_between_attempts": seconds,
    }

    out = sakt_forward(params, packed, feed_dict,
                       skill_num=SKILL_NUM, num_head=NUM_HEAD)
    jax.block_until_ready(out["prediction"])
    jax.block_until_ready(out["full_output"])

    assert out["prediction"].shape == (B, L - 1)
    assert out["full_output"].shape == (B, L, QUESTION_NUM)
    assert out["label"].shape == (B, L - 1)
    assert bool(jnp.all(jnp.isfinite(out["prediction"])))
    assert bool(jnp.all(jnp.isfinite(out["full_output"])))

    print("KERNEL_OK")
</pallas_src>

<mosaic_0001>
module attributes {stable_mosaic.version = 11 : i64} {
  func.func @sakt_fused_kernel(%arg0: i32, %arg1: memref<2x8x32xf32, #tpu.memory_space<vmem>>, %arg2: memref<2x8x32xf32, #tpu.memory_space<vmem>>, %arg3: memref<2x1x8xf32, #tpu.memory_space<vmem>>, %arg4: memref<2x32x192xbf16, #tpu.memory_space<vmem>>, %arg5: memref<2x10x32xf32, #tpu.memory_space<vmem>>, %arg6: memref<32x128xbf16, #tpu.memory_space<vmem>>, %arg7: memref<1x128xf32, #tpu.memory_space<vmem>>, %arg8: memref<2x8x128xf32, #tpu.memory_space<vmem>>) attributes {dimension_semantics = [#tpu.dimension_semantics<parallel>], iteration_bounds = array<i64: 1>, scalar_prefetch = 0 : i64, scratch_operands = 0 : i64, tpu.core_type = #tpu.core_type<tc>, window_params = [{transform_indices = @transform_0, window_bounds = array<i64: 2, 8, 32>}, {transform_indices = @transform_1, window_bounds = array<i64: 2, 8, 32>}, {transform_indices = @transform_2, window_bounds = array<i64: 2, 1, 8>}, {pipeline_mode = #tpu.pipeline_mode<synchronous>, transform_indices = @transform_3, window_bounds = array<i64: 2, 32, 192>}, {pipeline_mode = #tpu.pipeline_mode<synchronous>, transform_indices = @transform_4, window_bounds = array<i64: 2, 10, 32>}, {pipeline_mode = #tpu.pipeline_mode<synchronous>, transform_indices = @transform_5, window_bounds = array<i64: 32, 128>}, {pipeline_mode = #tpu.pipeline_mode<synchronous>, transform_indices = @transform_6, window_bounds = array<i64: 1, 128>}, {transform_indices = @transform_7, window_bounds = array<i64: 2, 8, 128>}]} {
    %c0 = arith.constant 0 : index
    %c0_0 = arith.constant 0 : index
    %c0_1 = arith.constant 0 : index
    %0 = vector.load %arg1[%c0, %c0_0, %c0_1] : memref<2x8x32xf32, #tpu.memory_space<vmem>>, vector<2x8x32xf32>
    %1 = vector.shape_cast %0 : vector<2x8x32xf32> to vector<16x32xf32>
    %c0_2 = arith.constant 0 : index
    %c0_3 = arith.constant 0 : index
    %c0_4 = arith.constant 0 : index
    %2 = vector.load %arg2[%c0_2, %c0_3, %c0_4] : memref<2x8x32xf32, #tpu.memory_space<vmem>>, vector<2x8x32xf32>
    %3 = vector.shape_cast %2 : vector<2x8x32xf32> to vector<16x32xf32>
    %4 = arith.truncf %1 : vector<16x32xf32> to vector<16x32xbf16>
    %5 = tpu.iota {dimensions = array<i32: 0>} : vector<8x8xi32>
    %6 = tpu.iota {dimensions = array<i32: 1>} : vector<8x8xi32>
    %7 = arith.cmpi sge, %5, %6 : vector<8x8xi32>
    %c0_5 = arith.constant 0 : index
    %c0_6 = arith.constant 0 : index
    %c0_7 = arith.constant 0 : index
    %8 = vector.load %arg3[%c0_5, %c0_6, %c0_7] : memref<2x1x8xf32, #tpu.memory_space<vmem>>, vector<2x1x8xf32>
    %cst = arith.constant 5.000000e-01 : f32
    %9 = vector.broadcast %cst : f32 to vector<2x1x8xf32>
    %10 = arith.cmpf ogt, %8, %9 : vector<2x1x8xf32>
    %11 = vector.shape_cast %7 : vector<8x8xi1> to vector<1x8x8xi1>
    %12 = vector.broadcast %11 : vector<1x8x8xi1> to vector<2x8x8xi1>
    %13 = vector.broadcast %10 : vector<2x1x8xi1> to vector<2x8x8xi1>
    %14 = arith.andi %12, %13 : vector<2x8x8xi1>
    %cst_8 = arith.constant 0.000000e+00 : f32
    %cst_9 = arith.constant -1.000000e+30 : f32
    %15 = vector.broadcast %cst_8 : f32 to vector<2x8x8xf32>
    %16 = vector.broadcast %cst_9 : f32 to vector<2x8x8xf32>
    %17 = arith.select %14, %15, %16 : vector<2x8x8xi1>, vector<2x8x8xf32>
    %c0_10 = arith.constant 0 : index
    %c0_11 = arith.constant 0 : index
    %c0_12 = arith.constant 0 : index
    %18 = vector.load %arg4[%c0_10, %c0_11, %c0_12] : memref<2x32x192xbf16, #tpu.memory_space<vmem>>, vector<1x32x192xbf16>
    %19 = vector.shape_cast %18 : vector<1x32x192xbf16> to vector<32x192xbf16>
    %20 = vector.extract_strided_slice %19 {offsets = [0, 0], sizes = [32, 32], strides = [1, 1]} : vector<32x192xbf16> to vector<32x32xbf16>
    %21 = vector.extract_strided_slice %19 {offsets = [0, 32], sizes = [32, 64], strides = [1, 1]} : vector<32x192xbf16> to vector<32x64xbf16>
    %22 = vector.extract_strided_slice %19 {offsets = [0, 96], sizes = [32, 32], strides = [1, 1]} : vector<32x192xbf16> to vector<32x32xbf16>
    %23 = vector.extract_strided_slice %19 {offsets = [0, 128], sizes = [32, 32], strides = [1, 1]} : vector<32x192xbf16> to vector<32x32xbf16>
    %24 = vector.extract_strided_slice %19 {offsets = [0, 160], sizes = [32, 32], strides = [1, 1]} : vector<32x192xbf16> to vector<32x32xbf16>
    %c0_13 = arith.constant 0 : index
    %c0_14 = arith.constant 0 : index
    %c0_15 = arith.constant 0 : index
    %25 = vector.load %arg5[%c0_13, %c0_14, %c0_15] : memref<2x10x32xf32, #tpu.memory_space<vmem>>, vector<1x10x32xf32>
    %26 = vector.shape_cast %25 : vector<1x10x32xf32> to vector<10x32xf32>
    %27 = vector.extract_strided_slice %26 {offsets = [0, 0], sizes = [1, 32], strides = [1, 1]} : vector<10x32xf32> to vector<1x32xf32>
    %28 = vector.extract_strided_slice %26 {offsets = [1, 0], sizes = [1, 32], strides = [1, 1]} : vector<10x32xf32> to vector<1x32xf32>
    %29 = vector.extract_strided_slice %26 {offsets = [2, 0], sizes = [1, 32], strides = [1, 1]} : vector<10x32xf32> to vector<1x32xf32>
    %30 = vector.extract_strided_slice %26 {offsets = [3, 0], sizes = [1, 32], strides = [1, 1]} : vector<10x32xf32> to vector<1x32xf32>
    %31 = vector.extract_strided_slice %26 {offsets = [4, 0], sizes = [1, 32], strides = [1, 1]} : vector<10x32xf32> to vector<1x32xf32>
    %32 = vector.extract_strided_slice %26 {offsets = [5, 0], sizes = [1, 32], strides = [1, 1]} : vector<10x32xf32> to vector<1x32xf32>
    %33 = vector.extract_strided_slice %26 {offsets = [6, 0], sizes = [1, 32], strides = [1, 1]} : vector<10x32xf32> to vector<1x32xf32>
    %34 = vector.extract_strided_slice %26 {offsets = [7, 0], sizes = [1, 32], strides = [1, 1]} : vector<10x32xf32> to vector<1x32xf32>
    %35 = vector.extract_strided_slice %26 {offsets = [8, 0], sizes = [1, 32], strides = [1, 1]} : vector<10x32xf32> to vector<1x32xf32>
    %36 = vector.extract_strided_slice %26 {offsets = [9, 0], sizes = [1, 32], strides = [1, 1]} : vector<10x32xf32> to vector<1x32xf32>
    %37 = arith.truncf %3 : vector<16x32xf32> to vector<16x32xbf16>
    %cst_16 = arith.constant dense<0.000000e+00> : vector<16x32xf32>
    %38 = tpu.matmul %4, %20, %cst_16 {dimension_numbers = #tpu.dot_dimension_numbers<[1], [0], [0], [1], [0, 0, 1, 1], [], []>} : vector<16x32xbf16>, vector<32x32xbf16>, vector<16x32xf32> -> vector<16x32xf32>
    %39 = vector.broadcast %27 : vector<1x32xf32> to vector<16x32xf32>
    %40 = arith.addf %38, %39 : vector<16x32xf32>
    %cst_17 = arith.constant dense<0.000000e+00> : vector<16x64xf32>
    %41 = tpu.matmul %37, %21, %cst_17 {dimension_numbers = #tpu.dot_dimension_numbers<[1], [0], [0], [1], [0, 0, 1, 1], [], []>} : vector<16x32xbf16>, vector<32x64xbf16>, vector<16x64xf32> -> vector<16x64xf32>
    %42 = vector.extract_strided_slice %41 {offsets = [0, 0], sizes = [16, 32], strides = [1, 1]} : vector<16x64xf32> to vector<16x32xf32>
    %43 = vector.broadcast %28 : vector<1x32xf32> to vector<16x32xf32>
    %44 = arith.addf %42, %43 : vector<16x32xf32>
    %45 = vector.extract_strided_slice %41 {offsets = [0, 32], sizes = [16, 32], strides = [1, 1]} : vector<16x64xf32> to vector<16x32xf32>
    %46 = vector.broadcast %29 : vector<1x32xf32> to vector<16x32xf32>
    %47 = arith.addf %45, %46 : vector<16x32xf32>
    %48 = vector.shape_cast %40 : vector<16x32xf32> to vector<2x8x32xf32>
    %49 = vector.shape_cast %44 : vector<16x32xf32> to vector<2x8x32xf32>
    %50 = vector.shape_cast %47 : vector<16x32xf32> to vector<2x8x32xf32>
    %51 = vector.extract_strided_slice %48 {offsets = [0, 0, 0], sizes = [2, 8, 8], strides = [1, 1, 1]} : vector<2x8x32xf32> to vector<2x8x8xf32>
    %52 = vector.extract_strided_slice %49 {offsets = [0, 0, 0], sizes = [2, 8, 8], strides = [1, 1, 1]} : vector<2x8x32xf32> to vector<2x8x8xf32>
    "tpu.trace_start"() <{level = 10 : i32, message = "bqd,bkd->bqk"}> : () -> ()
    %cst_18 = arith.constant dense<0.000000e+00> : vector<2x8x8xf32>
    %53 = tpu.matmul %51, %52, %cst_18 {dimension_numbers = #tpu.dot_dimension_numbers<[2], [2], [1], [1], [0, 0, 0, 1, 1, 1], [0], [0]>} : vector<2x8x8xf32>, vector<2x8x8xf32>, vector<2x8x8xf32> -> vector<2x8x8xf32>
    "tpu.trace_stop"() : () -> ()
    %cst_19 = arith.constant 0.353553385 : f32
    %54 = vector.broadcast %cst_19 : f32 to vector<2x8x8xf32>
    %55 = arith.mulf %53, %54 : vector<2x8x8xf32>
    %56 = arith.addf %55, %17 : vector<2x8x8xf32>
    %cst_20 = arith.constant dense<0xFF800000> : vector<2x8xf32>
    %57 = vector.multi_reduction <maximumf>, %56, %cst_20 [2] : vector<2x8x8xf32> to vector<2x8xf32>
    %58 = vector.shape_cast %57 : vector<2x8xf32> to vector<2x8x1xf32>
    %59 = vector.broadcast %58 : vector<2x8x1xf32> to vector<2x8x8xf32>
    %60 = arith.subf %56, %59 : vector<2x8x8xf32>
    %61 = math.exp %60 : vector<2x8x8xf32>
    %cst_21 = arith.constant dense<0.000000e+00> : vector<2x8xf32>
    %62 = vector.multi_reduction <add>, %61, %cst_21 [2] : vector<2x8x8xf32> to vector<2x8xf32>
    %63 = vector.shape_cast %62 : vector<2x8xf32> to vector<2x8x1xf32>
    %64 = tpu.reciprocal %63 {approx = true} : vector<2x8x1xf32> -> vector<2x8x1xf32>
    %65 = vector.broadcast %64 : vector<2x8x1xf32> to vector<2x8x8xf32>
    %66 = arith.mulf %61, %65 : vector<2x8x8xf32>
    %67 = vector.extract_strided_slice %50 {offsets = [0, 0, 0], sizes = [2, 8, 8], strides = [1, 1, 1]} : vector<2x8x32xf32> to vector<2x8x8xf32>
    "tpu.trace_start"() <{level = 10 : i32, message = "bqk,bkd->bqd"}> : () -> ()
    %cst_22 = arith.constant dense<0.000000e+00> : vector<2x8x8xf32>
    %68 = tpu.matmul %66, %67, %cst_22 {dimension_numbers = #tpu.dot_dimension_numbers<[2], [1], [1], [2], [0, 0, 0, 1, 1, 2], [0], [0]>} : vector<2x8x8xf32>, vector<2x8x8xf32>, vector<2x8x8xf32> -> vector<2x8x8xf32>
    "tpu.trace_stop"() : () -> ()
    %69 = vector.extract_strided_slice %48 {offsets = [0, 0, 8], sizes = [2, 8, 8], strides = [1, 1, 1]} : vector<2x8x32xf32> to vector<2x8x8xf32>
    %70 = vector.extract_strided_slice %49 {offsets = [0, 0, 8], sizes = [2, 8, 8], strides = [1, 1, 1]} : vector<2x8x32xf32> to vector<2x8x8xf32>
    "tpu.trace_start"() <{level = 10 : i32, message = "bqd,bkd->bqk"}> : () -> ()
    %cst_23 = arith.constant dense<0.000000e+00> : vector<2x8x8xf32>
    %71 = tpu.matmul %69, %70, %cst_23 {dimension_numbers = #tpu.dot_dimension_numbers<[2], [2], [1], [1], [0, 0, 0, 1, 1, 1], [0], [0]>} : vector<2x8x8xf32>, vector<2x8x8xf32>, vector<2x8x8xf32> -> vector<2x8x8xf32>
    "tpu.trace_stop"() : () -> ()
    %cst_24 = arith.constant 0.353553385 : f32
    %72 = vector.broadcast %cst_24 : f32 to vector<2x8x8xf32>
    %73 = arith.mulf %71, %72 : vector<2x8x8xf32>
    %74 = arith.addf %73, %17 : vector<2x8x8xf32>
    %cst_25 = arith.constant dense<0xFF800000> : vector<2x8xf32>
    %75 = vector.multi_reduction <maximumf>, %74, %cst_25 [2] : vector<2x8x8xf32> to vector<2x8xf32>
    %76 = vector.shape_cast %75 : vector<2x8xf32> to vector<2x8x1xf32>
    %77 = vector.broadcast %76 : vector<2x8x1xf32> to vector<2x8x8xf32>
    %78 = arith.subf %74, %77 : vector<2x8x8xf32>
    %79 = math.exp %78 : vector<2x8x8xf32>
    %cst_26 = arith.constant dense<0.000000e+00> : vector<2x8xf32>
    %80 = vector.multi_reduction <add>, %79, %cst_26 [2] : vector<2x8x8xf32> to vector<2x8xf32>
    %81 = vector.shape_cast %80 : vector<2x8xf32> to vector<2x8x1xf32>
    %82 = tpu.reciprocal %81 {approx = true} : vector<2x8x1xf32> -> vector<2x8x1xf32>
    %83 = vector.broadcast %82 : vector<2x8x1xf32> to vector<2x8x8xf32>
    %84 = arith.mulf %79, %83 : vector<2x8x8xf32>
    %85 = vector.extract_strided_slice %50 {offsets = [0, 0, 8], sizes = [2, 8, 8], strides = [1, 1, 1]} : vector<2x8x32xf32> to vector<2x8x8xf32>
    "tpu.trace_start"() <{level = 10 : i32, message = "bqk,bkd->bqd"}> : () -> ()
    %cst_27 = arith.constant dense<0.000000e+00> : vector<2x8x8xf32>
    %86 = tpu.matmul %84, %85, %cst_27 {dimension_numbers = #tpu.dot_dimension_numbers<[2], [1], [1], [2], [0, 0, 0, 1, 1, 2], [0], [0]>} : vector<2x8x8xf32>, vector<2x8x8xf32>, vector<2x8x8xf32> -> vector<2x8x8xf32>
    "tpu.trace_stop"() : () -> ()
    %87 = vector.extract_strided_slice %48 {offsets = [0, 0, 16], sizes = [2, 8, 8], strides = [1, 1, 1]} : vector<2x8x32xf32> to vector<2x8x8xf32>
    %88 = vector.extract_strided_slice %49 {offsets = [0, 0, 16], sizes = [2, 8, 8], strides = [1, 1, 1]} : vector<2x8x32xf32> to vector<2x8x8xf32>
    "tpu.trace_start"() <{level = 10 : i32, message = "bqd,bkd->bqk"}> : () -> ()
    %cst_28 = arith.constant dense<0.000000e+00> : vector<2x8x8xf32>
    %89 = tpu.matmul %87, %88, %cst_28 {dimension_numbers = #tpu.dot_dimension_numbers<[2], [2], [1], [1], [0, 0, 0, 1, 1, 1], [0], [0]>} : vector<2x8x8xf32>, vector<2x8x8xf32>, vector<2x8x8xf32> -> vector<2x8x8xf32>
    "tpu.trace_stop"() : () -> ()
    %cst_29 = arith.constant 0.353553385 : f32
    %90 = vector.broadcast %cst_29 : f32 to vector<2x8x8xf32>
    %91 = arith.mulf %89, %90 : vector<2x8x8xf32>
    %92 = arith.addf %91, %17 : vector<2x8x8xf32>
    %cst_30 = arith.constant dense<0xFF800000> : vector<2x8xf32>
    %93 = vector.multi_reduction <maximumf>, %92, %cst_30 [2] : vector<2x8x8xf32> to vector<2x8xf32>
    %94 = vector.shape_cast %93 : vector<2x8xf32> to vector<2x8x1xf32>
    %95 = vector.broadcast %94 : vector<2x8x1xf32> to vector<2x8x8xf32>
    %96 = arith.subf %92, %95 : vector<2x8x8xf32>
    %97 = math.exp %96 : vector<2x8x8xf32>
    %cst_31 = arith.constant dense<0.000000e+00> : vector<2x8xf32>
    %98 = vector.multi_reduction <add>, %97, %cst_31 [2] : vector<2x8x8xf32> to vector<2x8xf32>
    %99 = vector.shape_cast %98 : vector<2x8xf32> to vector<2x8x1xf32>
    %100 = tpu.reciprocal %99 {approx = true} : vector<2x8x1xf32> -> vector<2x8x1xf32>
    %101 = vector.broadcast %100 : vector<2x8x1xf32> to vector<2x8x8xf32>
    %102 = arith.mulf %97, %101 : vector<2x8x8xf32>
    %103 = vector.extract_strided_slice %50 {offsets = [0, 0, 16], sizes = [2, 8, 8], strides = [1, 1, 1]} : vector<2x8x32xf32> to vector<2x8x8xf32>
    "tpu.trace_start"() <{level = 10 : i32, message = "bqk,bkd->bqd"}> : () -> ()
    %cst_32 = arith.constant dense<0.000000e+00> : vector<2x8x8xf32>
    %104 = tpu.matmul %102, %103, %cst_32 {dimension_numbers = #tpu.dot_dimension_numbers<[2], [1], [1], [2], [0, 0, 0, 1, 1, 2], [0], [0]>} : vector<2x8x8xf32>, vector<2x8x8xf32>, vector<2x8x8xf32> -> vector<2x8x8xf32>
    "tpu.trace_stop"() : () -> ()
    %105 = vector.extract_strided_slice %48 {offsets = [0, 0, 24], sizes = [2, 8, 8], strides = [1, 1, 1]} : vector<2x8x32xf32> to vector<2x8x8xf32>
    %106 = vector.extract_strided_slice %49 {offsets = [0, 0, 24], sizes = [2, 8, 8], strides = [1, 1, 1]} : vector<2x8x32xf32> to vector<2x8x8xf32>
    "tpu.trace_start"() <{level = 10 : i32, message = "bqd,bkd->bqk"}> : () -> ()
    %cst_33 = arith.constant dense<0.000000e+00> : vector<2x8x8xf32>
    %107 = tpu.matmul %105, %106, %cst_33 {dimension_numbers = #tpu.dot_dimension_numbers<[2], [2], [1], [1], [0, 0, 0, 1, 1, 1], [0], [0]>} : vector<2x8x8xf32>, vector<2x8x8xf32>, vector<2x8x8xf32> -> vector<2x8x8xf32>
    "tpu.trace_stop"() : () -> ()
    %cst_34 = arith.constant 0.353553385 : f32
    %108 = vector.broadcast %cst_34 : f32 to vector<2x8x8xf32>
    %109 = arith.mulf %107, %108 : vector<2x8x8xf32>
    %110 = arith.addf %109, %17 : vector<2x8x8xf32>
    %cst_35 = arith.constant dense<0xFF800000> : vector<2x8xf32>
    %111 = vector.multi_reduction <maximumf>, %110, %cst_35 [2] : vector<2x8x8xf32> to vector<2x8xf32>
    %112 = vector.shape_cast %111 : vector<2x8xf32> to vector<2x8x1xf32>
    %113 = vector.broadcast %112 : vector<2x8x1xf32> to vector<2x8x8xf32>
    %114 = arith.subf %110, %113 : vector<2x8x8xf32>
    %115 = math.exp %114 : vector<2x8x8xf32>
    %cst_36 = arith.constant dense<0.000000e+00> : vector<2x8xf32>
    %116 = vector.multi_reduction <add>, %115, %cst_36 [2] : vector<2x8x8xf32> to vector<2x8xf32>
    %117 = vector.shape_cast %116 : vector<2x8xf32> to vector<2x8x1xf32>
    %118 = tpu.reciprocal %117 {approx = true} : vector<2x8x1xf32> -> vector<2x8x1xf32>
    %119 = vector.broadcast %118 : vector<2x8x1xf32> to vector<2x8x8xf32>
    %120 = arith.mulf %115, %119 : vector<2x8x8xf32>
    %121 = vector.extract_strided_slice %50 {offsets = [0, 0, 24], sizes = [2, 8, 8], strides = [1, 1, 1]} : vector<2x8x32xf32> to vector<2x8x8xf32>
    "tpu.trace_start"() <{level = 10 : i32, message = "bqk,bkd->bqd"}> : () -> ()
    %cst_37 = arith.constant dense<0.000000e+00> : vector<2x8x8xf32>
    %122 = tpu.matmul %120, %121, %cst_37 {dimension_numbers = #tpu.dot_dimension_numbers<[2], [1], [1], [2], [0, 0, 0, 1, 1, 2], [0], [0]>} : vector<2x8x8xf32>, vector<2x8x8xf32>, vector<2x8x8xf32> -> vector<2x8x8xf32>
    "tpu.trace_stop"() : () -> ()
    %123 = tpu.concatenate %68, %86, %104, %122 in 2 : vector<2x8x8xf32>, vector<2x8x8xf32>, vector<2x8x8xf32>, vector<2x8x8xf32> -> vector<2x8x32xf32>
    %124 = vector.shape_cast %123 : vector<2x8x32xf32> to vector<16x32xf32>
    %125 = arith.truncf %124 : vector<16x32xf32> to vector<16x32xbf16>
    %cst_38 = arith.constant dense<0.000000e+00> : vector<16x32xf32>
    %126 = tpu.matmul %125, %22, %cst_38 {dimension_numbers = #tpu.dot_dimension_numbers<[1], [0], [0], [1], [0, 0, 1, 1], [], []>} : vector<16x32xbf16>, vector<32x32xbf16>, vector<16x32xf32> -> vector<16x32xf32>
    %127 = vector.broadcast %30 : vector<1x32xf32> to vector<16x32xf32>
    %128 = arith.addf %126, %127 : vector<16x32xf32>
    %129 = arith.addf %1, %128 : vector<16x32xf32>
    %cst_39 = arith.constant dense<0.000000e+00> : vector<16xf32>
    %130 = vector.multi_reduction <add>, %129, %cst_39 [1] : vector<16x32xf32> to vector<16xf32>
    %131 = vector.shape_cast %130 : vector<16xf32> to vector<16x1xf32>
    %cst_40 = arith.constant 3.200000e+01 : f32
    %132 = vector.broadcast %cst_40 : f32 to vector<16x1xf32>
    %133 = arith.divf %131, %132 : vector<16x1xf32>
    %134 = vector.broadcast %133 : vector<16x1xf32> to vector<16x32xf32>
    %135 = arith.subf %129, %134 : vector<16x32xf32>
    %136 = vector.broadcast %133 : vector<16x1xf32> to vector<16x32xf32>
    %137 = arith.subf %129, %136 : vector<16x32xf32>
    %138 = arith.mulf %135, %137 : vector<16x32xf32>
    %cst_41 = arith.constant dense<0.000000e+00> : vector<16xf32>
    %139 = vector.multi_reduction <add>, %138, %cst_41 [1] : vector<16x32xf32> to vector<16xf32>
    %140 = vector.shape_cast %139 : vector<16xf32> to vector<16x1xf32>
    %cst_42 = arith.constant 3.200000e+01 : f32
    %141 = vector.broadcast %cst_42 : f32 to vector<16x1xf32>
    %142 = arith.divf %140, %141 : vector<16x1xf32>
    %143 = vector.broadcast %133 : vector<16x1xf32> to vector<16x32xf32>
    %144 = arith.subf %129, %143 : vector<16x32xf32>
    %cst_43 = arith.constant 9.99999974E-6 : f32
    %145 = vector.broadcast %cst_43 : f32 to vector<16x1xf32>
    %146 = arith.addf %142, %145 : vector<16x1xf32>
    %147 = math.rsqrt %146 : vector<16x1xf32>
    %148 = vector.broadcast %147 : vector<16x1xf32> to vector<16x32xf32>
    %149 = arith.mulf %144, %148 : vector<16x32xf32>
    %150 = vector.broadcast %31 : vector<1x32xf32> to vector<16x32xf32>
    %151 = arith.mulf %149, %150 : vector<16x32xf32>
    %152 = vector.broadcast %32 : vector<1x32xf32> to vector<16x32xf32>
    %153 = arith.addf %151, %152 : vector<16x32xf32>
    %154 = arith.truncf %153 : vector<16x32xf32> to vector<16x32xbf16>
    %cst_44 = arith.constant dense<0.000000e+00> : vector<16x32xf32>
    %155 = tpu.matmul %154, %23, %cst_44 {dimension_numbers = #tpu.dot_dimension_numbers<[1], [0], [0], [1], [0, 0, 1, 1], [], []>} : vector<16x32xbf16>, vector<32x32xbf16>, vector<16x32xf32> -> vector<16x32xf32>
    %156 = vector.broadcast %33 : vector<1x32xf32> to vector<16x32xf32>
    %157 = arith.addf %155, %156 : vector<16x32xf32>
    %cst_45 = arith.constant 0.000000e+00 : f32
    %158 = vector.broadcast %cst_45 : f32 to vector<16x32xf32>
    %159 = arith.maximumf %157, %158 : vector<16x32xf32>
    %160 = arith.truncf %159 : vector<16x32xf32> to vector<16x32xbf16>
    %cst_46 = arith.constant dense<0.000000e+00> : vector<16x32xf32>
    %161 = tpu.matmul %160, %24, %cst_46 {dimension_numbers = #tpu.dot_dimension_numbers<[1], [0], [0], [1], [0, 0, 1, 1], [], []>} : vector<16x32xbf16>, vector<32x32xbf16>, vector<16x32xf32> -> vector<16x32xf32>
    %162 = vector.broadcast %34 : vector<1x32xf32> to vector<16x32xf32>
    %163 = arith.addf %161, %162 : vector<16x32xf32>
    %164 = arith.addf %153, %163 : vector<16x32xf32>
    %cst_47 = arith.constant dense<0.000000e+00> : vector<16xf32>
    %165 = vector.multi_reduction <add>, %164, %cst_47 [1] : vector<16x32xf32> to vector<16xf32>
    %166 = vector.shape_cast %165 : vector<16xf32> to vector<16x1xf32>
    %cst_48 = arith.constant 3.200000e+01 : f32
    %167 = vector.broadcast %cst_48 : f32 to vector<16x1xf32>
    %168 = arith.divf %166, %167 : vector<16x1xf32>
    %169 = vector.broadcast %168 : vector<16x1xf32> to vector<16x32xf32>
    %170 = arith.subf %164, %169 : vector<16x32xf32>
    %171 = vector.broadcast %168 : vector<16x1xf32> to vector<16x32xf32>
    %172 = arith.subf %164, %171 : vector<16x32xf32>
    %173 = arith.mulf %170, %172 : vector<16x32xf32>
    %cst_49 = arith.constant dense<0.000000e+00> : vector<16xf32>
    %174 = vector.multi_reduction <add>, %173, %cst_49 [1] : vector<16x32xf32> to vector<16xf32>
    %175 = vector.shape_cast %174 : vector<16xf32> to vector<16x1xf32>
    %cst_50 = arith.constant 3.200000e+01 : f32
    %176 = vector.broadcast %cst_50 : f32 to vector<16x1xf32>
    %177 = arith.divf %175, %176 : vector<16x1xf32>
    %178 = vector.broadcast %168 : vector<16x1xf32> to vector<16x32xf32>
    %179 = arith.subf %164, %178 : vector<16x32xf32>
    %cst_51 = arith.constant 9.99999974E-6 : f32
    %180 = vector.broadcast %cst_51 : f32 to vector<16x1xf32>
    %181 = arith.addf %177, %180 : vector<16x1xf32>
    %182 = math.rsqrt %181 : vector<16x1xf32>
    %183 = vector.broadcast %182 : vector<16x1xf32> to vector<16x32xf32>
    %184 = arith.mulf %179, %183 : vector<16x32xf32>
    %185 = vector.broadcast %35 : vector<1x32xf32> to vector<16x32xf32>
    %186 = arith.mulf %184, %185 : vector<16x32xf32>
    %187 = vector.broadcast %36 : vector<1x32xf32> to vector<16x32xf32>
    %188 = arith.addf %186, %187 : vector<16x32xf32>
    %c1 = arith.constant 1 : index
    %c0_52 = arith.constant 0 : index
    %c0_53 = arith.constant 0 : index
    %189 = vector.load %arg4[%c1, %c0_52, %c0_53] : memref<2x32x192xbf16, #tpu.memory_space<vmem>>, vector<1x32x192xbf16>
    %190 = vector.shape_cast %189 : vector<1x32x192xbf16> to vector<32x192xbf16>
    %191 = vector.extract_strided_slice %190 {offsets = [0, 0], sizes = [32, 32], strides = [1, 1]} : vector<32x192xbf16> to vector<32x32xbf16>
    %192 = vector.extract_strided_slice %190 {offsets = [0, 32], sizes = [32, 64], strides = [1, 1]} : vector<32x192xbf16> to vector<32x64xbf16>
    %193 = vector.extract_strided_slice %190 {offsets = [0, 96], sizes = [32, 32], strides = [1, 1]} : vector<32x192xbf16> to vector<32x32xbf16>
    %194 = vector.extract_strided_slice %190 {offsets = [0, 128], sizes = [32, 32], strides = [1, 1]} : vector<32x192xbf16> to vector<32x32xbf16>
    %195 = vector.extract_strided_slice %190 {offsets = [0, 160], sizes = [32, 32], strides = [1, 1]} : vector<32x192xbf16> to vector<32x32xbf16>
    %c1_54 = arith.constant 1 : index
    %c0_55 = arith.constant 0 : index
    %c0_56 = arith.constant 0 : index
    %196 = vector.load %arg5[%c1_54, %c0_55, %c0_56] : memref<2x10x32xf32, #tpu.memory_space<vmem>>, vector<1x10x32xf32>
    %197 = vector.shape_cast %196 : vector<1x10x32xf32> to vector<10x32xf32>
    %198 = vector.extract_strided_slice %197 {offsets = [0, 0], sizes = [1, 32], strides = [1, 1]} : vector<10x32xf32> to vector<1x32xf32>
    %199 = vector.extract_strided_slice %197 {offsets = [1, 0], sizes = [1, 32], strides = [1, 1]} : vector<10x32xf32> to vector<1x32xf32>
    %200 = vector.extract_strided_slice %197 {offsets = [2, 0], sizes = [1, 32], strides = [1, 1]} : vector<10x32xf32> to vector<1x32xf32>
    %201 = vector.extract_strided_slice %197 {offsets = [3, 0], sizes = [1, 32], strides = [1, 1]} : vector<10x32xf32> to vector<1x32xf32>
    %202 = vector.extract_strided_slice %197 {offsets = [4, 0], sizes = [1, 32], strides = [1, 1]} : vector<10x32xf32> to vector<1x32xf32>
    %203 = vector.extract_strided_slice %197 {offsets = [5, 0], sizes = [1, 32], strides = [1, 1]} : vector<10x32xf32> to vector<1x32xf32>
    %204 = vector.extract_strided_slice %197 {offsets = [6, 0], sizes = [1, 32], strides = [1, 1]} : vector<10x32xf32> to vector<1x32xf32>
    %205 = vector.extract_strided_slice %197 {offsets = [7, 0], sizes = [1, 32], strides = [1, 1]} : vector<10x32xf32> to vector<1x32xf32>
    %206 = vector.extract_strided_slice %197 {offsets = [8, 0], sizes = [1, 32], strides = [1, 1]} : vector<10x32xf32> to vector<1x32xf32>
    %207 = vector.extract_strided_slice %197 {offsets = [9, 0], sizes = [1, 32], strides = [1, 1]} : vector<10x32xf32> to vector<1x32xf32>
    %208 = arith.truncf %188 : vector<16x32xf32> to vector<16x32xbf16>
    %cst_57 = arith.constant dense<0.000000e+00> : vector<16x32xf32>
    %209 = tpu.matmul %4, %191, %cst_57 {dimension_numbers = #tpu.dot_dimension_numbers<[1], [0], [0], [1], [0, 0, 1, 1], [], []>} : vector<16x32xbf16>, vector<32x32xbf16>, vector<16x32xf32> -> vector<16x32xf32>
    %210 = vector.broadcast %198 : vector<1x32xf32> to vector<16x32xf32>
    %211 = arith.addf %209, %210 : vector<16x32xf32>
    %cst_58 = arith.constant dense<0.000000e+00> : vector<16x64xf32>
    %212 = tpu.matmul %208, %192, %cst_58 {dimension_numbers = #tpu.dot_dimension_numbers<[1], [0], [0], [1], [0, 0, 1, 1], [], []>} : vector<16x32xbf16>, vector<32x64xbf16>, vector<16x64xf32> -> vector<16x64xf32>
    %213 = vector.extract_strided_slice %212 {offsets = [0, 0], sizes = [16, 32], strides = [1, 1]} : vector<16x64xf32> to vector<16x32xf32>
    %214 = vector.broadcast %199 : vector<1x32xf32> to vector<16x32xf32>
    %215 = arith.addf %213, %214 : vector<16x32xf32>
    %216 = vector.extract_strided_slice %212 {offsets = [0, 32], sizes = [16, 32], strides = [1, 1]} : vector<16x64xf32> to vector<16x32xf32>
    %217 = vector.broadcast %200 : vector<1x32xf32> to vector<16x32xf32>
    %218 = arith.addf %216, %217 : vector<16x32xf32>
    %219 = vector.shape_cast %211 : vector<16x32xf32> to vector<2x8x32xf32>
    %220 = vector.shape_cast %215 : vector<16x32xf32> to vector<2x8x32xf32>
    %221 = vector.shape_cast %218 : vector<16x32xf32> to vector<2x8x32xf32>
    %222 = vector.extract_strided_slice %219 {offsets = [0, 0, 0], sizes = [2, 8, 8], strides = [1, 1, 1]} : vector<2x8x32xf32> to vector<2x8x8xf32>
    %223 = vector.extract_strided_slice %220 {offsets = [0, 0, 0], sizes = [2, 8, 8], strides = [1, 1, 1]} : vector<2x8x32xf32> to vector<2x8x8xf32>
    "tpu.trace_start"() <{level = 10 : i32, message = "bqd,bkd->bqk"}> : () -> ()
    %cst_59 = arith.constant dense<0.000000e+00> : vector<2x8x8xf32>
    %224 = tpu.matmul %222, %223, %cst_59 {dimension_numbers = #tpu.dot_dimension_numbers<[2], [2], [1], [1], [0, 0, 0, 1, 1, 1], [0], [0]>} : vector<2x8x8xf32>, vector<2x8x8xf32>, vector<2x8x8xf32> -> vector<2x8x8xf32>
    "tpu.trace_stop"() : () -> ()
    %cst_60 = arith.constant 0.353553385 : f32
    %225 = vector.broadcast %cst_60 : f32 to vector<2x8x8xf32>
    %226 = arith.mulf %224, %225 : vector<2x8x8xf32>
    %227 = arith.addf %226, %17 : vector<2x8x8xf32>
    %cst_61 = arith.constant dense<0xFF800000> : vector<2x8xf32>
    %228 = vector.multi_reduction <maximumf>, %227, %cst_61 [2] : vector<2x8x8xf32> to vector<2x8xf32>
    %229 = vector.shape_cast %228 : vector<2x8xf32> to vector<2x8x1xf32>
    %230 = vector.broadcast %229 : vector<2x8x1xf32> to vector<2x8x8xf32>
    %231 = arith.subf %227, %230 : vector<2x8x8xf32>
    %232 = math.exp %231 : vector<2x8x8xf32>
    %cst_62 = arith.constant dense<0.000000e+00> : vector<2x8xf32>
    %233 = vector.multi_reduction <add>, %232, %cst_62 [2] : vector<2x8x8xf32> to vector<2x8xf32>
    %234 = vector.shape_cast %233 : vector<2x8xf32> to vector<2x8x1xf32>
    %235 = tpu.reciprocal %234 {approx = true} : vector<2x8x1xf32> -> vector<2x8x1xf32>
    %236 = vector.broadcast %235 : vector<2x8x1xf32> to vector<2x8x8xf32>
    %237 = arith.mulf %232, %236 : vector<2x8x8xf32>
    %238 = vector.extract_strided_slice %221 {offsets = [0, 0, 0], sizes = [2, 8, 8], strides = [1, 1, 1]} : vector<2x8x32xf32> to vector<2x8x8xf32>
    "tpu.trace_start"() <{level = 10 : i32, message = "bqk,bkd->bqd"}> : () -> ()
    %cst_63 = arith.constant dense<0.000000e+00> : vector<2x8x8xf32>
    %239 = tpu.matmul %237, %238, %cst_63 {dimension_numbers = #tpu.dot_dimension_numbers<[2], [1], [1], [2], [0, 0, 0, 1, 1, 2], [0], [0]>} : vector<2x8x8xf32>, vector<2x8x8xf32>, vector<2x8x8xf32> -> vector<2x8x8xf32>
    "tpu.trace_stop"() : () -> ()
    %240 = vector.extract_strided_slice %219 {offsets = [0, 0, 8], sizes = [2, 8, 8], strides = [1, 1, 1]} : vector<2x8x32xf32> to vector<2x8x8xf32>
    %241 = vector.extract_strided_slice %220 {offsets = [0, 0, 8], sizes = [2, 8, 8], strides = [1, 1, 1]} : vector<2x8x32xf32> to vector<2x8x8xf32>
    "tpu.trace_start"() <{level = 10 : i32, message = "bqd,bkd->bqk"}> : () -> ()
    %cst_64 = arith.constant dense<0.000000e+00> : vector<2x8x8xf32>
    %242 = tpu.matmul %240, %241, %cst_64 {dimension_numbers = #tpu.dot_dimension_numbers<[2], [2], [1], [1], [0, 0, 0, 1, 1, 1], [0], [0]>} : vector<2x8x8xf32>, vector<2x8x8xf32>, vector<2x8x8xf32> -> vector<2x8x8xf32>
    "tpu.trace_stop"() : () -> ()
    %cst_65 = arith.constant 0.353553385 : f32
    %243 = vector.broadcast %cst_65 : f32 to vector<2x8x8xf32>
    %244 = arith.mulf %242, %243 : vector<2x8x8xf32>
    %245 = arith.addf %244, %17 : vector<2x8x8xf32>
    %cst_66 = arith.constant dense<0xFF800000> : vector<2x8xf32>
    %246 = vector.multi_reduction <maximumf>, %245, %cst_66 [2] : vector<2x8x8xf32> to vector<2x8xf32>
    %247 = vector.shape_cast %246 : vector<2x8xf32> to vector<2x8x1xf32>
    %248 = vector.broadcast %247 : vector<2x8x1xf32> to vector<2x8x8xf32>
    %249 = arith.subf %245, %248 : vector<2x8x8xf32>
    %250 = math.exp %249 : vector<2x8x8xf32>
    %cst_67 = arith.constant dense<0.000000e+00> : vector<2x8xf32>
    %251 = vector.multi_reduction <add>, %250, %cst_67 [2] : vector<2x8x8xf32> to vector<2x8xf32>
    %252 = vector.shape_cast %251 : vector<2x8xf32> to vector<2x8x1xf32>
    %253 = tpu.reciprocal %252 {approx = true} : vector<2x8x1xf32> -> vector<2x8x1xf32>
    %254 = vector.broadcast %253 : vector<2x8x1xf32> to vector<2x8x8xf32>
    %255 = arith.mulf %250, %254 : vector<2x8x8xf32>
    %256 = vector.extract_strided_slice %221 {offsets = [0, 0, 8], sizes = [2, 8, 8], strides = [1, 1, 1]} : vector<2x8x32xf32> to vector<2x8x8xf32>
    "tpu.trace_start"() <{level = 10 : i32, message = "bqk,bkd->bqd"}> : () -> ()
    %cst_68 = arith.constant dense<0.000000e+00> : vector<2x8x8xf32>
    %257 = tpu.matmul %255, %256, %cst_68 {dimension_numbers = #tpu.dot_dimension_numbers<[2], [1], [1], [2], [0, 0, 0, 1, 1, 2], [0], [0]>} : vector<2x8x8xf32>, vector<2x8x8xf32>, vector<2x8x8xf32> -> vector<2x8x8xf32>
    "tpu.trace_stop"() : () -> ()
    %258 = vector.extract_strided_slice %219 {offsets = [0, 0, 16], sizes = [2, 8, 8], strides = [1, 1, 1]} : vector<2x8x32xf32> to vector<2x8x8xf32>
    %259 = vector.extract_strided_slice %220 {offsets = [0, 0, 16], sizes = [2, 8, 8], strides = [1, 1, 1]} : vector<2x8x32xf32> to vector<2x8x8xf32>
    "tpu.trace_start"() <{level = 10 : i32, message = "bqd,bkd->bqk"}> : () -> ()
    %cst_69 = arith.constant dense<0.000000e+00> : vector<2x8x8xf32>
    %260 = tpu.matmul %258, %259, %cst_69 {dimension_numbers = #tpu.dot_dimension_numbers<[2], [2], [1], [1], [0, 0, 0, 1, 1, 1], [0], [0]>} : vector<2x8x8xf32>, vector<2x8x8xf32>, vector<2x8x8xf32> -> vector<2x8x8xf32>
    "tpu.trace_stop"() : () -> ()
    %cst_70 = arith.constant 0.353553385 : f32
    %261 = vector.broadcast %cst_70 : f32 to vector<2x8x8xf32>
    %262 = arith.mulf %260, %261 : vector<2x8x8xf32>
    %263 = arith.addf %262, %17 : vector<2x8x8xf32>
    %cst_71 = arith.constant dense<0xFF800000> : vector<2x8xf32>
    %264 = vector.multi_reduction <maximumf>, %263, %cst_71 [2] : vector<2x8x8xf32> to vector<2x8xf32>
    %265 = vector.shape_cast %264 : vector<2x8xf32> to vector<2x8x1xf32>
    %266 = vector.broadcast %265 : vector<2x8x1xf32> to vector<2x8x8xf32>
    %267 = arith.subf %263, %266 : vector<2x8x8xf32>
    %268 = math.exp %267 : vector<2x8x8xf32>
    %cst_72 = arith.constant dense<0.000000e+00> : vector<2x8xf32>
    %269 = vector.multi_reduction <add>, %268, %cst_72 [2] : vector<2x8x8xf32> to vector<2x8xf32>
    %270 = vector.shape_cast %269 : vector<2x8xf32> to vector<2x8x1xf32>
    %271 = tpu.reciprocal %270 {approx = true} : vector<2x8x1xf32> -> vector<2x8x1xf32>
    %272 = vector.broadcast %271 : vector<2x8x1xf32> to vector<2x8x8xf32>
    %273 = arith.mulf %268, %272 : vector<2x8x8xf32>
    %274 = vector.extract_strided_slice %221 {offsets = [0, 0, 16], sizes = [2, 8, 8], strides = [1, 1, 1]} : vector<2x8x32xf32> to vector<2x8x8xf32>
    "tpu.trace_start"() <{level = 10 : i32, message = "bqk,bkd->bqd"}> : () -> ()
    %cst_73 = arith.constant dense<0.000000e+00> : vector<2x8x8xf32>
    %275 = tpu.matmul %273, %274, %cst_73 {dimension_numbers = #tpu.dot_dimension_numbers<[2], [1], [1], [2], [0, 0, 0, 1, 1, 2], [0], [0]>} : vector<2x8x8xf32>, vector<2x8x8xf32>, vector<2x8x8xf32> -> vector<2x8x8xf32>
    "tpu.trace_stop"() : () -> ()
    %276 = vector.extract_strided_slice %219 {offsets = [0, 0, 24], sizes = [2, 8, 8], strides = [1, 1, 1]} : vector<2x8x32xf32> to vector<2x8x8xf32>
    %277 = vector.extract_strided_slice %220 {offsets = [0, 0, 24], sizes = [2, 8, 8], strides = [1, 1, 1]} : vector<2x8x32xf32> to vector<2x8x8xf32>
    "tpu.trace_start"() <{level = 10 : i32, message = "bqd,bkd->bqk"}> : () -> ()
    %cst_74 = arith.constant dense<0.000000e+00> : vector<2x8x8xf32>
    %278 = tpu.matmul %276, %277, %cst_74 {dimension_numbers = #tpu.dot_dimension_numbers<[2], [2], [1], [1], [0, 0, 0, 1, 1, 1], [0], [0]>} : vector<2x8x8xf32>, vector<2x8x8xf32>, vector<2x8x8xf32> -> vector<2x8x8xf32>
    "tpu.trace_stop"() : () -> ()
    %cst_75 = arith.constant 0.353553385 : f32
    %279 = vector.broadcast %cst_75 : f32 to vector<2x8x8xf32>
    %280 = arith.mulf %278, %279 : vector<2x8x8xf32>
    %281 = arith.addf %280, %17 : vector<2x8x8xf32>
    %cst_76 = arith.constant dense<0xFF800000> : vector<2x8xf32>
    %282 = vector.multi_reduction <maximumf>, %281, %cst_76 [2] : vector<2x8x8xf32> to vector<2x8xf32>
    %283 = vector.shape_cast %282 : vector<2x8xf32> to vector<2x8x1xf32>
    %284 = vector.broadcast %283 : vector<2x8x1xf32> to vector<2x8x8xf32>
    %285 = arith.subf %281, %284 : vector<2x8x8xf32>
    %286 = math.exp %285 : vector<2x8x8xf32>
    %cst_77 = arith.constant dense<0.000000e+00> : vector<2x8xf32>
    %287 = vector.multi_reduction <add>, %286, %cst_77 [2] : vector<2x8x8xf32> to vector<2x8xf32>
    %288 = vector.shape_cast %287 : vector<2x8xf32> to vector<2x8x1xf32>
    %289 = tpu.reciprocal %288 {approx = true} : vector<2x8x1xf32> -> vector<2x8x1xf32>
    %290 = vector.broadcast %289 : vector<2x8x1xf32> to vector<2x8x8xf32>
    %291 = arith.mulf %286, %290 : vector<2x8x8xf32>
    %292 = vector.extract_strided_slice %221 {offsets = [0, 0, 24], sizes = [2, 8, 8], strides = [1, 1, 1]} : vector<2x8x32xf32> to vector<2x8x8xf32>
    "tpu.trace_start"() <{level = 10 : i32, message = "bqk,bkd->bqd"}> : () -> ()
    %cst_78 = arith.constant dense<0.000000e+00> : vector<2x8x8xf32>
    %293 = tpu.matmul %291, %292, %cst_78 {dimension_numbers = #tpu.dot_dimension_numbers<[2], [1], [1], [2], [0, 0, 0, 1, 1, 2], [0], [0]>} : vector<2x8x8xf32>, vector<2x8x8xf32>, vector<2x8x8xf32> -> vector<2x8x8xf32>
    "tpu.trace_stop"() : () -> ()
    %294 = tpu.concatenate %239, %257, %275, %293 in 2 : vector<2x8x8xf32>, vector<2x8x8xf32>, vector<2x8x8xf32>, vector<2x8x8xf32> -> vector<2x8x32xf32>
    %295 = vector.shape_cast %294 : vector<2x8x32xf32> to vector<16x32xf32>
    %296 = arith.truncf %295 : vector<16x32xf32> to vector<16x32xbf16>
    %cst_79 = arith.constant dense<0.000000e+00> : vector<16x32xf32>
    %297 = tpu.matmul %296, %193, %cst_79 {dimension_numbers = #tpu.dot_dimension_numbers<[1], [0], [0], [1], [0, 0, 1, 1], [], []>} : vector<16x32xbf16>, vector<32x32xbf16>, vector<16x32xf32> -> vector<16x32xf32>
    %298 = vector.broadcast %201 : vector<1x32xf32> to vector<16x32xf32>
    %299 = arith.addf %297, %298 : vector<16x32xf32>
    %300 = arith.addf %1, %299 : vector<16x32xf32>
    %cst_80 = arith.constant dense<0.000000e+00> : vector<16xf32>
    %301 = vector.multi_reduction <add>, %300, %cst_80 [1] : vector<16x32xf32> to vector<16xf32>
    %302 = vector.shape_cast %301 : vector<16xf32> to vector<16x1xf32>
    %cst_81 = arith.constant 3.200000e+01 : f32
    %303 = vector.broadcast %cst_81 : f32 to vector<16x1xf32>
    %304 = arith.divf %302, %303 : vector<16x1xf32>
    %305 = vector.broadcast %304 : vector<16x1xf32> to vector<16x32xf32>
    %306 = arith.subf %300, %305 : vector<16x32xf32>
    %307 = vector.broadcast %304 : vector<16x1xf32> to vector<16x32xf32>
    %308 = arith.subf %300, %307 : vector<16x32xf32>
    %309 = arith.mulf %306, %308 : vector<16x32xf32>
    %cst_82 = arith.constant dense<0.000000e+00> : vector<16xf32>
    %310 = vector.multi_reduction <add>, %309, %cst_82 [1] : vector<16x32xf32> to vector<16xf32>
    %311 = vector.shape_cast %310 : vector<16xf32> to vector<16x1xf32>
    %cst_83 = arith.constant 3.200000e+01 : f32
    %312 = vector.broadcast %cst_83 : f32 to vector<16x1xf32>
    %313 = arith.divf %311, %312 : vector<16x1xf32>
    %314 = vector.broadcast %304 : vector<16x1xf32> to vector<16x32xf32>
    %315 = arith.subf %300, %314 : vector<16x32xf32>
    %cst_84 = arith.constant 9.99999974E-6 : f32
    %316 = vector.broadcast %cst_84 : f32 to vector<16x1xf32>
    %317 = arith.addf %313, %316 : vector<16x1xf32>
    %318 = math.rsqrt %317 : vector<16x1xf32>
    %319 = vector.broadcast %318 : vector<16x1xf32> to vector<16x32xf32>
    %320 = arith.mulf %315, %319 : vector<16x32xf32>
    %321 = vector.broadcast %202 : vector<1x32xf32> to vector<16x32xf32>
    %322 = arith.mulf %320, %321 : vector<16x32xf32>
    %323 = vector.broadcast %203 : vector<1x32xf32> to vector<16x32xf32>
    %324 = arith.addf %322, %323 : vector<16x32xf32>
    %325 = arith.truncf %324 : vector<16x32xf32> to vector<16x32xbf16>
    %cst_85 = arith.constant dense<0.000000e+00> : vector<16x32xf32>
    %326 = tpu.matmul %325, %194, %cst_85 {dimension_numbers = #tpu.dot_dimension_numbers<[1], [0], [0], [1], [0, 0, 1, 1], [], []>} : vector<16x32xbf16>, vector<32x32xbf16>, vector<16x32xf32> -> vector<16x32xf32>
    %327 = vector.broadcast %204 : vector<1x32xf32> to vector<16x32xf32>
    %328 = arith.addf %326, %327 : vector<16x32xf32>
    %cst_86 = arith.constant 0.000000e+00 : f32
    %329 = vector.broadcast %cst_86 : f32 to vector<16x32xf32>
    %330 = arith.maximumf %328, %329 : vector<16x32xf32>
    %331 = arith.truncf %330 : vector<16x32xf32> to vector<16x32xbf16>
    %cst_87 = arith.constant dense<0.000000e+00> : vector<16x32xf32>
    %332 = tpu.matmul %331, %195, %cst_87 {dimension_numbers = #tpu.dot_dimension_numbers<[1], [0], [0], [1], [0, 0, 1, 1], [], []>} : vector<16x32xbf16>, vector<32x32xbf16>, vector<16x32xf32> -> vector<16x32xf32>
    %333 = vector.broadcast %205 : vector<1x32xf32> to vector<16x32xf32>
    %334 = arith.addf %332, %333 : vector<16x32xf32>
    %335 = arith.addf %324, %334 : vector<16x32xf32>
    %cst_88 = arith.constant dense<0.000000e+00> : vector<16xf32>
    %336 = vector.multi_reduction <add>, %335, %cst_88 [1] : vector<16x32xf32> to vector<16xf32>
    %337 = vector.shape_cast %336 : vector<16xf32> to vector<16x1xf32>
    %cst_89 = arith.constant 3.200000e+01 : f32
    %338 = vector.broadcast %cst_89 : f32 to vector<16x1xf32>
    %339 = arith.divf %337, %338 : vector<16x1xf32>
    %340 = vector.broadcast %339 : vector<16x1xf32> to vector<16x32xf32>
    %341 = arith.subf %335, %340 : vector<16x32xf32>
    %342 = vector.broadcast %339 : vector<16x1xf32> to vector<16x32xf32>
    %343 = arith.subf %335, %342 : vector<16x32xf32>
    %344 = arith.mulf %341, %343 : vector<16x32xf32>
    %cst_90 = arith.constant dense<0.000000e+00> : vector<16xf32>
    %345 = vector.multi_reduction <add>, %344, %cst_90 [1] : vector<16x32xf32> to vector<16xf32>
    %346 = vector.shape_cast %345 : vector<16xf32> to vector<16x1xf32>
    %cst_91 = arith.constant 3.200000e+01 : f32
    %347 = vector.broadcast %cst_91 : f32 to vector<16x1xf32>
    %348 = arith.divf %346, %347 : vector<16x1xf32>
    %349 = vector.broadcast %339 : vector<16x1xf32> to vector<16x32xf32>
    %350 = arith.subf %335, %349 : vector<16x32xf32>
    %cst_92 = arith.constant 9.99999974E-6 : f32
    %351 = vector.broadcast %cst_92 : f32 to vector<16x1xf32>
    %352 = arith.addf %348, %351 : vector<16x1xf32>
    %353 = math.rsqrt %352 : vector<16x1xf32>
    %354 = vector.broadcast %353 : vector<16x1xf32> to vector<16x32xf32>
    %355 = arith.mulf %350, %354 : vector<16x32xf32>
    %356 = vector.broadcast %206 : vector<1x32xf32> to vector<16x32xf32>
    %357 = arith.mulf %355, %356 : vector<16x32xf32>
    %358 = vector.broadcast %207 : vector<1x32xf32> to vector<16x32xf32>
    %359 = arith.addf %357, %358 : vector<16x32xf32>
    %360 = arith.truncf %359 : vector<16x32xf32> to vector<16x32xbf16>
    %c0_93 = arith.constant 0 : index
    %c0_94 = arith.constant 0 : index
    %361 = vector.load %arg6[%c0_93, %c0_94] : memref<32x128xbf16, #tpu.memory_space<vmem>>, vector<32x128xbf16>
    %cst_95 = arith.constant dense<0.000000e+00> : vector<16x128xf32>
    %362 = tpu.matmul %360, %361, %cst_95 {dimension_numbers = #tpu.dot_dimension_numbers<[1], [0], [0], [1], [0, 0, 1, 1], [], []>} : vector<16x32xbf16>, vector<32x128xbf16>, vector<16x128xf32> -> vector<16x128xf32>
    %c0_96 = arith.constant 0 : index
    %c0_97 = arith.constant 0 : index
    %363 = vector.load %arg7[%c0_96, %c0_97] : memref<1x128xf32, #tpu.memory_space<vmem>>, vector<1x128xf32>
    %364 = vector.broadcast %363 : vector<1x128xf32> to vector<16x128xf32>
    %365 = arith.addf %362, %364 : vector<16x128xf32>
    %cst_98 = arith.constant 0.000000e+00 : f32
    %366 = vector.broadcast %cst_98 : f32 to vector<16x128xf32>
    %367 = arith.subf %366, %365 : vector<16x128xf32>
    %368 = math.exp %367 : vector<16x128xf32>
    %cst_99 = arith.constant 1.000000e+00 : f32
    %369 = vector.broadcast %cst_99 : f32 to vector<16x128xf32>
    %370 = arith.addf %369, %368 : vector<16x128xf32>
    %371 = tpu.reciprocal %370 {approx = true} : vector<16x128xf32> -> vector<16x128xf32>
    %372 = vector.shape_cast %371 : vector<16x128xf32> to vector<2x8x128xf32>
    %c0_100 = arith.constant 0 : index
    %c0_101 = arith.constant 0 : index
    %c0_102 = arith.constant 0 : index
    %373 = vector.load %arg8[%c0_100, %c0_101, %c0_102] : memref<2x8x128xf32, #tpu.memory_space<vmem>>, vector<2x8x128xf32>
    tpu.vector_store %arg8[%c0_100, %c0_101, %c0_102], %372 {strides = array<i32>} : memref<2x8x128xf32, #tpu.memory_space<vmem>>, vector<2x8x128xf32>,
    return
  }
  func.func @transform_0(%arg0: i32) -> (i32, i32, i32) {
    %c0_i32 = arith.constant 0 : i32
    %c0_i32_0 = arith.constant 0 : i32
    %c0_i32_1 = arith.constant 0 : i32
    return %arg0, %c0_i32, %c0_i32_0 : i32, i32, i32
  }
  func.func @transform_1(%arg0: i32) -> (i32, i32, i32) {
    %c0_i32 = arith.constant 0 : i32
    %c0_i32_0 = arith.constant 0 : i32
    %c0_i32_1 = arith.constant 0 : i32
    return %arg0, %c0_i32, %c0_i32_0 : i32, i32, i32
  }
  func.func @transform_2(%arg0: i32) -> (i32, i32, i32) {
    %c0_i32 = arith.constant 0 : i32
    %c0_i32_0 = arith.constant 0 : i32
    %c0_i32_1 = arith.constant 0 : i32
    return %arg0, %c0_i32, %c0_i32_0 : i32, i32, i32
  }
  func.func @transform_3(%arg0: i32) -> (i32, i32, i32) {
    %c0_i32 = arith.constant 0 : i32
    %c0_i32_0 = arith.constant 0 : i32
    %c0_i32_1 = arith.constant 0 : i32
    %c0_i32_2 = arith.constant 0 : i32
    return %c0_i32, %c0_i32_0, %c0_i32_1 : i32, i32, i32
  }
  func.func @transform_4(%arg0: i32) -> (i32, i32, i32) {
    %c0_i32 = arith.constant 0 : i32
    %c0_i32_0 = arith.constant 0 : i32
    %c0_i32_1 = arith.constant 0 : i32
    %c0_i32_2 = arith.constant 0 : i32
    return %c0_i32, %c0_i32_0, %c0_i32_1 : i32, i32, i32
  }
  func.func @transform_5(%arg0: i32) -> (i32, i32) {
    %c0_i32 = arith.constant 0 : i32
    %c0_i32_0 = arith.constant 0 : i32
    %c0_i32_1 = arith.constant 0 : i32
    return %c0_i32, %c0_i32_0 : i32, i32
  }
  func.func @transform_6(%arg0: i32) -> (i32, i32) {
    %c0_i32 = arith.constant 0 : i32
    %c0_i32_0 = arith.constant 0 : i32
    %c0_i32_1 = arith.constant 0 : i32
    return %c0_i32, %c0_i32_0 : i32, i32
  }
  func.func @transform_7(%arg0: i32) -> (i32, i32, i32) {
    %c0_i32 = arith.constant 0 : i32
    %c0_i32_0 = arith.constant 0 : i32
    %c0_i32_1 = arith.constant 0 : i32
    return %arg0, %c0_i32, %c0_i32_0 : i32, i32, i32
  }
}

</mosaic_0001>

<llo_original>
// kernel: tpu_custom_call.1
$region0: #{tpu_custom_call.1}
  #allocation0 [shape = 'u32[]', space=smem, size = 0x4, offset = 0x4, fixed_abs, tag = 'smem constant byte address 0x4 - core index']
  #allocation1 [shape = 'u32[144,128]{1,0:T(1,128)}', space=vmem, size = 0x12000, scoped, tag = 'internal scratch']
  %s0 = inlined_call_operand.vmem [shape: f32[2,8,32], index: 0, kind: input, shape index: {}]
  %s1 = inlined_call_operand.vmem [shape: f32[2,8,32], index: 1, kind: input, shape index: {}]
  %s2 = inlined_call_operand.vmem [shape: f32[2,1,8], index: 2, kind: input, shape index: {}]
  %s3 = inlined_call_operand.hbm [shape: bf16[2,32,192], index: 3, kind: input, shape index: {}]
  %s4 = inlined_call_operand.vmem [shape: f32[2,10,32], index: 4, kind: input, shape index: {}]
  %s5 = inlined_call_operand.vmem [shape: bf16[32,128], index: 5, kind: input, shape index: {}]
  %s6 = inlined_call_operand.vmem [shape: f32[1,128], index: 6, kind: input, shape index: {}]
  %s7 = inlined_call_operand.hbm [shape: f32[2,8,128], index: 7, kind: output, shape index: {}]
  %s8 = sld [smem:[#allocation0]]
  $region42: #{tpu_custom_call.1} parent=0
    _
  %s10 = ssub.s32 1, %s8
  %s11 = scalar_select 0, %s10, %s8
  $region1: #{tpu_custom_call.1} parent=0
    #allocation2 [shape = 'u8[32768]{0}', space=vmem, size = 0x8000, scoped, tag = 'input window, operand 3, single buffered']
    #allocation3 [shape = 's32[1]{0}', space=sflag, size = 0x4, scoped, tag = 'scoped memory for tpu_custom_call.1']
    #allocation4 [shape = 's32[1]{0}', space=sflag, size = 0x4, scoped, tag = 'scoped memory for tpu_custom_call.1']
    #allocation5 [shape = 'u8[8192]{0}', space=vmem, size = 0x2000, scoped, tag = 'output window, operand 0, single buffered']
    %12 = vsyncpa [#allocation3], 0
    %13 = vsyncpa [#allocation4], 0
    // Predicated region
    $region2: #{tpu_custom_call.1} parent=1 // pred_check
      _
    $region3: #{tpu_custom_call.1} parent=1 // pred_check_branch
      %15 = sbr.rel (0) target = $region5
    $region4: #{tpu_custom_call.1} parent=1 // pred_region
      _
    $region5: #{tpu_custom_call.1} parent=1 // pred_fallthru
      _
    // Predicated region
    $region6: #{tpu_custom_call.1} parent=1 // pred_check
      _
    $region7: #{tpu_custom_call.1} parent=1 // pred_check_branch
      %17 = sbr.rel (0) target = $region9
    $region8: #{tpu_custom_call.1} parent=1 // pred_region
      _
    $region9: #{tpu_custom_call.1} parent=1 // pred_fallthru
      _
    // Predicated region
    $region10: #{tpu_custom_call.1} parent=1 // pred_check
      _
    $region11: #{tpu_custom_call.1} parent=1 // pred_check_branch
      %19 = sbr.rel (0) target = $region13
    $region12: #{tpu_custom_call.1} parent=1 // pred_region
      _
    $region13: #{tpu_custom_call.1} parent=1 // pred_fallthru
      _
    // Predicated region
    $region14: #{tpu_custom_call.1} parent=1 // pred_check
      _
    $region15: #{tpu_custom_call.1} parent=1 // pred_check_branch
      %21 = sbr.rel (0) target = $region17
    $region16: #{tpu_custom_call.1} parent=1 // pred_region
      %s23 = ssub.s32 1024, 1024
      %24 = vsyncadd [#allocation3], %s23
      %s25 = sshll.u32 [#allocation2], 4
      %s26 = int_to_ptr.vmem [resolvable:$true] %s25
      %31 = dma.hbm_to_vmem [thread:$0]  %s3, 1024, %s26, [#allocation3], 128, 128, 8
    $region17: #{tpu_custom_call.1} parent=1 // pred_fallthru
      _
    // Predicated region
    $region18: #{tpu_custom_call.1} parent=1 // pred_check
      _
    $region19: #{tpu_custom_call.1} parent=1 // pred_check_branch
      %33 = sbr.rel (0) target = $region21
    $region20: #{tpu_custom_call.1} parent=1 // pred_region
      _
    $region21: #{tpu_custom_call.1} parent=1 // pred_fallthru
      _
    // Predicated region
    $region22: #{tpu_custom_call.1} parent=1 // pred_check
      _
    $region23: #{tpu_custom_call.1} parent=1 // pred_check_branch
      %35 = sbr.rel (0) target = $region25
    $region24: #{tpu_custom_call.1} parent=1 // pred_region
      _
    $region25: #{tpu_custom_call.1} parent=1 // pred_fallthru
      _
    // Predicated region
    $region26: #{tpu_custom_call.1} parent=1 // pred_check
      _
    $region27: #{tpu_custom_call.1} parent=1 // pred_check_branch
      %37 = sbr.rel (0) target = $region29
    $region28: #{tpu_custom_call.1} parent=1 // pred_region
      _
    $region29: #{tpu_custom_call.1} parent=1 // pred_fallthru
      _
    // Predicated region
    $region30: #{tpu_custom_call.1} parent=1 // pred_check
      _
    $region31: #{tpu_custom_call.1} parent=1 // pred_check_branch
      %39 = sbr.rel (0) target = $region33
    $region32: #{tpu_custom_call.1} parent=1 // pred_region
      %40 = dma.done [#allocation3], 1024
    $region33: #{tpu_custom_call.1} parent=1 // pred_fallthru
      _
    %v42 = vld [vmem:[%s0] sm:$0xff]
    %v43 = vld [vmem:[%s0 + $0x8] sm:$0xff]
    %v44 = vld [vmem:[%s1] sm:$0xff]
    %v45 = vld [vmem:[%s1 + $0x8] sm:$0xff]
    %v46 = vpack.c.bf16 %v43, %v42
    %v47 = vlaneseq
    %v48 = vshrl.u32 %v47, 7
    %v49 = vlaneseq
    %v50 = vand.u32 %v49, 127
    %vm51 = vcmp.ge.s32.totalorder %v48, %v50
    %v52 = vld [vmem:[%s2] sm:$0x1]
    %v53 = vld [vmem:[%s2 + $0x1] sm:$0x1]
    %vm54 = vcmp.gt.f32.partialorder %v52, 0.5
    %vm55 = vcmp.gt.f32.partialorder %v53, 0.5
    %v56 = vsel %vm51, 1, 0
    %vm57 = vcmp.eq.s32.totalorder %v56, 1
    %v58 = vsel %vm54, 1, 0
    %v59 = vsel %vm55, 1, 0
    %v60 = vlaneseq
    %v61 = vshrl.u32 %v60, 7
    %v62 = vsub.s32 0, %v61
    %v63 = vrot.slane %v58, %v62
    %v64 = vlaneseq
    %v65 = vshrl.u32 %v64, 7
    %v66 = vsub.s32 0, %v65
    %v67 = vrot.slane %v59, %v66
    %vm68 = vcmp.eq.s32.totalorder %v63, 1
    %vm69 = vcmp.eq.s32.totalorder %v67, 1
    %vm70 = vmand %vm57, %vm68
    %vm71 = vmand %vm57, %vm69
    %v72 = vsel %vm70, 0.0, -1e+30
    %v73 = vsel %vm71, 0.0, -1e+30
    %v74 = vld [vmem:[#allocation2] sm:$0xff]
    %v75 = vld [vmem:[#allocation2 + $0x8] sm:$0xff]
    %v76 = vld [vmem:[#allocation2 + $0x10] sm:$0xff]
    %v77 = vld [vmem:[#allocation2 + $0x18] sm:$0xff]
    %v78 = vld [vmem:[%s4] sm:$0xff]
    %v79 = vld [vmem:[%s4 + $0x8] sm:$0x3]
    %v80 = vpack.c.bf16 %v45, %v44
    %v81 = vlaneseq
    %v82 = vshrl.u32 %v81, 7
    %v83 = vsub.s32 0, %v82
    %v84 = vrot.slane %v78, %v83
    %v89 = vunpack.c.l.b16 %v74
    %v90 = vunpack.c.l.b16 %v75
    %v91 = vunpack.c.l.b16 %v76
    %v92 = vunpack.c.l.b16 %v77
    %v93 = vpack.c.b16 %v90, %v89
    %v94 = vpack.c.b16 %v92, %v91
    %vm97 = vcmask 261120
    %v99 = vsel %vm97, %v46, 0
    %101 = vmatprep.subr.bf16.mxu0 0
    %102 = vmatpush1.bf16.msra.mxu0 %v93
    %103 = vmatprep.subr.bf16.mxu0 0
    %104 = vmatpush1.bf16.msra.mxu0 %v94
    %105 = vmatprep.subr.bf16.mxu0 0
    %106 = vmatpush1.bf16.msra.mxu0 0
    %107 = vmatprep.subr.bf16.mxu0 0
    %108 = vmatpush1.bf16.msra.mxu0 0
    %109 = vmatprep.subr.bf16.mxu0 0
    %110 = vmatpush1.bf16.msra.mxu0 0
    %111 = vmatprep.subr.bf16.mxu0 0
    %112 = vmatpush1.bf16.msra.mxu0 0
    %113 = vmatprep.subr.bf16.mxu0 0
    %114 = vmatpush1.bf16.msra.mxu0 0
    %115 = vmatprep.subr.bf16.mxu0 0
    %116 = vmatpush1.bf16.msra.mxu0 0
    %117 = vmatprep.subr.bf16.mxu0 0
    %118 = vmatpush1.bf16.msra.mxu0 0
    %119 = vmatprep.subr.bf16.mxu0 0
    %120 = vmatpush1.bf16.msra.mxu0 0
    %121 = vmatprep.subr.bf16.mxu0 0
    %122 = vmatpush1.bf16.msra.mxu0 0
    %123 = vmatprep.subr.bf16.mxu0 0
    %124 = vmatpush1.bf16.msra.mxu0 0
    %125 = vmatprep.subr.bf16.mxu0 0
    %126 = vmatpush1.bf16.msra.mxu0 0
    %127 = vmatprep.subr.bf16.mxu0 0
    %128 = vmatpush1.bf16.msra.mxu0 0
    %129 = vmatprep.subr.bf16.mxu0 0
    %130 = vmatpush1.bf16.msra.mxu0 0
    %131 = vmatprep.subr.bf16.mxu0 0
    %132 = vmatpush1.bf16.msra.mxu0 0
    %133 = vmatprep.mubr.bf16.mxu0 0
    %134 = vmatmul.mubr.bf16.gmra.mrb[0].mxu0 %v99
    %v135 = vpop.f32.mrb[0].mxu0
    %v136 = vadd.f32 %v84, %v135
    %v137 = vpop.f32.mrb[0].mxu0
    %v138 = vpop.f32.mrb[0].mxu0
    %v139 = vadd.f32 %v84, %v138
    %v140 = vpop.f32.mrb[0].mxu0
    %141 = vdwg.mxu0
    %142 = vrot.lane.b32.xlu0 %v93, 96
    %v143 = vpop.permute.xlu0 %142
    %144 = vrot.lane.b32.xlu0 %v94, 96
    %v145 = vpop.permute.xlu0 %144
    %v149 = vsel %vm97, %v80, 0
    %151 = vmatprep.subr.bf16.mxu0 0
    %152 = vmatpush1.bf16.msra.mxu0 %v143
    %153 = vmatprep.subr.bf16.mxu0 0
    %154 = vmatpush1.bf16.msra.mxu0 %v145
    %155 = vmatprep.subr.bf16.mxu0 0
    %156 = vmatpush1.bf16.msra.mxu0 0
    %157 = vmatprep.subr.bf16.mxu0 0
    %158 = vmatpush1.bf16.msra.mxu0 0
    %159 = vmatprep.subr.bf16.mxu0 0
    %160 = vmatpush1.bf16.msra.mxu0 0
    %161 = vmatprep.subr.bf16.mxu0 0
    %162 = vmatpush1.bf16.msra.mxu0 0
    %163 = vmatprep.subr.bf16.mxu0 0
    %164 = vmatpush1.bf16.msra.mxu0 0
    %165 = vmatprep.subr.bf16.mxu0 0
    %166 = vmatpush1.bf16.msra.mxu0 0
    %167 = vmatprep.subr.bf16.mxu0 0
    %168 = vmatpush1.bf16.msra.mxu0 0
    %169 = vmatprep.subr.bf16.mxu0 0
    %170 = vmatpush1.bf16.msra.mxu0 0
    %171 = vmatprep.subr.bf16.mxu0 0
    %172 = vmatpush1.bf16.msra.mxu0 0
    %173 = vmatprep.subr.bf16.mxu0 0
    %174 = vmatpush1.bf16.msra.mxu0 0
    %175 = vmatprep.subr.bf16.mxu0 0
    %176 = vmatpush1.bf16.msra.mxu0 0
    %177 = vmatprep.subr.bf16.mxu0 0
    %178 = vmatpush1.bf16.msra.mxu0 0
    %179 = vmatprep.subr.bf16.mxu0 0
    %180 = vmatpush1.bf16.msra.mxu0 0
    %181 = vmatprep.subr.bf16.mxu0 0
    %182 = vmatpush1.bf16.msra.mxu0 0
    %183 = vmatprep.mubr.bf16.mxu0 0
    %184 = vmatmul.mubr.bf16.gmra.mrb[0].mxu0 %v149
    %v185 = vpop.f32.mrb[0].mxu0
    %v186 = vadd.f32 0.0, %v185
    %v187 = vpop.f32.mrb[0].mxu0
    %v188 = vpop.f32.mrb[0].mxu0
    %v189 = vadd.f32 0.0, %v188
    %v190 = vpop.f32.mrb[0].mxu0
    %191 = vdwg.mxu0
    %v192 = vlaneseq
    %v193 = vshrl.u32 %v192, 7
    %v194 = vsub.s32 1, %v193
    %v195 = vrot.slane %v78, %v194
    %v196 = vadd.f32 %v186, %v195
    %v197 = vadd.f32 %v189, %v195
    %v198 = vlaneseq
    %v199 = vshrl.u32 %v198, 7
    %v200 = vsub.s32 2, %v199
    %v201 = vrot.slane %v78, %v200
    %203 = vrot.lane.b32.xlu0 %v201, 32
    %v204 = vpop.permute.xlu0 %203
    %v206 = vadd.f32 %v186, %v204
    %v207 = vadd.f32 %v189, %v204
    %vm208 = vcmask 64512
    %v210 = vsel %vm208, %v136, 0
    %v213 = vsel %vm208, %v196, 0
    %215 = vmatprep.subr.mxu0 0.0
    %216 = vmatpush1.xpose.msra.mxu0 %v213
    %217 = vmatprep.subr.mxu0 0.0
    %218 = vmatpush1.xpose.msra.mxu0 0.0
    %219 = vmatprep.subr.mxu0 0.0
    %220 = vmatpush1.xpose.msra.mxu0 0.0
    %221 = vmatprep.subr.mxu0 0.0
    %222 = vmatpush1.xpose.msra.mxu0 0.0
    %223 = vmatprep.subr.mxu0 0.0
    %224 = vmatpush1.xpose.msra.mxu0 0.0
    %225 = vmatprep.subr.mxu0 0.0
    %226 = vmatpush1.xpose.msra.mxu0 0.0
    %227 = vmatprep.subr.mxu0 0.0
    %228 = vmatpush1.xpose.msra.mxu0 0.0
    %229 = vmatprep.subr.mxu0 0.0
    %230 = vmatpush1.xpose.msra.mxu0 0.0
    %231 = vmatprep.subr.mxu0 0.0
    %232 = vmatpush1.xpose.msra.mxu0 0.0
    %233 = vmatprep.subr.mxu0 0.0
    %234 = vmatpush1.xpose.msra.mxu0 0.0
    %235 = vmatprep.subr.mxu0 0.0
    %236 = vmatpush1.xpose.msra.mxu0 0.0
    %237 = vmatprep.subr.mxu0 0.0
    %238 = vmatpush1.xpose.msra.mxu0 0.0
    %239 = vmatprep.subr.mxu0 0.0
    %240 = vmatpush1.xpose.msra.mxu0 0.0
    %241 = vmatprep.subr.mxu0 0.0
    %242 = vmatpush1.xpose.msra.mxu0 0.0
    %243 = vmatprep.subr.mxu0 0.0
    %244 = vmatpush1.xpose.msra.mxu0 0.0
    %245 = vmatprep.subr.mxu0 0.0
    %246 = vmatpush1.xpose.msra.mxu0 0.0
    %247 = vmatprep.subr.mxu0 0.0
    %248 = vmatpush1.xpose.msra.mxu0 0.0
    %249 = vmatprep.subr.mxu0 0.0
    %250 = vmatpush1.xpose.msra.mxu0 0.0
    %251 = vmatprep.subr.mxu0 0.0
    %252 = vmatpush1.xpose.msra.mxu0 0.0
    %253 = vmatprep.subr.mxu0 0.0
    %254 = vmatpush1.xpose.msra.mxu0 0.0
    %255 = vmatprep.subr.mxu0 0.0
    %256 = vmatpush1.xpose.msra.mxu0 0.0
    %257 = vmatprep.subr.mxu0 0.0
    %258 = vmatpush1.xpose.msra.mxu0 0.0
    %259 = vmatprep.subr.mxu0 0.0
    %260 = vmatpush1.xpose.msra.mxu0 0.0
    %261 = vmatprep.subr.mxu0 0.0
    %262 = vmatpush1.xpose.msra.mxu0 0.0
    %263 = vmatprep.subr.mxu0 0.0
    %264 = vmatpush1.xpose.msra.mxu0 0.0
    %265 = vmatprep.subr.mxu0 0.0
    %266 = vmatpush1.xpose.msra.mxu0 0.0
    %267 = vmatprep.subr.mxu0 0.0
    %268 = vmatpush1.xpose.msra.mxu0 0.0
    %269 = vmatprep.subr.mxu0 0.0
    %270 = vmatpush1.xpose.msra.mxu0 0.0
    %271 = vmatprep.subr.mxu0 0.0
    %272 = vmatpush1.xpose.msra.mxu0 0.0
    %273 = vmatprep.subr.mxu0 0.0
    %274 = vmatpush1.xpose.msra.mxu0 0.0
    %275 = vmatprep.subr.mxu0 0.0
    %276 = vmatpush1.xpose.msra.mxu0 0.0
    %277 = vmatprep.subr.mxu0 0.0
    %278 = vmatpush1.xpose.msra.mxu0 0.0
    %279 = vmatprep.mubr.f32.mxu0 0.0
    %280 = vmatmul.mubr.f32.gmra.mrb[0].mxu0 %v210
    %v281 = vpop.f32.mrb[0].mxu0
    %v282 = vadd.f32 0.0, %v281
    %v283 = vpop.f32.mrb[0].mxu0
    %284 = vdwg.mxu0
    %v286 = vsel %vm208, %v139, 0
    %v289 = vsel %vm208, %v197, 0
    %291 = vmatprep.subr.mxu0 0.0
    %292 = vmatpush1.xpose.msra.mxu0 %v289
    %293 = vmatprep.subr.mxu0 0.0
    %294 = vmatpush1.xpose.msra.mxu0 0.0
    %295 = vmatprep.subr.mxu0 0.0
    %296 = vmatpush1.xpose.msra.mxu0 0.0
    %297 = vmatprep.subr.mxu0 0.0
    %298 = vmatpush1.xpose.msra.mxu0 0.0
    %299 = vmatprep.subr.mxu0 0.0
    %300 = vmatpush1.xpose.msra.mxu0 0.0
    %301 = vmatprep.subr.mxu0 0.0
    %302 = vmatpush1.xpose.msra.mxu0 0.0
    %303 = vmatprep.subr.mxu0 0.0
    %304 = vmatpush1.xpose.msra.mxu0 0.0
    %305 = vmatprep.subr.mxu0 0.0
    %306 = vmatpush1.xpose.msra.mxu0 0.0
    %307 = vmatprep.subr.mxu0 0.0
    %308 = vmatpush1.xpose.msra.mxu0 0.0
    %309 = vmatprep.subr.mxu0 0.0
    %310 = vmatpush1.xpose.msra.mxu0 0.0
    %311 = vmatprep.subr.mxu0 0.0
    %312 = vmatpush1.xpose.msra.mxu0 0.0
    %313 = vmatprep.subr.mxu0 0.0
    %314 = vmatpush1.xpose.msra.mxu0 0.0
    %315 = vmatprep.subr.mxu0 0.0
    %316 = vmatpush1.xpose.msra.mxu0 0.0
    %317 = vmatprep.subr.mxu0 0.0
    %318 = vmatpush1.xpose.msra.mxu0 0.0
    %319 = vmatprep.subr.mxu0 0.0
    %320 = vmatpush1.xpose.msra.mxu0 0.0
    %321 = vmatprep.subr.mxu0 0.0
    %322 = vmatpush1.xpose.msra.mxu0 0.0
    %323 = vmatprep.subr.mxu0 0.0
    %324 = vmatpush1.xpose.msra.mxu0 0.0
    %325 = vmatprep.subr.mxu0 0.0
    %326 = vmatpush1.xpose.msra.mxu0 0.0
    %327 = vmatprep.subr.mxu0 0.0
    %328 = vmatpush1.xpose.msra.mxu0 0.0
    %329 = vmatprep.subr.mxu0 0.0
    %330 = vmatpush1.xpose.msra.mxu0 0.0
    %331 = vmatprep.subr.mxu0 0.0
    %332 = vmatpush1.xpose.msra.mxu0 0.0
    %333 = vmatprep.subr.mxu0 0.0
    %334 = vmatpush1.xpose.msra.mxu0 0.0
    %335 = vmatprep.subr.mxu0 0.0
    %336 = vmatpush1.xpose.msra.mxu0 0.0
    %337 = vmatprep.subr.mxu0 0.0
    %338 = vmatpush1.xpose.msra.mxu0 0.0
    %339 = vmatprep.subr.mxu0 0.0
    %340 = vmatpush1.xpose.msra.mxu0 0.0
    %341 = vmatprep.subr.mxu0 0.0
    %342 = vmatpush1.xpose.msra.mxu0 0.0
    %343 = vmatprep.subr.mxu0 0.0
    %344 = vmatpush1.xpose.msra.mxu0 0.0
    %345 = vmatprep.subr.mxu0 0.0
    %346 = vmatpush1.xpose.msra.mxu0 0.0
    %347 = vmatprep.subr.mxu0 0.0
    %348 = vmatpush1.xpose.msra.mxu0 0.0
    %349 = vmatprep.subr.mxu0 0.0
    %350 = vmatpush1.xpose.msra.mxu0 0.0
    %351 = vmatprep.subr.mxu0 0.0
    %352 = vmatpush1.xpose.msra.mxu0 0.0
    %353 = vmatprep.subr.mxu0 0.0
    %354 = vmatpush1.xpose.msra.mxu0 0.0
    %355 = vmatprep.mubr.f32.mxu0 0.0
    %356 = vmatmul.mubr.f32.gmra.mrb[0].mxu0 %v286
    %v357 = vpop.f32.mrb[0].mxu0
    %v358 = vadd.f32 0.0, %v357
    %v359 = vpop.f32.mrb[0].mxu0
    %360 = vdwg.mxu0
    %v361 = vmul.f32 %v282, 0.35355338
    %v362 = vmul.f32 %v358, 0.35355338
    %v363 = vadd.f32 %v361, %v72
    %v364 = vadd.f32 %v362, %v73
    %v365 = vsel %vm208, %v363, -inf
    %366 = vmax.xlane.f32.xlu0 %v365
    %v367 = vpop.xlane.xlu0 %366
    %v368 = vsel %vm208, %v364, -inf
    %369 = vmax.xlane.f32.xlu0 %v368
    %v370 = vpop.xlane.xlu0 %369
    %v371 = vsub.f32 %v363, %v367
    %v372 = vsub.f32 %v364, %v370
    %v373 = vmul.f32 %v371, 1.442695
    %v374 = vpow.pop %v373
    %v375 = vmul.f32 %v372, 1.442695
    %v376 = vpow.pop %v375
    %v377 = vsel %vm208, %v374, 0.0
    %378 = vadd.xlane.f32.xlu0 %v377
    %v379 = vpop.xlane.xlu0 %378
    %v380 = vsel %vm208, %v376, 0.0
    %381 = vadd.xlane.f32.xlu0 %v380
    %v382 = vpop.xlane.xlu0 %381
    %v383 = vrcp.pop %v379
    %v384 = vrcp.pop %v382
    %v385 = vmul.f32 %v374, %v383
    %v386 = vmul.f32 %v376, %v384
    %388 = vrot.lane.b32.xlu0 %v206, 96
    %v389 = vpop.permute.xlu0 %388
    %v392 = vsel %vm208, %v385, 0
    %394 = vmatprep.subr.mxu0 0.0
    %395 = vmatpush1.msra.mxu0 %v389
    %396 = vmatprep.subr.mxu0 0.0
    %397 = vmatpush1.msra.mxu0 0.0
    %398 = vmatprep.subr.mxu0 0.0
    %399 = vmatpush1.msra.mxu0 0.0
    %400 = vmatprep.subr.mxu0 0.0
    %401 = vmatpush1.msra.mxu0 0.0
    %402 = vmatprep.subr.mxu0 0.0
    %403 = vmatpush1.msra.mxu0 0.0
    %404 = vmatprep.subr.mxu0 0.0
    %405 = vmatpush1.msra.mxu0 0.0
    %406 = vmatprep.subr.mxu0 0.0
    %407 = vmatpush1.msra.mxu0 0.0
    %408 = vmatprep.subr.mxu0 0.0
    %409 = vmatpush1.msra.mxu0 0.0
    %410 = vmatprep.subr.mxu0 0.0
    %411 = vmatpush1.msra.mxu0 0.0
    %412 = vmatprep.subr.mxu0 0.0
    %413 = vmatpush1.msra.mxu0 0.0
    %414 = vmatprep.subr.mxu0 0.0
    %415 = vmatpush1.msra.mxu0 0.0
    %416 = vmatprep.subr.mxu0 0.0
    %417 = vmatpush1.msra.mxu0 0.0
    %418 = vmatprep.subr.mxu0 0.0
    %419 = vmatpush1.msra.mxu0 0.0
    %420 = vmatprep.subr.mxu0 0.0
    %421 = vmatpush1.msra.mxu0 0.0
    %422 = vmatprep.subr.mxu0 0.0
    %423 = vmatpush1.msra.mxu0 0.0
    %424 = vmatprep.subr.mxu0 0.0
    %425 = vmatpush1.msra.mxu0 0.0
    %426 = vmatprep.subr.mxu0 0.0
    %427 = vmatpush1.msra.mxu0 0.0
    %428 = vmatprep.subr.mxu0 0.0
    %429 = vmatpush1.msra.mxu0 0.0
    %430 = vmatprep.subr.mxu0 0.0
    %431 = vmatpush1.msra.mxu0 0.0
    %432 = vmatprep.subr.mxu0 0.0
    %433 = vmatpush1.msra.mxu0 0.0
    %434 = vmatprep.subr.mxu0 0.0
    %435 = vmatpush1.msra.mxu0 0.0
    %436 = vmatprep.subr.mxu0 0.0
    %437 = vmatpush1.msra.mxu0 0.0
    %438 = vmatprep.subr.mxu0 0.0
    %439 = vmatpush1.msra.mxu0 0.0
    %440 = vmatprep.subr.mxu0 0.0
    %441 = vmatpush1.msra.mxu0 0.0
    %442 = vmatprep.subr.mxu0 0.0
    %443 = vmatpush1.msra.mxu0 0.0
    %444 = vmatprep.subr.mxu0 0.0
    %445 = vmatpush1.msra.mxu0 0.0
    %446 = vmatprep.subr.mxu0 0.0
    %447 = vmatpush1.msra.mxu0 0.0
    %448 = vmatprep.subr.mxu0 0.0
    %449 = vmatpush1.msra.mxu0 0.0
    %450 = vmatprep.subr.mxu0 0.0
    %451 = vmatpush1.msra.mxu0 0.0
    %452 = vmatprep.subr.mxu0 0.0
    %453 = vmatpush1.msra.mxu0 0.0
    %454 = vmatprep.subr.mxu0 0.0
    %455 = vmatpush1.msra.mxu0 0.0
    %456 = vmatprep.subr.mxu0 0.0
    %457 = vmatpush1.msra.mxu0 0.0
    %458 = vmatprep.mubr.f32.mxu0 0.0
    %459 = vmatmul.mubr.f32.gmra.mrb[0].mxu0 %v392
    %v460 = vpop.f32.mrb[0].mxu0
    %v461 = vadd.f32 0.0, %v460
    %v462 = vpop.f32.mrb[0].mxu0
    %463 = vdwg.mxu0
    %465 = vrot.lane.b32.xlu0 %v207, 96
    %v466 = vpop.permute.xlu0 %465
    %v469 = vsel %vm208, %v386, 0
    %471 = vmatprep.subr.mxu0 0.0
    %472 = vmatpush1.msra.mxu0 %v466
    %473 = vmatprep.subr.mxu0 0.0
    %474 = vmatpush1.msra.mxu0 0.0
    %475 = vmatprep.subr.mxu0 0.0
    %476 = vmatpush1.msra.mxu0 0.0
    %477 = vmatprep.subr.mxu0 0.0
    %478 = vmatpush1.msra.mxu0 0.0
    %479 = vmatprep.subr.mxu0 0.0
    %480 = vmatpush1.msra.mxu0 0.0
    %481 = vmatprep.subr.mxu0 0.0
    %482 = vmatpush1.msra.mxu0 0.0
    %483 = vmatprep.subr.mxu0 0.0
    %484 = vmatpush1.msra.mxu0 0.0
    %485 = vmatprep.subr.mxu0 0.0
    %486 = vmatpush1.msra.mxu0 0.0
    %487 = vmatprep.subr.mxu0 0.0
    %488 = vmatpush1.msra.mxu0 0.0
    %489 = vmatprep.subr.mxu0 0.0
    %490 = vmatpush1.msra.mxu0 0.0
    %491 = vmatprep.subr.mxu0 0.0
    %492 = vmatpush1.msra.mxu0 0.0
    %493 = vmatprep.subr.mxu0 0.0
    %494 = vmatpush1.msra.mxu0 0.0
    %495 = vmatprep.subr.mxu0 0.0
    %496 = vmatpush1.msra.mxu0 0.0
    %497 = vmatprep.subr.mxu0 0.0
    %498 = vmatpush1.msra.mxu0 0.0
    %499 = vmatprep.subr.mxu0 0.0
    %500 = vmatpush1.msra.mxu0 0.0
    %501 = vmatprep.subr.mxu0 0.0
    %502 = vmatpush1.msra.mxu0 0.0
    %503 = vmatprep.subr.mxu0 0.0
    %504 = vmatpush1.msra.mxu0 0.0
    %505 = vmatprep.subr.mxu0 0.0
    %506 = vmatpush1.msra.mxu0 0.0
    %507 = vmatprep.subr.mxu0 0.0
    %508 = vmatpush1.msra.mxu0 0.0
    %509 = vmatprep.subr.mxu0 0.0
    %510 = vmatpush1.msra.mxu0 0.0
    %511 = vmatprep.subr.mxu0 0.0
    %512 = vmatpush1.msra.mxu0 0.0
    %513 = vmatprep.subr.mxu0 0.0
    %514 = vmatpush1.msra.mxu0 0.0
    %515 = vmatprep.subr.mxu0 0.0
    %516 = vmatpush1.msra.mxu0 0.0
    %517 = vmatprep.subr.mxu0 0.0
    %518 = vmatpush1.msra.mxu0 0.0
    %519 = vmatprep.subr.mxu0 0.0
    %520 = vmatpush1.msra.mxu0 0.0
    %521 = vmatprep.subr.mxu0 0.0
    %522 = vmatpush1.msra.mxu0 0.0
    %523 = vmatprep.subr.mxu0 0.0
    %524 = vmatpush1.msra.mxu0 0.0
    %525 = vmatprep.subr.mxu0 0.0
    %526 = vmatpush1.msra.mxu0 0.0
    %527 = vmatprep.subr.mxu0 0.0
    %528 = vmatpush1.msra.mxu0 0.0
    %529 = vmatprep.subr.mxu0 0.0
    %530 = vmatpush1.msra.mxu0 0.0
    %531 = vmatprep.subr.mxu0 0.0
    %532 = vmatpush1.msra.mxu0 0.0
    %533 = vmatprep.subr.mxu0 0.0
    %534 = vmatpush1.msra.mxu0 0.0
    %535 = vmatprep.mubr.f32.mxu0 0.0
    %536 = vmatmul.mubr.f32.gmra.mrb[0].mxu0 %v469
    %v537 = vpop.f32.mrb[0].mxu0
    %v538 = vadd.f32 0.0, %v537
    %v539 = vpop.f32.mrb[0].mxu0
    %540 = vdwg.mxu0
    %541 = vrot.lane.b32.xlu0 %v136, 120
    %v542 = vpop.permute.xlu0 %541
    %543 = vrot.lane.b32.xlu0 %v196, 120
    %v544 = vpop.permute.xlu0 %543
    %v545 = vsel %vm208, %v542, 0
    %v547 = vsel %vm208, %v544, 0
    %549 = vmatprep.subr.mxu0 0.0
    %550 = vmatpush1.xpose.msra.mxu0 %v547
    %551 = vmatprep.subr.mxu0 0.0
    %552 = vmatpush1.xpose.msra.mxu0 0.0
    %553 = vmatprep.subr.mxu0 0.0
    %554 = vmatpush1.xpose.msra.mxu0 0.0
    %555 = vmatprep.subr.mxu0 0.0
    %556 = vmatpush1.xpose.msra.mxu0 0.0
    %557 = vmatprep.subr.mxu0 0.0
    %558 = vmatpush1.xpose.msra.mxu0 0.0
    %559 = vmatprep.subr.mxu0 0.0
    %560 = vmatpush1.xpose.msra.mxu0 0.0
    %561 = vmatprep.subr.mxu0 0.0
    %562 = vmatpush1.xpose.msra.mxu0 0.0
    %563 = vmatprep.subr.mxu0 0.0
    %564 = vmatpush1.xpose.msra.mxu0 0.0
    %565 = vmatprep.subr.mxu0 0.0
    %566 = vmatpush1.xpose.msra.mxu0 0.0
    %567 = vmatprep.subr.mxu0 0.0
    %568 = vmatpush1.xpose.msra.mxu0 0.0
    %569 = vmatprep.subr.mxu0 0.0
    %570 = vmatpush1.xpose.msra.mxu0 0.0
    %571 = vmatprep.subr.mxu0 0.0
    %572 = vmatpush1.xpose.msra.mxu0 0.0
    %573 = vmatprep.subr.mxu0 0.0
    %574 = vmatpush1.xpose.msra.mxu0 0.0
    %575 = vmatprep.subr.mxu0 0.0
    %576 = vmatpush1.xpose.msra.mxu0 0.0
    %577 = vmatprep.subr.mxu0 0.0
    %578 = vmatpush1.xpose.msra.mxu0 0.0
    %579 = vmatprep.subr.mxu0 0.0
    %580 = vmatpush1.xpose.msra.mxu0 0.0
    %581 = vmatprep.subr.mxu0 0.0
    %582 = vmatpush1.xpose.msra.mxu0 0.0
    %583 = vmatprep.subr.mxu0 0.0
    %584 = vmatpush1.xpose.msra.mxu0 0.0
    %585 = vmatprep.subr.mxu0 0.0
    %586 = vmatpush1.xpose.msra.mxu0 0.0
    %587 = vmatprep.subr.mxu0 0.0
    %588 = vmatpush1.xpose.msra.mxu0 0.0
    %589 = vmatprep.subr.mxu0 0.0
    %590 = vmatpush1.xpose.msra.mxu0 0.0
    %591 = vmatprep.subr.mxu0 0.0
    %592 = vmatpush1.xpose.msra.mxu0 0.0
    %593 = vmatprep.subr.mxu0 0.0
    %594 = vmatpush1.xpose.msra.mxu0 0.0
    %595 = vmatprep.subr.mxu0 0.0
    %596 = vmatpush1.xpose.msra.mxu0 0.0
    %597 = vmatprep.subr.mxu0 0.0
    %598 = vmatpush1.xpose.msra.mxu0 0.0
    %599 = vmatprep.subr.mxu0 0.0
    %600 = vmatpush1.xpose.msra.mxu0 0.0
    %601 = vmatprep.subr.mxu0 0.0
    %602 = vmatpush1.xpose.msra.mxu0 0.0
    %603 = vmatprep.subr.mxu0 0.0
    %604 = vmatpush1.xpose.msra.mxu0 0.0
    %605 = vmatprep.subr.mxu0 0.0
    %606 = vmatpush1.xpose.msra.mxu0 0.0
    %607 = vmatprep.subr.mxu0 0.0
    %608 = vmatpush1.xpose.msra.mxu0 0.0
    %609 = vmatprep.subr.mxu0 0.0
    %610 = vmatpush1.xpose.msra.mxu0 0.0
    %611 = vmatprep.subr.mxu0 0.0
    %612 = vmatpush1.xpose.msra.mxu0 0.0
    %613 = vmatprep.mubr.f32.mxu0 0.0
    %614 = vmatmul.mubr.f32.gmra.mrb[0].mxu0 %v545
    %v615 = vpop.f32.mrb[0].mxu0
    %v616 = vadd.f32 0.0, %v615
    %v617 = vpop.f32.mrb[0].mxu0
    %618 = vdwg.mxu0
    %619 = vrot.lane.b32.xlu0 %v139, 120
    %v620 = vpop.permute.xlu0 %619
    %621 = vrot.lane.b32.xlu0 %v197, 120
    %v622 = vpop.permute.xlu0 %621
    %v623 = vsel %vm208, %v620, 0
    %v625 = vsel %vm208, %v622, 0
    %627 = vmatprep.subr.mxu0 0.0
    %628 = vmatpush1.xpose.msra.mxu0 %v625
    %629 = vmatprep.subr.mxu0 0.0
    %630 = vmatpush1.xpose.msra.mxu0 0.0
    %631 = vmatprep.subr.mxu0 0.0
    %632 = vmatpush1.xpose.msra.mxu0 0.0
    %633 = vmatprep.subr.mxu0 0.0
    %634 = vmatpush1.xpose.msra.mxu0 0.0
    %635 = vmatprep.subr.mxu0 0.0
    %636 = vmatpush1.xpose.msra.mxu0 0.0
    %637 = vmatprep.subr.mxu0 0.0
    %638 = vmatpush1.xpose.msra.mxu0 0.0
    %639 = vmatprep.subr.mxu0 0.0
    %640 = vmatpush1.xpose.msra.mxu0 0.0
    %641 = vmatprep.subr.mxu0 0.0
    %642 = vmatpush1.xpose.msra.mxu0 0.0
    %643 = vmatprep.subr.mxu0 0.0
    %644 = vmatpush1.xpose.msra.mxu0 0.0
    %645 = vmatprep.subr.mxu0 0.0
    %646 = vmatpush1.xpose.msra.mxu0 0.0
    %647 = vmatprep.subr.mxu0 0.0
    %648 = vmatpush1.xpose.msra.mxu0 0.0
    %649 = vmatprep.subr.mxu0 0.0
    %650 = vmatpush1.xpose.msra.mxu0 0.0
    %651 = vmatprep.subr.mxu0 0.0
    %652 = vmatpush1.xpose.msra.mxu0 0.0
    %653 = vmatprep.subr.mxu0 0.0
    %654 = vmatpush1.xpose.msra.mxu0 0.0
    %655 = vmatprep.subr.mxu0 0.0
    %656 = vmatpush1.xpose.msra.mxu0 0.0
    %657 = vmatprep.subr.mxu0 0.0
    %658 = vmatpush1.xpose.msra.mxu0 0.0
    %659 = vmatprep.subr.mxu0 0.0
    %660 = vmatpush1.xpose.msra.mxu0 0.0
    %661 = vmatprep.subr.mxu0 0.0
    %662 = vmatpush1.xpose.msra.mxu0 0.0
    %663 = vmatprep.subr.mxu0 0.0
    %664 = vmatpush1.xpose.msra.mxu0 0.0
    %665 = vmatprep.subr.mxu0 0.0
    %666 = vmatpush1.xpose.msra.mxu0 0.0
    %667 = vmatprep.subr.mxu0 0.0
    %668 = vmatpush1.xpose.msra.mxu0 0.0
    %669 = vmatprep.subr.mxu0 0.0
    %670 = vmatpush1.xpose.msra.mxu0 0.0
    %671 = vmatprep.subr.mxu0 0.0
    %672 = vmatpush1.xpose.msra.mxu0 0.0
    %673 = vmatprep.subr.mxu0 0.0
    %674 = vmatpush1.xpose.msra.mxu0 0.0
    %675 = vmatprep.subr.mxu0 0.0
    %676 = vmatpush1.xpose.msra.mxu0 0.0
    %677 = vmatprep.subr.mxu0 0.0
    %678 = vmatpush1.xpose.msra.mxu0 0.0
    %679 = vmatprep.subr.mxu0 0.0
    %680 = vmatpush1.xpose.msra.mxu0 0.0
    %681 = vmatprep.subr.mxu0 0.0
    %682 = vmatpush1.xpose.msra.mxu0 0.0
    %683 = vmatprep.subr.mxu0 0.0
    %684 = vmatpush1.xpose.msra.mxu0 0.0
    %685 = vmatprep.subr.mxu0 0.0
    %686 = vmatpush1.xpose.msra.mxu0 0.0
    %687 = vmatprep.subr.mxu0 0.0
    %688 = vmatpush1.xpose.msra.mxu0 0.0
    %689 = vmatprep.subr.mxu0 0.0
    %690 = vmatpush1.xpose.msra.mxu0 0.0
    %691 = vmatprep.mubr.f32.mxu0 0.0
    %692 = vmatmul.mubr.f32.gmra.mrb[0].mxu0 %v623
    %v693 = vpop.f32.mrb[0].mxu0
    %v694 = vadd.f32 0.0, %v693
    %v695 = vpop.f32.mrb[0].mxu0
    %696 = vdwg.mxu0
    %v697 = vmul.f32 %v616, 0.35355338
    %v698 = vmul.f32 %v694, 0.35355338
    %v699 = vadd.f32 %v697, %v72
    %v700 = vadd.f32 %v698, %v73
    %v701 = vsel %vm208, %v699, -inf
    %702 = vmax.xlane.f32.xlu0 %v701
    %v703 = vpop.xlane.xlu0 %702
    %v704 = vsel %vm208, %v700, -inf
    %705 = vmax.xlane.f32.xlu0 %v704
    %v706 = vpop.xlane.xlu0 %705
    %v707 = vsub.f32 %v699, %v703
    %v708 = vsub.f32 %v700, %v706
    %v709 = vmul.f32 %v707, 1.442695
    %v710 = vpow.pop %v709
    %v711 = vmul.f32 %v708, 1.442695
    %v712 = vpow.pop %v711
    %v713 = vsel %vm208, %v710, 0.0
    %714 = vadd.xlane.f32.xlu0 %v713
    %v715 = vpop.xlane.xlu0 %714
    %v716 = vsel %vm208, %v712, 0.0
    %717 = vadd.xlane.f32.xlu0 %v716
    %v718 = vpop.xlane.xlu0 %717
    %v719 = vrcp.pop %v715
    %v720 = vrcp.pop %v718
    %v721 = vmul.f32 %v710, %v719
    %v722 = vmul.f32 %v712, %v720
    %723 = vrot.lane.b32.xlu0 %v206, 88
    %v724 = vpop.permute.xlu0 %723
    %v727 = vsel %vm208, %v721, 0
    %729 = vmatprep.subr.mxu0 0.0
    %730 = vmatpush1.msra.mxu0 %v724
    %731 = vmatprep.subr.mxu0 0.0
    %732 = vmatpush1.msra.mxu0 0.0
    %733 = vmatprep.subr.mxu0 0.0
    %734 = vmatpush1.msra.mxu0 0.0
    %735 = vmatprep.subr.mxu0 0.0
    %736 = vmatpush1.msra.mxu0 0.0
    %737 = vmatprep.subr.mxu0 0.0
    %738 = vmatpush1.msra.mxu0 0.0
    %739 = vmatprep.subr.mxu0 0.0
    %740 = vmatpush1.msra.mxu0 0.0
    %741 = vmatprep.subr.mxu0 0.0
    %742 = vmatpush1.msra.mxu0 0.0
    %743 = vmatprep.subr.mxu0 0.0
    %744 = vmatpush1.msra.mxu0 0.0
    %745 = vmatprep.subr.mxu0 0.0
    %746 = vmatpush1.msra.mxu0 0.0
    %747 = vmatprep.subr.mxu0 0.0
    %748 = vmatpush1.msra.mxu0 0.0
    %749 = vmatprep.subr.mxu0 0.0
    %750 = vmatpush1.msra.mxu0 0.0
    %751 = vmatprep.subr.mxu0 0.0
    %752 = vmatpush1.msra.mxu0 0.0
    %753 = vmatprep.subr.mxu0 0.0
    %754 = vmatpush1.msra.mxu0 0.0
    %755 = vmatprep.subr.mxu0 0.0
    %756 = vmatpush1.msra.mxu0 0.0
    %757 = vmatprep.subr.mxu0 0.0
    %758 = vmatpush1.msra.mxu0 0.0
    %759 = vmatprep.subr.mxu0 0.0
    %760 = vmatpush1.msra.mxu0 0.0
    %761 = vmatprep.subr.mxu0 0.0
    %762 = vmatpush1.msra.mxu0 0.0
    %763 = vmatprep.subr.mxu0 0.0
    %764 = vmatpush1.msra.mxu0 0.0
    %765 = vmatprep.subr.mxu0 0.0
    %766 = vmatpush1.msra.mxu0 0.0
    %767 = vmatprep.subr.mxu0 0.0
    %768 = vmatpush1.msra.mxu0 0.0
    %769 = vmatprep.subr.mxu0 0.0
    %770 = vmatpush1.msra.mxu0 0.0
    %771 = vmatprep.subr.mxu0 0.0
    %772 = vmatpush1.msra.mxu0 0.0
    %773 = vmatprep.subr.mxu0 0.0
    %774 = vmatpush1.msra.mxu0 0.0
    %775 = vmatprep.subr.mxu0 0.0
    %776 = vmatpush1.msra.mxu0 0.0
    %777 = vmatprep.subr.mxu0 0.0
    %778 = vmatpush1.msra.mxu0 0.0
    %779 = vmatprep.subr.mxu0 0.0
    %780 = vmatpush1.msra.mxu0 0.0
    %781 = vmatprep.subr.mxu0 0.0
    %782 = vmatpush1.msra.mxu0 0.0
    %783 = vmatprep.subr.mxu0 0.0
    %784 = vmatpush1.msra.mxu0 0.0
    %785 = vmatprep.subr.mxu0 0.0
    %786 = vmatpush1.msra.mxu0 0.0
    %787 = vmatprep.subr.mxu0 0.0
    %788 = vmatpush1.msra.mxu0 0.0
    %789 = vmatprep.subr.mxu0 0.0
    %790 = vmatpush1.msra.mxu0 0.0
    %791 = vmatprep.subr.mxu0 0.0
    %792 = vmatpush1.msra.mxu0 0.0
    %793 = vmatprep.mubr.f32.mxu0 0.0
    %794 = vmatmul.mubr.f32.gmra.mrb[0].mxu0 %v727
    %v795 = vpop.f32.mrb[0].mxu0
    %v796 = vadd.f32 0.0, %v795
    %v797 = vpop.f32.mrb[0].mxu0
    %798 = vdwg.mxu0
    %799 = vrot.lane.b32.xlu0 %v207, 88
    %v800 = vpop.permute.xlu0 %799
    %v803 = vsel %vm208, %v722, 0
    %805 = vmatprep.subr.mxu0 0.0
    %806 = vmatpush1.msra.mxu0 %v800
    %807 = vmatprep.subr.mxu0 0.0
    %808 = vmatpush1.msra.mxu0 0.0
    %809 = vmatprep.subr.mxu0 0.0
    %810 = vmatpush1.msra.mxu0 0.0
    %811 = vmatprep.subr.mxu0 0.0
    %812 = vmatpush1.msra.mxu0 0.0
    %813 = vmatprep.subr.mxu0 0.0
    %814 = vmatpush1.msra.mxu0 0.0
    %815 = vmatprep.subr.mxu0 0.0
    %816 = vmatpush1.msra.mxu0 0.0
    %817 = vmatprep.subr.mxu0 0.0
    %818 = vmatpush1.msra.mxu0 0.0
    %819 = vmatprep.subr.mxu0 0.0
    %820 = vmatpush1.msra.mxu0 0.0
    %821 = vmatprep.subr.mxu0 0.0
    %822 = vmatpush1.msra.mxu0 0.0
    %823 = vmatprep.subr.mxu0 0.0
    %824 = vmatpush1.msra.mxu0 0.0
    %825 = vmatprep.subr.mxu0 0.0
    %826 = vmatpush1.msra.mxu0 0.0
    %827 = vmatprep.subr.mxu0 0.0
    %828 = vmatpush1.msra.mxu0 0.0
    %829 = vmatprep.subr.mxu0 0.0
    %830 = vmatpush1.msra.mxu0 0.0
    %831 = vmatprep.subr.mxu0 0.0
    %832 = vmatpush1.msra.mxu0 0.0
    %833 = vmatprep.subr.mxu0 0.0
    %834 = vmatpush1.msra.mxu0 0.0
    %835 = vmatprep.subr.mxu0 0.0
    %836 = vmatpush1.msra.mxu0 0.0
    %837 = vmatprep.subr.mxu0 0.0
    %838 = vmatpush1.msra.mxu0 0.0
    %839 = vmatprep.subr.mxu0 0.0
    %840 = vmatpush1.msra.mxu0 0.0
    %841 = vmatprep.subr.mxu0 0.0
    %842 = vmatpush1.msra.mxu0 0.0
    %843 = vmatprep.subr.mxu0 0.0
    %844 = vmatpush1.msra.mxu0 0.0
    %845 = vmatprep.subr.mxu0 0.0
    %846 = vmatpush1.msra.mxu0 0.0
    %847 = vmatprep.subr.mxu0 0.0
    %848 = vmatpush1.msra.mxu0 0.0
    %849 = vmatprep.subr.mxu0 0.0
    %850 = vmatpush1.msra.mxu0 0.0
    %851 = vmatprep.subr.mxu0 0.0
    %852 = vmatpush1.msra.mxu0 0.0
    %853 = vmatprep.subr.mxu0 0.0
    %854 = vmatpush1.msra.mxu0 0.0
    %855 = vmatprep.subr.mxu0 0.0
    %856 = vmatpush1.msra.mxu0 0.0
    %857 = vmatprep.subr.mxu0 0.0
    %858 = vmatpush1.msra.mxu0 0.0
    %859 = vmatprep.subr.mxu0 0.0
    %860 = vmatpush1.msra.mxu0 0.0
    %861 = vmatprep.subr.mxu0 0.0
    %862 = vmatpush1.msra.mxu0 0.0
    %863 = vmatprep.subr.mxu0 0.0
    %864 = vmatpush1.msra.mxu0 0.0
    %865 = vmatprep.subr.mxu0 0.0
    %866 = vmatpush1.msra.mxu0 0.0
    %867 = vmatprep.subr.mxu0 0.0
    %868 = vmatpush1.msra.mxu0 0.0
    %869 = vmatprep.mubr.f32.mxu0 0.0
    %870 = vmatmul.mubr.f32.gmra.mrb[0].mxu0 %v803
    %v871 = vpop.f32.mrb[0].mxu0
    %v872 = vadd.f32 0.0, %v871
    %v873 = vpop.f32.mrb[0].mxu0
    %874 = vdwg.mxu0
    %875 = vrot.lane.b32.xlu0 %v136, 112
    %v876 = vpop.permute.xlu0 %875
    %877 = vrot.lane.b32.xlu0 %v196, 112
    %v878 = vpop.permute.xlu0 %877
    %v879 = vsel %vm208, %v876, 0
    %v881 = vsel %vm208, %v878, 0
    %883 = vmatprep.subr.mxu0 0.0
    %884 = vmatpush1.xpose.msra.mxu0 %v881
    %885 = vmatprep.subr.mxu0 0.0
    %886 = vmatpush1.xpose.msra.mxu0 0.0
    %887 = vmatprep.subr.mxu0 0.0
    %888 = vmatpush1.xpose.msra.mxu0 0.0
    %889 = vmatprep.subr.mxu0 0.0
    %890 = vmatpush1.xpose.msra.mxu0 0.0
    %891 = vmatprep.subr.mxu0 0.0
    %892 = vmatpush1.xpose.msra.mxu0 0.0
    %893 = vmatprep.subr.mxu0 0.0
    %894 = vmatpush1.xpose.msra.mxu0 0.0
    %895 = vmatprep.subr.mxu0 0.0
    %896 = vmatpush1.xpose.msra.mxu0 0.0
    %897 = vmatprep.subr.mxu0 0.0
    %898 = vmatpush1.xpose.msra.mxu0 0.0
    %899 = vmatprep.subr.mxu0 0.0
    %900 = vmatpush1.xpose.msra.mxu0 0.0
    %901 = vmatprep.subr.mxu0 0.0
    %902 = vmatpush1.xpose.msra.mxu0 0.0
    %903 = vmatprep.subr.mxu0 0.0
    %904 = vmatpush1.xpose.msra.mxu0 0.0
    %905 = vmatprep.subr.mxu0 0.0
    %906 = vmatpush1.xpose.msra.mxu0 0.0
    %907 = vmatprep.subr.mxu0 0.0
    %908 = vmatpush1.xpose.msra.mxu0 0.0
    %909 = vmatprep.subr.mxu0 0.0
    %910 = vmatpush1.xpose.msra.mxu0 0.0
    %911 = vmatprep.subr.mxu0 0.0
    %912 = vmatpush1.xpose.msra.mxu0 0.0
    %913 = vmatprep.subr.mxu0 0.0
    %914 = vmatpush1.xpose.msra.mxu0 0.0
    %915 = vmatprep.subr.mxu0 0.0
    %916 = vmatpush1.xpose.msra.mxu0 0.0
    %917 = vmatprep.subr.mxu0 0.0
    %918 = vmatpush1.xpose.msra.mxu0 0.0
    %919 = vmatprep.subr.mxu0 0.0
    %920 = vmatpush1.xpose.msra.mxu0 0.0
    %921 = vmatprep.subr.mxu0 0.0
    %922 = vmatpush1.xpose.msra.mxu0 0.0
    %923 = vmatprep.subr.mxu0 0.0
    %924 = vmatpush1.xpose.msra.mxu0 0.0
    %925 = vmatprep.subr.mxu0 0.0
    %926 = vmatpush1.xpose.msra.mxu0 0.0
    %927 = vmatprep.subr.mxu0 0.0
    %928 = vmatpush1.xpose.msra.mxu0 0.0
    %929 = vmatprep.subr.mxu0 0.0
    %930 = vmatpush1.xpose.msra.mxu0 0.0
    %931 = vmatprep.subr.mxu0 0.0
    %932 = vmatpush1.xpose.msra.mxu0 0.0
    %933 = vmatprep.subr.mxu0 0.0
    %934 = vmatpush1.xpose.msra.mxu0 0.0
    %935 = vmatprep.subr.mxu0 0.0
    %936 = vmatpush1.xpose.msra.mxu0 0.0
    %937 = vmatprep.subr.mxu0 0.0
    %938 = vmatpush1.xpose.msra.mxu0 0.0
    %939 = vmatprep.subr.mxu0 0.0
    %940 = vmatpush1.xpose.msra.mxu0 0.0
    %941 = vmatprep.subr.mxu0 0.0
    %942 = vmatpush1.xpose.msra.mxu0 0.0
    %943 = vmatprep.subr.mxu0 0.0
    %944 = vmatpush1.xpose.msra.mxu0 0.0
    %945 = vmatprep.subr.mxu0 0.0
    %946 = vmatpush1.xpose.msra.mxu0 0.0
    %947 = vmatprep.mubr.f32.mxu0 0.0
    %948 = vmatmul.mubr.f32.gmra.mrb[0].mxu0 %v879
    %v949 = vpop.f32.mrb[0].mxu0
    %v950 = vadd.f32 0.0, %v949
    %v951 = vpop.f32.mrb[0].mxu0
    %952 = vdwg.mxu0
    %953 = vrot.lane.b32.xlu0 %v139, 112
    %v954 = vpop.permute.xlu0 %953
    %955 = vrot.lane.b32.xlu0 %v197, 112
    %v956 = vpop.permute.xlu0 %955
    %v957 = vsel %vm208, %v954, 0
    %v959 = vsel %vm208, %v956, 0
    %961 = vmatprep.subr.mxu0 0.0
    %962 = vmatpush1.xpose.msra.mxu0 %v959
    %963 = vmatprep.subr.mxu0 0.0
    %964 = vmatpush1.xpose.msra.mxu0 0.0
    %965 = vmatprep.subr.mxu0 0.0
    %966 = vmatpush1.xpose.msra.mxu0 0.0
    %967 = vmatprep.subr.mxu0 0.0
    %968 = vmatpush1.xpose.msra.mxu0 0.0
    %969 = vmatprep.subr.mxu0 0.0
    %970 = vmatpush1.xpose.msra.mxu0 0.0
    %971 = vmatprep.subr.mxu0 0.0
    %972 = vmatpush1.xpose.msra.mxu0 0.0
    %973 = vmatprep.subr.mxu0 0.0
    %974 = vmatpush1.xpose.msra.mxu0 0.0
    %975 = vmatprep.subr.mxu0 0.0
    %976 = vmatpush1.xpose.msra.mxu0 0.0
    %977 = vmatprep.subr.mxu0 0.0
    %978 = vmatpush1.xpose.msra.mxu0 0.0
    %979 = vmatprep.subr.mxu0 0.0
    %980 = vmatpush1.xpose.msra.mxu0 0.0
    %981 = vmatprep.subr.mxu0 0.0
    %982 = vmatpush1.xpose.msra.mxu0 0.0
    %983 = vmatprep.subr.mxu0 0.0
    %984 = vmatpush1.xpose.msra.mxu0 0.0
    %985 = vmatprep.subr.mxu0 0.0
    %986 = vmatpush1.xpose.msra.mxu0 0.0
    %987 = vmatprep.subr.mxu0 0.0
    %988 = vmatpush1.xpose.msra.mxu0 0.0
    %989 = vmatprep.subr.mxu0 0.0
    %990 = vmatpush1.xpose.msra.mxu0 0.0
    %991 = vmatprep.subr.mxu0 0.0
    %992 = vmatpush1.xpose.msra.mxu0 0.0
    %993 = vmatprep.subr.mxu0 0.0
    %994 = vmatpush1.xpose.msra.mxu0 0.0
    %995 = vmatprep.subr.mxu0 0.0
    %996 = vmatpush1.xpose.msra.mxu0 0.0
    %997 = vmatprep.subr.mxu0 0.0
    %998 = vmatpush1.xpose.msra.mxu0 0.0
    %999 = vmatprep.subr.mxu0 0.0
    %1000 = vmatpush1.xpose.msra.mxu0 0.0
    %1001 = vmatprep.subr.mxu0 0.0
    %1002 = vmatpush1.xpose.msra.mxu0 0.0
    %1003 = vmatprep.subr.mxu0 0.0
    %1004 = vmatpush1.xpose.msra.mxu0 0.0
    %1005 = vmatprep.subr.mxu0 0.0
    %1006 = vmatpush1.xpose.msra.mxu0 0.0
    %1007 = vmatprep.subr.mxu0 0.0
    %1008 = vmatpush1.xpose.msra.mxu0 0.0
    %1009 = vmatprep.subr.mxu0 0.0
    %1010 = vmatpush1.xpose.msra.mxu0 0.0
    %1011 = vmatprep.subr.mxu0 0.0
    %1012 = vmatpush1.xpose.msra.mxu0 0.0
    %1013 = vmatprep.subr.mxu0 0.0
    %1014 = vmatpush1.xpose.msra.mxu0 0.0
    %1015 = vmatprep.subr.mxu0 0.0
    %1016 = vmatpush1.xpose.msra.mxu0 0.0
    %1017 = vmatprep.subr.mxu0 0.0
    %1018 = vmatpush1.xpose.msra.mxu0 0.0
    %1019 = vmatprep.subr.mxu0 0.0
    %1020 = vmatpush1.xpose.msra.mxu0 0.0
    %1021 = vmatprep.subr.mxu0 0.0
    %1022 = vmatpush1.xpose.msra.mxu0 0.0
    %1023 = vmatprep.subr.mxu0 0.0
    %1024 = vmatpush1.xpose.msra.mxu0 0.0
    %1025 = vmatprep.mubr.f32.mxu0 0.0
    %1026 = vmatmul.mubr.f32.gmra.mrb[0].mxu0 %v957
    %v1027 = vpop.f32.mrb[0].mxu0
    %v1028 = vadd.f32 0.0, %v1027
    %v1029 = vpop.f32.mrb[0].mxu0
    %1030 = vdwg.mxu0
    %v1031 = vmul.f32 %v950, 0.35355338
    %v1032 = vmul.f32 %v1028, 0.35355338
    %v1033 = vadd.f32 %v1031, %v72
    %v1034 = vadd.f32 %v1032, %v73
    %v1035 = vsel %vm208, %v1033, -inf
    %1036 = vmax.xlane.f32.xlu0 %v1035
    %v1037 = vpop.xlane.xlu0 %1036
    %v1038 = vsel %vm208, %v1034, -inf
    %1039 = vmax.xlane.f32.xlu0 %v1038
    %v1040 = vpop.xlane.xlu0 %1039
    %v1041 = vsub.f32 %v1033, %v1037
    %v1042 = vsub.f32 %v1034, %v1040
    %v1043 = vmul.f32 %v1041, 1.442695
    %v1044 = vpow.pop %v1043
    %v1045 = vmul.f32 %v1042, 1.442695
    %v1046 = vpow.pop %v1045
    %v1047 = vsel %vm208, %v1044, 0.0
    %1048 = vadd.xlane.f32.xlu0 %v1047
    %v1049 = vpop.xlane.xlu0 %1048
    %v1050 = vsel %vm208, %v1046, 0.0
    %1051 = vadd.xlane.f32.xlu0 %v1050
    %v1052 = vpop.xlane.xlu0 %1051
    %v1053 = vrcp.pop %v1049
    %v1054 = vrcp.pop %v1052
    %v1055 = vmul.f32 %v1044, %v1053
    %v1056 = vmul.f32 %v1046, %v1054
    %1057 = vrot.lane.b32.xlu0 %v206, 80
    %v1058 = vpop.permute.xlu0 %1057
    %v1061 = vsel %vm208, %v1055, 0
    %1063 = vmatprep.subr.mxu0 0.0
    %1064 = vmatpush1.msra.mxu0 %v1058
    %1065 = vmatprep.subr.mxu0 0.0
    %1066 = vmatpush1.msra.mxu0 0.0
    %1067 = vmatprep.subr.mxu0 0.0
    %1068 = vmatpush1.msra.mxu0 0.0
    %1069 = vmatprep.subr.mxu0 0.0
    %1070 = vmatpush1.msra.mxu0 0.0
    %1071 = vmatprep.subr.mxu0 0.0
    %1072 = vmatpush1.msra.mxu0 0.0
    %1073 = vmatprep.subr.mxu0 0.0
    %1074 = vmatpush1.msra.mxu0 0.0
    %1075 = vmatprep.subr.mxu0 0.0
    %1076 = vmatpush1.msra.mxu0 0.0
    %1077 = vmatprep.subr.mxu0 0.0
    %1078 = vmatpush1.msra.mxu0 0.0
    %1079 = vmatprep.subr.mxu0 0.0
    %1080 = vmatpush1.msra.mxu0 0.0
    %1081 = vmatprep.subr.mxu0 0.0
    %1082 = vmatpush1.msra.mxu0 0.0
    %1083 = vmatprep.subr.mxu0 0.0
    %1084 = vmatpush1.msra.mxu0 0.0
    %1085 = vmatprep.subr.mxu0 0.0
    %1086 = vmatpush1.msra.mxu0 0.0
    %1087 = vmatprep.subr.mxu0 0.0
    %1088 = vmatpush1.msra.mxu0 0.0
    %1089 = vmatprep.subr.mxu0 0.0
    %1090 = vmatpush1.msra.mxu0 0.0
    %1091 = vmatprep.subr.mxu0 0.0
    %1092 = vmatpush1.msra.mxu0 0.0
    %1093 = vmatprep.subr.mxu0 0.0
    %1094 = vmatpush1.msra.mxu0 0.0
    %1095 = vmatprep.subr.mxu0 0.0
    %1096 = vmatpush1.msra.mxu0 0.0
    %1097 = vmatprep.subr.mxu0 0.0
    %1098 = vmatpush1.msra.mxu0 0.0
    %1099 = vmatprep.subr.mxu0 0.0
    %1100 = vmatpush1.msra.mxu0 0.0
    %1101 = vmatprep.subr.mxu0 0.0
    %1102 = vmatpush1.msra.mxu0 0.0
    %1103 = vmatprep.subr.mxu0 0.0
    %1104 = vmatpush1.msra.mxu0 0.0
    %1105 = vmatprep.subr.mxu0 0.0
    %1106 = vmatpush1.msra.mxu0 0.0
    %1107 = vmatprep.subr.mxu0 0.0
    %1108 = vmatpush1.msra.mxu0 0.0
    %1109 = vmatprep.subr.mxu0 0.0
    %1110 = vmatpush1.msra.mxu0 0.0
    %1111 = vmatprep.subr.mxu0 0.0
    %1112 = vmatpush1.msra.mxu0 0.0
    %1113 = vmatprep.subr.mxu0 0.0
    %1114 = vmatpush1.msra.mxu0 0.0
    %1115 = vmatprep.subr.mxu0 0.0
    %1116 = vmatpush1.msra.mxu0 0.0
    %1117 = vmatprep.subr.mxu0 0.0
    %1118 = vmatpush1.msra.mxu0 0.0
    %1119 = vmatprep.subr.mxu0 0.0
    %1120 = vmatpush1.msra.mxu0 0.0
    %1121 = vmatprep.subr.mxu0 0.0
    %1122 = vmatpush1.msra.mxu0 0.0
    %1123 = vmatprep.subr.mxu0 0.0
    %1124 = vmatpush1.msra.mxu0 0.0
    %1125 = vmatprep.subr.mxu0 0.0
    %1126 = vmatpush1.msra.mxu0 0.0
    %1127 = vmatprep.mubr.f32.mxu0 0.0
    %1128 = vmatmul.mubr.f32.gmra.mrb[0].mxu0 %v1061
    %v1129 = vpop.f32.mrb[0].mxu0
    %v1130 = vadd.f32 0.0, %v1129
    %v1131 = vpop.f32.mrb[0].mxu0
    %1132 = vdwg.mxu0
    %1133 = vrot.lane.b32.xlu0 %v207, 80
    %v1134 = vpop.permute.xlu0 %1133
    %v1137 = vsel %vm208, %v1056, 0
    %1139 = vmatprep.subr.mxu0 0.0
    %1140 = vmatpush1.msra.mxu0 %v1134
    %1141 = vmatprep.subr.mxu0 0.0
    %1142 = vmatpush1.msra.mxu0 0.0
    %1143 = vmatprep.subr.mxu0 0.0
    %1144 = vmatpush1.msra.mxu0 0.0
    %1145 = vmatprep.subr.mxu0 0.0
    %1146 = vmatpush1.msra.mxu0 0.0
    %1147 = vmatprep.subr.mxu0 0.0
    %1148 = vmatpush1.msra.mxu0 0.0
    %1149 = vmatprep.subr.mxu0 0.0
    %1150 = vmatpush1.msra.mxu0 0.0
    %1151 = vmatprep.subr.mxu0 0.0
    %1152 = vmatpush1.msra.mxu0 0.0
    %1153 = vmatprep.subr.mxu0 0.0
    %1154 = vmatpush1.msra.mxu0 0.0
    %1155 = vmatprep.subr.mxu0 0.0
    %1156 = vmatpush1.msra.mxu0 0.0
    %1157 = vmatprep.subr.mxu0 0.0
    %1158 = vmatpush1.msra.mxu0 0.0
    %1159 = vmatprep.subr.mxu0 0.0
    %1160 = vmatpush1.msra.mxu0 0.0
    %1161 = vmatprep.subr.mxu0 0.0
    %1162 = vmatpush1.msra.mxu0 0.0
    %1163 = vmatprep.subr.mxu0 0.0
    %1164 = vmatpush1.msra.mxu0 0.0
    %1165 = vmatprep.subr.mxu0 0.0
    %1166 = vmatpush1.msra.mxu0 0.0
    %1167 = vmatprep.subr.mxu0 0.0
    %1168 = vmatpush1.msra.mxu0 0.0
    %1169 = vmatprep.subr.mxu0 0.0
    %1170 = vmatpush1.msra.mxu0 0.0
    %1171 = vmatprep.subr.mxu0 0.0
    %1172 = vmatpush1.msra.mxu0 0.0
    %1173 = vmatprep.subr.mxu0 0.0
    %1174 = vmatpush1.msra.mxu0 0.0
    %1175 = vmatprep.subr.mxu0 0.0
    %1176 = vmatpush1.msra.mxu0 0.0
    %1177 = vmatprep.subr.mxu0 0.0
    %1178 = vmatpush1.msra.mxu0 0.0
    %1179 = vmatprep.subr.mxu0 0.0
    %1180 = vmatpush1.msra.mxu0 0.0
    %1181 = vmatprep.subr.mxu0 0.0
    %1182 = vmatpush1.msra.mxu0 0.0
    %1183 = vmatprep.subr.mxu0 0.0
    %1184 = vmatpush1.msra.mxu0 0.0
    %1185 = vmatprep.subr.mxu0 0.0
    %1186 = vmatpush1.msra.mxu0 0.0
    %1187 = vmatprep.subr.mxu0 0.0
    %1188 = vmatpush1.msra.mxu0 0.0
    %1189 = vmatprep.subr.mxu0 0.0
    %1190 = vmatpush1.msra.mxu0 0.0
    %1191 = vmatprep.subr.mxu0 0.0
    %1192 = vmatpush1.msra.mxu0 0.0
    %1193 = vmatprep.subr.mxu0 0.0
    %1194 = vmatpush1.msra.mxu0 0.0
    %1195 = vmatprep.subr.mxu0 0.0
    %1196 = vmatpush1.msra.mxu0 0.0
    %1197 = vmatprep.subr.mxu0 0.0
    %1198 = vmatpush1.msra.mxu0 0.0
    %1199 = vmatprep.subr.mxu0 0.0
    %1200 = vmatpush1.msra.mxu0 0.0
    %1201 = vmatprep.subr.mxu0 0.0
    %1202 = vmatpush1.msra.mxu0 0.0
    %1203 = vmatprep.mubr.f32.mxu0 0.0
    %1204 = vmatmul.mubr.f32.gmra.mrb[0].mxu0 %v1137
    %v1205 = vpop.f32.mrb[0].mxu0
    %v1206 = vadd.f32 0.0, %v1205
    %v1207 = vpop.f32.mrb[0].mxu0
    %1208 = vdwg.mxu0
    %1209 = vrot.lane.b32.xlu0 %v136, 104
    %v1210 = vpop.permute.xlu0 %1209
    %1211 = vrot.lane.b32.xlu0 %v196, 104
    %v1212 = vpop.permute.xlu0 %1211
    %v1213 = vsel %vm208, %v1210, 0
    %v1215 = vsel %vm208, %v1212, 0
    %1217 = vmatprep.subr.mxu0 0.0
    %1218 = vmatpush1.xpose.msra.mxu0 %v1215
    %1219 = vmatprep.subr.mxu0 0.0
    %1220 = vmatpush1.xpose.msra.mxu0 0.0
    %1221 = vmatprep.subr.mxu0 0.0
    %1222 = vmatpush1.xpose.msra.mxu0 0.0
    %1223 = vmatprep.subr.mxu0 0.0
    %1224 = vmatpush1.xpose.msra.mxu0 0.0
    %1225 = vmatprep.subr.mxu0 0.0
    %1226 = vmatpush1.xpose.msra.mxu0 0.0
    %1227 = vmatprep.subr.mxu0 0.0
    %1228 = vmatpush1.xpose.msra.mxu0 0.0
    %1229 = vmatprep.subr.mxu0 0.0
    %1230 = vmatpush1.xpose.msra.mxu0 0.0
    %1231 = vmatprep.subr.mxu0 0.0
    %1232 = vmatpush1.xpose.msra.mxu0 0.0
    %1233 = vmatprep.subr.mxu0 0.0
    %1234 = vmatpush1.xpose.msra.mxu0 0.0
    %1235 = vmatprep.subr.mxu0 0.0
    %1236 = vmatpush1.xpose.msra.mxu0 0.0
    %1237 = vmatprep.subr.mxu0 0.0
    %1238 = vmatpush1.xpose.msra.mxu0 0.0
    %1239 = vmatprep.subr.mxu0 0.0
    %1240 = vmatpush1.xpose.msra.mxu0 0.0
    %1241 = vmatprep.subr.mxu0 0.0
    %1242 = vmatpush1.xpose.msra.mxu0 0.0
    %1243 = vmatprep.subr.mxu0 0.0
    %1244 = vmatpush1.xpose.msra.mxu0 0.0
    %1245 = vmatprep.subr.mxu0 0.0
    %1246 = vmatpush1.xpose.msra.mxu0 0.0
    %1247 = vmatprep.subr.mxu0 0.0
    %1248 = vmatpush1.xpose.msra.mxu0 0.0
    %1249 = vmatprep.subr.mxu0 0.0
    %1250 = vmatpush1.xpose.msra.mxu0 0.0
    %1251 = vmatprep.subr.mxu0 0.0
    %1252 = vmatpush1.xpose.msra.mxu0 0.0
    %1253 = vmatprep.subr.mxu0 0.0
    %1254 = vmatpush1.xpose.msra.mxu0 0.0
    %1255 = vmatprep.subr.mxu0 0.0
    %1256 = vmatpush1.xpose.msra.mxu0 0.0
    %1257 = vmatprep.subr.mxu0 0.0
    %1258 = vmatpush1.xpose.msra.mxu0 0.0
    %1259 = vmatprep.subr.mxu0 0.0
    %1260 = vmatpush1.xpose.msra.mxu0 0.0
    %1261 = vmatprep.subr.mxu0 0.0
    %1262 = vmatpush1.xpose.msra.mxu0 0.0
    %1263 = vmatprep.subr.mxu0 0.0
    %1264 = vmatpush1.xpose.msra.mxu0 0.0
    %1265 = vmatprep.subr.mxu0 0.0
    %1266 = vmatpush1.xpose.msra.mxu0 0.0
    %1267 = vmatprep.subr.mxu0 0.0
    %1268 = vmatpush1.xpose.msra.mxu0 0.0
    %1269 = vmatprep.subr.mxu0 0.0
    %1270 = vmatpush1.xpose.msra.mxu0 0.0
    %1271 = vmatprep.subr.mxu0 0.0
    %1272 = vmatpush1.xpose.msra.mxu0 0.0
    %1273 = vmatprep.subr.mxu0 0.0
    %1274 = vmatpush1.xpose.msra.mxu0 0.0
    %1275 = vmatprep.subr.mxu0 0.0
    %1276 = vmatpush1.xpose.msra.mxu0 0.0
    %1277 = vmatprep.subr.mxu0 0.0
    %1278 = vmatpush1.xpose.msra.mxu0 0.0
    %1279 = vmatprep.subr.mxu0 0.0
    %1280 = vmatpush1.xpose.msra.mxu0 0.0
    %1281 = vmatprep.mubr.f32.mxu0 0.0
    %1282 = vmatmul.mubr.f32.gmra.mrb[0].mxu0 %v1213
    %v1283 = vpop.f32.mrb[0].mxu0
    %v1284 = vadd.f32 0.0, %v1283
    %v1285 = vpop.f32.mrb[0].mxu0
    %1286 = vdwg.mxu0
    %1287 = vrot.lane.b32.xlu0 %v139, 104
    %v1288 = vpop.permute.xlu0 %1287
    %1289 = vrot.lane.b32.xlu0 %v197, 104
    %v1290 = vpop.permute.xlu0 %1289
    %v1291 = vsel %vm208, %v1288, 0
    %v1293 = vsel %vm208, %v1290, 0
    %1295 = vmatprep.subr.mxu0 0.0
    %1296 = vmatpush1.xpose.msra.mxu0 %v1293
    %1297 = vmatprep.subr.mxu0 0.0
    %1298 = vmatpush1.xpose.msra.mxu0 0.0
    %1299 = vmatprep.subr.mxu0 0.0
    %1300 = vmatpush1.xpose.msra.mxu0 0.0
    %1301 = vmatprep.subr.mxu0 0.0
    %1302 = vmatpush1.xpose.msra.mxu0 0.0
    %1303 = vmatprep.subr.mxu0 0.0
    %1304 = vmatpush1.xpose.msra.mxu0 0.0
    %1305 = vmatprep.subr.mxu0 0.0
    %1306 = vmatpush1.xpose.msra.mxu0 0.0
    %1307 = vmatprep.subr.mxu0 0.0
    %1308 = vmatpush1.xpose.msra.mxu0 0.0
    %1309 = vmatprep.subr.mxu0 0.0
    %1310 = vmatpush1.xpose.msra.mxu0 0.0
    %1311 = vmatprep.subr.mxu0 0.0
    %1312 = vmatpush1.xpose.msra.mxu0 0.0
    %1313 = vmatprep.subr.mxu0 0.0
    %1314 = vmatpush1.xpose.msra.mxu0 0.0
    %1315 = vmatprep.subr.mxu0 0.0
    %1316 = vmatpush1.xpose.msra.mxu0 0.0
    %1317 = vmatprep.subr.mxu0 0.0
    %1318 = vmatpush1.xpose.msra.mxu0 0.0
    %1319 = vmatprep.subr.mxu0 0.0
    %1320 = vmatpush1.xpose.msra.mxu0 0.0
    %1321 = vmatprep.subr.mxu0 0.0
    %1322 = vmatpush1.xpose.msra.mxu0 0.0
    %1323 = vmatprep.subr.mxu0 0.0
    %1324 = vmatpush1.xpose.msra.mxu0 0.0
    %1325 = vmatprep.subr.mxu0 0.0
    %1326 = vmatpush1.xpose.msra.mxu0 0.0
    %1327 = vmatprep.subr.mxu0 0.0
    %1328 = vmatpush1.xpose.msra.mxu0 0.0
    %1329 = vmatprep.subr.mxu0 0.0
    %1330 = vmatpush1.xpose.msra.mxu0 0.0
    %1331 = vmatprep.subr.mxu0 0.0
    %1332 = vmatpush1.xpose.msra.mxu0 0.0
    %1333 = vmatprep.subr.mxu0 0.0
    %1334 = vmatpush1.xpose.msra.mxu0 0.0
    %1335 = vmatprep.subr.mxu0 0.0
    %1336 = vmatpush1.xpose.msra.mxu0 0.0
    %1337 = vmatprep.subr.mxu0 0.0
    %1338 = vmatpush1.xpose.msra.mxu0 0.0
    %1339 = vmatprep.subr.mxu0 0.0
    %1340 = vmatpush1.xpose.msra.mxu0 0.0
    %1341 = vmatprep.subr.mxu0 0.0
    %1342 = vmatpush1.xpose.msra.mxu0 0.0
    %1343 = vmatprep.subr.mxu0 0.0
    %1344 = vmatpush1.xpose.msra.mxu0 0.0
    %1345 = vmatprep.subr.mxu0 0.0
    %1346 = vmatpush1.xpose.msra.mxu0 0.0
    %1347 = vmatprep.subr.mxu0 0.0
    %1348 = vmatpush1.xpose.msra.mxu0 0.0
    %1349 = vmatprep.subr.mxu0 0.0
    %1350 = vmatpush1.xpose.msra.mxu0 0.0
    %1351 = vmatprep.subr.mxu0 0.0
    %1352 = vmatpush1.xpose.msra.mxu0 0.0
    %1353 = vmatprep.subr.mxu0 0.0
    %1354 = vmatpush1.xpose.msra.mxu0 0.0
    %1355 = vmatprep.subr.mxu0 0.0
    %1356 = vmatpush1.xpose.msra.mxu0 0.0
    %1357 = vmatprep.subr.mxu0 0.0
    %1358 = vmatpush1.xpose.msra.mxu0 0.0
    %1359 = vmatprep.mubr.f32.mxu0 0.0
    %1360 = vmatmul.mubr.f32.gmra.mrb[0].mxu0 %v1291
    %v1361 = vpop.f32.mrb[0].mxu0
    %v1362 = vadd.f32 0.0, %v1361
    %v1363 = vpop.f32.mrb[0].mxu0
    %1364 = vdwg.mxu0
    %v1365 = vmul.f32 %v1284, 0.35355338
    %v1366 = vmul.f32 %v1362, 0.35355338
    %v1367 = vadd.f32 %v1365, %v72
    %v1368 = vadd.f32 %v1366, %v73
    %v1369 = vsel %vm208, %v1367, -inf
    %1370 = vmax.xlane.f32.xlu0 %v1369
    %v1371 = vpop.xlane.xlu0 %1370
    %v1372 = vsel %vm208, %v1368, -inf
    %1373 = vmax.xlane.f32.xlu0 %v1372
    %v1374 = vpop.xlane.xlu0 %1373
    %v1375 = vsub.f32 %v1367, %v1371
    %v1376 = vsub.f32 %v1368, %v1374
    %v1377 = vmul.f32 %v1375, 1.442695
    %v1378 = vpow.pop %v1377
    %v1379 = vmul.f32 %v1376, 1.442695
    %v1380 = vpow.pop %v1379
    %v1381 = vsel %vm208, %v1378, 0.0
    %1382 = vadd.xlane.f32.xlu0 %v1381
    %v1383 = vpop.xlane.xlu0 %1382
    %v1384 = vsel %vm208, %v1380, 0.0
    %1385 = vadd.xlane.f32.xlu0 %v1384
    %v1386 = vpop.xlane.xlu0 %1385
    %v1387 = vrcp.pop %v1383
    %v1388 = vrcp.pop %v1386
    %v1389 = vmul.f32 %v1378, %v1387
    %v1390 = vmul.f32 %v1380, %v1388
    %1391 = vrot.lane.b32.xlu0 %v206, 72
    %v1392 = vpop.permute.xlu0 %1391
    %v1395 = vsel %vm208, %v1389, 0
    %1397 = vmatprep.subr.mxu0 0.0
    %1398 = vmatpush1.msra.mxu0 %v1392
    %1399 = vmatprep.subr.mxu0 0.0
    %1400 = vmatpush1.msra.mxu0 0.0
    %1401 = vmatprep.subr.mxu0 0.0
    %1402 = vmatpush1.msra.mxu0 0.0
    %1403 = vmatprep.subr.mxu0 0.0
    %1404 = vmatpush1.msra.mxu0 0.0
    %1405 = vmatprep.subr.mxu0 0.0
    %1406 = vmatpush1.msra.mxu0 0.0
    %1407 = vmatprep.subr.mxu0 0.0
    %1408 = vmatpush1.msra.mxu0 0.0
    %1409 = vmatprep.subr.mxu0 0.0
    %1410 = vmatpush1.msra.mxu0 0.0
    %1411 = vmatprep.subr.mxu0 0.0
    %1412 = vmatpush1.msra.mxu0 0.0
    %1413 = vmatprep.subr.mxu0 0.0
    %1414 = vmatpush1.msra.mxu0 0.0
    %1415 = vmatprep.subr.mxu0 0.0
    %1416 = vmatpush1.msra.mxu0 0.0
    %1417 = vmatprep.subr.mxu0 0.0
    %1418 = vmatpush1.msra.mxu0 0.0
    %1419 = vmatprep.subr.mxu0 0.0
    %1420 = vmatpush1.msra.mxu0 0.0
    %1421 = vmatprep.subr.mxu0 0.0
    %1422 = vmatpush1.msra.mxu0 0.0
    %1423 = vmatprep.subr.mxu0 0.0
    %1424 = vmatpush1.msra.mxu0 0.0
    %1425 = vmatprep.subr.mxu0 0.0
    %1426 = vmatpush1.msra.mxu0 0.0
    %1427 = vmatprep.subr.mxu0 0.0
    %1428 = vmatpush1.msra.mxu0 0.0
    %1429 = vmatprep.subr.mxu0 0.0
    %1430 = vmatpush1.msra.mxu0 0.0
    %1431 = vmatprep.subr.mxu0 0.0
    %1432 = vmatpush1.msra.mxu0 0.0
    %1433 = vmatprep.subr.mxu0 0.0
    %1434 = vmatpush1.msra.mxu0 0.0
    %1435 = vmatprep.subr.mxu0 0.0
    %1436 = vmatpush1.msra.mxu0 0.0
    %1437 = vmatprep.subr.mxu0 0.0
    %1438 = vmatpush1.msra.mxu0 0.0
    %1439 = vmatprep.subr.mxu0 0.0
    %1440 = vmatpush1.msra.mxu0 0.0
    %1441 = vmatprep.subr.mxu0 0.0
    %1442 = vmatpush1.msra.mxu0 0.0
    %1443 = vmatprep.subr.mxu0 0.0
    %1444 = vmatpush1.msra.mxu0 0.0
    %1445 = vmatprep.subr.mxu0 0.0
    %1446 = vmatpush1.msra.mxu0 0.0
    %1447 = vmatprep.subr.mxu0 0.0
    %1448 = vmatpush1.msra.mxu0 0.0
    %1449 = vmatprep.subr.mxu0 0.0
    %1450 = vmatpush1.msra.mxu0 0.0
    %1451 = vmatprep.subr.mxu0 0.0
    %1452 = vmatpush1.msra.mxu0 0.0
    %1453 = vmatprep.subr.mxu0 0.0
    %1454 = vmatpush1.msra.mxu0 0.0
    %1455 = vmatprep.subr.mxu0 0.0
    %1456 = vmatpush1.msra.mxu0 0.0
    %1457 = vmatprep.subr.mxu0 0.0
    %1458 = vmatpush1.msra.mxu0 0.0
    %1459 = vmatprep.subr.mxu0 0.0
    %1460 = vmatpush1.msra.mxu0 0.0
    %1461 = vmatprep.mubr.f32.mxu0 0.0
    %1462 = vmatmul.mubr.f32.gmra.mrb[0].mxu0 %v1395
    %v1463 = vpop.f32.mrb[0].mxu0
    %v1464 = vadd.f32 0.0, %v1463
    %v1465 = vpop.f32.mrb[0].mxu0
    %1466 = vdwg.mxu0
    %1467 = vrot.lane.b32.xlu0 %v207, 72
    %v1468 = vpop.permute.xlu0 %1467
    %v1471 = vsel %vm208, %v1390, 0
    %1473 = vmatprep.subr.mxu0 0.0
    %1474 = vmatpush1.msra.mxu0 %v1468
    %1475 = vmatprep.subr.mxu0 0.0
    %1476 = vmatpush1.msra.mxu0 0.0
    %1477 = vmatprep.subr.mxu0 0.0
    %1478 = vmatpush1.msra.mxu0 0.0
    %1479 = vmatprep.subr.mxu0 0.0
    %1480 = vmatpush1.msra.mxu0 0.0
    %1481 = vmatprep.subr.mxu0 0.0
    %1482 = vmatpush1.msra.mxu0 0.0
    %1483 = vmatprep.subr.mxu0 0.0
    %1484 = vmatpush1.msra.mxu0 0.0
    %1485 = vmatprep.subr.mxu0 0.0
    %1486 = vmatpush1.msra.mxu0 0.0
    %1487 = vmatprep.subr.mxu0 0.0
    %1488 = vmatpush1.msra.mxu0 0.0
    %1489 = vmatprep.subr.mxu0 0.0
    %1490 = vmatpush1.msra.mxu0 0.0
    %1491 = vmatprep.subr.mxu0 0.0
    %1492 = vmatpush1.msra.mxu0 0.0
    %1493 = vmatprep.subr.mxu0 0.0
    %1494 = vmatpush1.msra.mxu0 0.0
    %1495 = vmatprep.subr.mxu0 0.0
    %1496 = vmatpush1.msra.mxu0 0.0
    %1497 = vmatprep.subr.mxu0 0.0
    %1498 = vmatpush1.msra.mxu0 0.0
    %1499 = vmatprep.subr.mxu0 0.0
    %1500 = vmatpush1.msra.mxu0 0.0
    %1501 = vmatprep.subr.mxu0 0.0
    %1502 = vmatpush1.msra.mxu0 0.0
    %1503 = vmatprep.subr.mxu0 0.0
    %1504 = vmatpush1.msra.mxu0 0.0
    %1505 = vmatprep.subr.mxu0 0.0
    %1506 = vmatpush1.msra.mxu0 0.0
    %1507 = vmatprep.subr.mxu0 0.0
    %1508 = vmatpush1.msra.mxu0 0.0
    %1509 = vmatprep.subr.mxu0 0.0
    %1510 = vmatpush1.msra.mxu0 0.0
    %1511 = vmatprep.subr.mxu0 0.0
    %1512 = vmatpush1.msra.mxu0 0.0
    %1513 = vmatprep.subr.mxu0 0.0
    %1514 = vmatpush1.msra.mxu0 0.0
    %1515 = vmatprep.subr.mxu0 0.0
    %1516 = vmatpush1.msra.mxu0 0.0
    %1517 = vmatprep.subr.mxu0 0.0
    %1518 = vmatpush1.msra.mxu0 0.0
    %1519 = vmatprep.subr.mxu0 0.0
    %1520 = vmatpush1.msra.mxu0 0.0
    %1521 = vmatprep.subr.mxu0 0.0
    %1522 = vmatpush1.msra.mxu0 0.0
    %1523 = vmatprep.subr.mxu0 0.0
    %1524 = vmatpush1.msra.mxu0 0.0
    %1525 = vmatprep.subr.mxu0 0.0
    %1526 = vmatpush1.msra.mxu0 0.0
    %1527 = vmatprep.subr.mxu0 0.0
    %1528 = vmatpush1.msra.mxu0 0.0
    %1529 = vmatprep.subr.mxu0 0.0
    %1530 = vmatpush1.msra.mxu0 0.0
    %1531 = vmatprep.subr.mxu0 0.0
    %1532 = vmatpush1.msra.mxu0 0.0
    %1533 = vmatprep.subr.mxu0 0.0
    %1534 = vmatpush1.msra.mxu0 0.0
    %1535 = vmatprep.subr.mxu0 0.0
    %1536 = vmatpush1.msra.mxu0 0.0
    %1537 = vmatprep.mubr.f32.mxu0 0.0
    %1538 = vmatmul.mubr.f32.gmra.mrb[0].mxu0 %v1471
    %v1539 = vpop.f32.mrb[0].mxu0
    %v1540 = vadd.f32 0.0, %v1539
    %v1541 = vpop.f32.mrb[0].mxu0
    %1542 = vdwg.mxu0
    %1545 = vrot.lane.b32.xlu0 %v796, 8
    %v1546 = vpop.permute.xlu0 %1545
    %1547 = vrot.lane.b32.xlu0 %v872, 8
    %v1548 = vpop.permute.xlu0 %1547
    %1553 = vrot.lane.b32.xlu0 %v1130, 16
    %v1554 = vpop.permute.xlu0 %1553
    %1555 = vrot.lane.b32.xlu0 %v1206, 16
    %v1556 = vpop.permute.xlu0 %1555
    %1561 = vrot.lane.b32.xlu0 %v1464, 24
    %v1562 = vpop.permute.xlu0 %1561
    %1563 = vrot.lane.b32.xlu0 %v1540, 24
    %v1564 = vpop.permute.xlu0 %1563
    %v1567 = vsel %vm208, %v461, %v1546
    %v1568 = vsel %vm208, %v538, %v1548
    %vm1569 = vcmask 130048
    %v1570 = vsel %vm1569, %v1567, %v1554
    %v1571 = vsel %vm1569, %v1568, %v1556
    %vm1572 = vcmask 195584
    %v1573 = vsel %vm1572, %v1570, %v1562
    %v1574 = vsel %vm1572, %v1571, %v1564
    %v1575 = vpack.c.bf16 %v1574, %v1573
    %v1576 = vlaneseq
    %v1577 = vshrl.u32 %v1576, 7
    %v1578 = vsub.s32 3, %v1577
    %v1579 = vrot.slane %v78, %v1578
    %1580 = vrot.lane.b32.xlu0 %v93, 32
    %v1581 = vpop.permute.xlu0 %1580
    %1582 = vrot.lane.b32.xlu0 %v94, 32
    %v1583 = vpop.permute.xlu0 %1582
    %v1587 = vsel %vm97, %v1575, 0
    %1589 = vmatprep.subr.bf16.mxu0 0
    %1590 = vmatpush1.bf16.msra.mxu0 %v1581
    %1591 = vmatprep.subr.bf16.mxu0 0
    %1592 = vmatpush1.bf16.msra.mxu0 %v1583
    %1593 = vmatprep.subr.bf16.mxu0 0
    %1594 = vmatpush1.bf16.msra.mxu0 0
    %1595 = vmatprep.subr.bf16.mxu0 0
    %1596 = vmatpush1.bf16.msra.mxu0 0
    %1597 = vmatprep.subr.bf16.mxu0 0
    %1598 = vmatpush1.bf16.msra.mxu0 0
    %1599 = vmatprep.subr.bf16.mxu0 0
    %1600 = vmatpush1.bf16.msra.mxu0 0
    %1601 = vmatprep.subr.bf16.mxu0 0
    %1602 = vmatpush1.bf16.msra.mxu0 0
    %1603 = vmatprep.subr.bf16.mxu0 0
    %1604 = vmatpush1.bf16.msra.mxu0 0
    %1605 = vmatprep.subr.bf16.mxu0 0
    %1606 = vmatpush1.bf16.msra.mxu0 0
    %1607 = vmatprep.subr.bf16.mxu0 0
    %1608 = vmatpush1.bf16.msra.mxu0 0
    %1609 = vmatprep.subr.bf16.mxu0 0
    %1610 = vmatpush1.bf16.msra.mxu0 0
    %1611 = vmatprep.subr.bf16.mxu0 0
    %1612 = vmatpush1.bf16.msra.mxu0 0
    %1613 = vmatprep.subr.bf16.mxu0 0
    %1614 = vmatpush1.bf16.msra.mxu0 0
    %1615 = vmatprep.subr.bf16.mxu0 0
    %1616 = vmatpush1.bf16.msra.mxu0 0
    %1617 = vmatprep.subr.bf16.mxu0 0
    %1618 = vmatpush1.bf16.msra.mxu0 0
    %1619 = vmatprep.subr.bf16.mxu0 0
    %1620 = vmatpush1.bf16.msra.mxu0 0
    %1621 = vmatprep.mubr.bf16.mxu0 0
    %1622 = vmatmul.mubr.bf16.gmra.mrb[0].mxu0 %v1587
    %v1623 = vpop.f32.mrb[0].mxu0
    %v1624 = vadd.f32 %v1579, %v1623
    %v1625 = vpop.f32.mrb[0].mxu0
    %v1626 = vpop.f32.mrb[0].mxu0
    %v1627 = vadd.f32 %v1579, %v1626
    %v1628 = vpop.f32.mrb[0].mxu0
    %1629 = vdwg.mxu0
    %v1630 = vadd.f32 %v42, %v1624
    %v1631 = vadd.f32 %v43, %v1627
    %v1632 = vsel %vm97, %v1630, 0.0
    %1633 = vadd.xlane.f32.xlu0 %v1632
    %v1634 = vpop.xlane.xlu0 %1633
    %v1635 = vsel %vm97, %v1631, 0.0
    %1636 = vadd.xlane.f32.xlu0 %v1635
    %v1637 = vpop.xlane.xlu0 %1636
    %v1638 = vrcp.pop 32.0
    %v1639 = vmul.f32 %v1634, %v1638
    %v1640 = vmul.f32 %v1637, %v1638
    %v1641 = vsub.f32 %v1630, %v1639
    %v1642 = vsub.f32 %v1631, %v1640
    %v1643 = vmul.f32 %v1641, %v1641
    %v1644 = vmul.f32 %v1642, %v1642
    %v1645 = vsel %vm97, %v1643, 0.0
    %1646 = vadd.xlane.f32.xlu0 %v1645
    %v1647 = vpop.xlane.xlu0 %1646
    %v1648 = vsel %vm97, %v1644, 0.0
    %1649 = vadd.xlane.f32.xlu0 %v1648
    %v1650 = vpop.xlane.xlu0 %1649
    %v1651 = vmul.f32 %v1647, %v1638
    %v1652 = vmul.f32 %v1650, %v1638
    %v1653 = vadd.f32 %v1651, 1e-05
    %v1654 = vadd.f32 %v1652, 1e-05
    %v1655 = vrsqrt.pop %v1653
    %v1656 = vrsqrt.pop %v1654
    %v1657 = vmul.f32 %v1641, %v1655
    %v1658 = vmul.f32 %v1642, %v1656
    %v1659 = vlaneseq
    %v1660 = vshrl.u32 %v1659, 7
    %v1661 = vsub.s32 4, %v1660
    %v1662 = vrot.slane %v78, %v1661
    %v1663 = vmul.f32 %v1657, %v1662
    %v1664 = vmul.f32 %v1658, %v1662
    %v1665 = vlaneseq
    %v1666 = vshrl.u32 %v1665, 7
    %v1667 = vsub.s32 5, %v1666
    %v1668 = vrot.slane %v78, %v1667
    %v1669 = vadd.f32 %v1663, %v1668
    %v1670 = vadd.f32 %v1664, %v1668
    %v1671 = vpack.c.bf16 %v1670, %v1669
    %v1672 = vlaneseq
    %v1673 = vshrl.u32 %v1672, 7
    %v1674 = vsub.s32 6, %v1673
    %v1675 = vrot.slane %v78, %v1674
    %v1676 = vunpack.c.h.b16 %v74
    %v1677 = vunpack.c.h.b16 %v75
    %v1678 = vunpack.c.h.b16 %v76
    %v1679 = vunpack.c.h.b16 %v77
    %v1680 = vpack.c.b16 %v1677, %v1676
    %v1681 = vpack.c.b16 %v1679, %v1678
    %v1685 = vsel %vm97, %v1671, 0
    %1687 = vmatprep.subr.bf16.mxu0 0
    %1688 = vmatpush1.bf16.msra.mxu0 %v1680
    %1689 = vmatprep.subr.bf16.mxu0 0
    %1690 = vmatpush1.bf16.msra.mxu0 %v1681
    %1691 = vmatprep.subr.bf16.mxu0 0
    %1692 = vmatpush1.bf16.msra.mxu0 0
    %1693 = vmatprep.subr.bf16.mxu0 0
    %1694 = vmatpush1.bf16.msra.mxu0 0
    %1695 = vmatprep.subr.bf16.mxu0 0
    %1696 = vmatpush1.bf16.msra.mxu0 0
    %1697 = vmatprep.subr.bf16.mxu0 0
    %1698 = vmatpush1.bf16.msra.mxu0 0
    %1699 = vmatprep.subr.bf16.mxu0 0
    %1700 = vmatpush1.bf16.msra.mxu0 0
    %1701 = vmatprep.subr.bf16.mxu0 0
    %1702 = vmatpush1.bf16.msra.mxu0 0
    %1703 = vmatprep.subr.bf16.mxu0 0
    %1704 = vmatpush1.bf16.msra.mxu0 0
    %1705 = vmatprep.subr.bf16.mxu0 0
    %1706 = vmatpush1.bf16.msra.mxu0 0
    %1707 = vmatprep.subr.bf16.mxu0 0
    %1708 = vmatpush1.bf16.msra.mxu0 0
    %1709 = vmatprep.subr.bf16.mxu0 0
    %1710 = vmatpush1.bf16.msra.mxu0 0
    %1711 = vmatprep.subr.bf16.mxu0 0
    %1712 = vmatpush1.bf16.msra.mxu0 0
    %1713 = vmatprep.subr.bf16.mxu0 0
    %1714 = vmatpush1.bf16.msra.mxu0 0
    %1715 = vmatprep.subr.bf16.mxu0 0
    %1716 = vmatpush1.bf16.msra.mxu0 0
    %1717 = vmatprep.subr.bf16.mxu0 0
    %1718 = vmatpush1.bf16.msra.mxu0 0
    %1719 = vmatprep.mubr.bf16.mxu0 0
    %1720 = vmatmul.mubr.bf16.gmra.mrb[0].mxu0 %v1685
    %v1721 = vpop.f32.mrb[0].mxu0
    %v1722 = vadd.f32 %v1675, %v1721
    %v1723 = vpop.f32.mrb[0].mxu0
    %v1724 = vpop.f32.mrb[0].mxu0
    %v1725 = vadd.f32 %v1675, %v1724
    %v1726 = vpop.f32.mrb[0].mxu0
    %1727 = vdwg.mxu0
    %v1728 = vmax.f32 %v1722, 0.0
    %v1729 = vmax.f32 %v1725, 0.0
    %v1730 = vpack.c.bf16 %v1729, %v1728
    %v1731 = vlaneseq
    %v1732 = vshrl.u32 %v1731, 7
    %v1733 = vsub.s32 7, %v1732
    %v1734 = vrot.slane %v78, %v1733
    %1735 = vrot.lane.b32.xlu0 %v1680, 96
    %v1736 = vpop.permute.xlu0 %1735
    %1737 = vrot.lane.b32.xlu0 %v1681, 96
    %v1738 = vpop.permute.xlu0 %1737
    %v1742 = vsel %vm97, %v1730, 0
    %1744 = vmatprep.subr.bf16.mxu0 0
    %1745 = vmatpush1.bf16.msra.mxu0 %v1736
    %1746 = vmatprep.subr.bf16.mxu0 0
    %1747 = vmatpush1.bf16.msra.mxu0 %v1738
    %1748 = vmatprep.subr.bf16.mxu0 0
    %1749 = vmatpush1.bf16.msra.mxu0 0
    %1750 = vmatprep.subr.bf16.mxu0 0
    %1751 = vmatpush1.bf16.msra.mxu0 0
    %1752 = vmatprep.subr.bf16.mxu0 0
    %1753 = vmatpush1.bf16.msra.mxu0 0
    %1754 = vmatprep.subr.bf16.mxu0 0
    %1755 = vmatpush1.bf16.msra.mxu0 0
    %1756 = vmatprep.subr.bf16.mxu0 0
    %1757 = vmatpush1.bf16.msra.mxu0 0
    %1758 = vmatprep.subr.bf16.mxu0 0
    %1759 = vmatpush1.bf16.msra.mxu0 0
    %1760 = vmatprep.subr.bf16.mxu0 0
    %1761 = vmatpush1.bf16.msra.mxu0 0
    %1762 = vmatprep.subr.bf16.mxu0 0
    %1763 = vmatpush1.bf16.msra.mxu0 0
    %1764 = vmatprep.subr.bf16.mxu0 0
    %1765 = vmatpush1.bf16.msra.mxu0 0
    %1766 = vmatprep.subr.bf16.mxu0 0
    %1767 = vmatpush1.bf16.msra.mxu0 0
    %1768 = vmatprep.subr.bf16.mxu0 0
    %1769 = vmatpush1.bf16.msra.mxu0 0
    %1770 = vmatprep.subr.bf16.mxu0 0
    %1771 = vmatpush1.bf16.msra.mxu0 0
    %1772 = vmatprep.subr.bf16.mxu0 0
    %1773 = vmatpush1.bf16.msra.mxu0 0
    %1774 = vmatprep.subr.bf16.mxu0 0
    %1775 = vmatpush1.bf16.msra.mxu0 0
    %1776 = vmatprep.mubr.bf16.mxu0 0
    %1777 = vmatmul.mubr.bf16.gmra.mrb[0].mxu0 %v1742
    %v1778 = vpop.f32.mrb[0].mxu0
    %v1779 = vadd.f32 %v1734, %v1778
    %v1780 = vpop.f32.mrb[0].mxu0
    %v1781 = vpop.f32.mrb[0].mxu0
    %v1782 = vadd.f32 %v1734, %v1781
    %v1783 = vpop.f32.mrb[0].mxu0
    %1784 = vdwg.mxu0
    %v1785 = vadd.f32 %v1669, %v1779
    %v1786 = vadd.f32 %v1670, %v1782
    %v1787 = vsel %vm97, %v1785, 0.0
    %1788 = vadd.xlane.f32.xlu0 %v1787
    %v1789 = vpop.xlane.xlu0 %1788
    %v1790 = vsel %vm97, %v1786, 0.0
    %1791 = vadd.xlane.f32.xlu0 %v1790
    %v1792 = vpop.xlane.xlu0 %1791
    %v1793 = vmul.f32 %v1789, %v1638
    %v1794 = vmul.f32 %v1792, %v1638
    %v1795 = vsub.f32 %v1785, %v1793
    %v1796 = vsub.f32 %v1786, %v1794
    %v1797 = vmul.f32 %v1795, %v1795
    %v1798 = vmul.f32 %v1796, %v1796
    %v1799 = vsel %vm97, %v1797, 0.0
    %1800 = vadd.xlane.f32.xlu0 %v1799
    %v1801 = vpop.xlane.xlu0 %1800
    %v1802 = vsel %vm97, %v1798, 0.0
    %1803 = vadd.xlane.f32.xlu0 %v1802
    %v1804 = vpop.xlane.xlu0 %1803
    %v1805 = vmul.f32 %v1801, %v1638
    %v1806 = vmul.f32 %v1804, %v1638
    %v1807 = vadd.f32 %v1805, 1e-05
    %v1808 = vadd.f32 %v1806, 1e-05
    %v1809 = vrsqrt.pop %v1807
    %v1810 = vrsqrt.pop %v1808
    %v1811 = vmul.f32 %v1795, %v1809
    %v1812 = vmul.f32 %v1796, %v1810
    %v1813 = vlaneseq
    %v1814 = vshrl.u32 %v1813, 7
    %v1815 = vsub.s32 0, %v1814
    %v1816 = vrot.slane %v79, %v1815
    %v1817 = vmul.f32 %v1811, %v1816
    %v1818 = vmul.f32 %v1812, %v1816
    %v1819 = vlaneseq
    %v1820 = vshrl.u32 %v1819, 7
    %v1821 = vsub.s32 1, %v1820
    %v1822 = vrot.slane %v79, %v1821
    %v1823 = vadd.f32 %v1817, %v1822
    %v1824 = vadd.f32 %v1818, %v1822
    %s1825 = scalar_lea.vmem [#allocation2], 32
    %v1826 = vld [vmem:[%s1825] sm:$0xff]
    %v1827 = vld [vmem:[%s1825 + $0x8] sm:$0xff]
    %v1828 = vld [vmem:[%s1825 + $0x10] sm:$0xff]
    %v1829 = vld [vmem:[%s1825 + $0x18] sm:$0xff]
    %s1830 = scalar_lea.vmem %s4, 16
    %v1831 = vld [vmem:[%s1830] sm:$0xff]
    %v1832 = vld [vmem:[%s1830 + $0x8] sm:$0x3]
    %v1833 = vpack.c.bf16 %v1824, %v1823
    %v1834 = vlaneseq
    %v1835 = vshrl.u32 %v1834, 7
    %v1836 = vsub.s32 0, %v1835
    %v1837 = vrot.slane %v1831, %v1836
    %v1842 = vunpack.c.l.b16 %v1826
    %v1843 = vunpack.c.l.b16 %v1827
    %v1844 = vunpack.c.l.b16 %v1828
    %v1845 = vunpack.c.l.b16 %v1829
    %v1846 = vpack.c.b16 %v1843, %v1842
    %v1847 = vpack.c.b16 %v1845, %v1844
    %1850 = vmatprep.subr.bf16.mxu0 0
    %1851 = vmatpush1.bf16.msra.mxu0 %v1846
    %1852 = vmatprep.subr.bf16.mxu0 0
    %1853 = vmatpush1.bf16.msra.mxu0 %v1847
    %1854 = vmatprep.subr.bf16.mxu0 0
    %1855 = vmatpush1.bf16.msra.mxu0 0
    %1856 = vmatprep.subr.bf16.mxu0 0
    %1857 = vmatpush1.bf16.msra.mxu0 0
    %1858 = vmatprep.subr.bf16.mxu0 0
    %1859 = vmatpush1.bf16.msra.mxu0 0
    %1860 = vmatprep.subr.bf16.mxu0 0
    %1861 = vmatpush1.bf16.msra.mxu0 0
    %1862 = vmatprep.subr.bf16.mxu0 0
    %1863 = vmatpush1.bf16.msra.mxu0 0
    %1864 = vmatprep.subr.bf16.mxu0 0
    %1865 = vmatpush1.bf16.msra.mxu0 0
    %1866 = vmatprep.subr.bf16.mxu0 0
    %1867 = vmatpush1.bf16.msra.mxu0 0
    %1868 = vmatprep.subr.bf16.mxu0 0
    %1869 = vmatpush1.bf16.msra.mxu0 0
    %1870 = vmatprep.subr.bf16.mxu0 0
    %1871 = vmatpush1.bf16.msra.mxu0 0
    %1872 = vmatprep.subr.bf16.mxu0 0
    %1873 = vmatpush1.bf16.msra.mxu0 0
    %1874 = vmatprep.subr.bf16.mxu0 0
    %1875 = vmatpush1.bf16.msra.mxu0 0
    %1876 = vmatprep.subr.bf16.mxu0 0
    %1877 = vmatpush1.bf16.msra.mxu0 0
    %1878 = vmatprep.subr.bf16.mxu0 0
    %1879 = vmatpush1.bf16.msra.mxu0 0
    %1880 = vmatprep.subr.bf16.mxu0 0
    %1881 = vmatpush1.bf16.msra.mxu0 0
    %1882 = vmatprep.mubr.bf16.mxu0 0
    %1883 = vmatmul.mubr.bf16.gmra.mrb[0].mxu0 %v99
    %v1884 = vpop.f32.mrb[0].mxu0
    %v1885 = vadd.f32 %v1837, %v1884
    %v1886 = vpop.f32.mrb[0].mxu0
    %v1887 = vpop.f32.mrb[0].mxu0
    %v1888 = vadd.f32 %v1837, %v1887
    %v1889 = vpop.f32.mrb[0].mxu0
    %1890 = vdwg.mxu0
    %1891 = vrot.lane.b32.xlu0 %v1846, 96
    %v1892 = vpop.permute.xlu0 %1891
    %1893 = vrot.lane.b32.xlu0 %v1847, 96
    %v1894 = vpop.permute.xlu0 %1893
    %v1898 = vsel %vm97, %v1833, 0
    %1900 = vmatprep.subr.bf16.mxu0 0
    %1901 = vmatpush1.bf16.msra.mxu0 %v1892
    %1902 = vmatprep.subr.bf16.mxu0 0
    %1903 = vmatpush1.bf16.msra.mxu0 %v1894
    %1904 = vmatprep.subr.bf16.mxu0 0
    %1905 = vmatpush1.bf16.msra.mxu0 0
    %1906 = vmatprep.subr.bf16.mxu0 0
    %1907 = vmatpush1.bf16.msra.mxu0 0
    %1908 = vmatprep.subr.bf16.mxu0 0
    %1909 = vmatpush1.bf16.msra.mxu0 0
    %1910 = vmatprep.subr.bf16.mxu0 0
    %1911 = vmatpush1.bf16.msra.mxu0 0
    %1912 = vmatprep.subr.bf16.mxu0 0
    %1913 = vmatpush1.bf16.msra.mxu0 0
    %1914 = vmatprep.subr.bf16.mxu0 0
    %1915 = vmatpush1.bf16.msra.mxu0 0
    %1916 = vmatprep.subr.bf16.mxu0 0
    %1917 = vmatpush1.bf16.msra.mxu0 0
    %1918 = vmatprep.subr.bf16.mxu0 0
    %1919 = vmatpush1.bf16.msra.mxu0 0
    %1920 = vmatprep.subr.bf16.mxu0 0
    %1921 = vmatpush1.bf16.msra.mxu0 0
    %1922 = vmatprep.subr.bf16.mxu0 0
    %1923 = vmatpush1.bf16.msra.mxu0 0
    %1924 = vmatprep.subr.bf16.mxu0 0
    %1925 = vmatpush1.bf16.msra.mxu0 0
    %1926 = vmatprep.subr.bf16.mxu0 0
    %1927 = vmatpush1.bf16.msra.mxu0 0
    %1928 = vmatprep.subr.bf16.mxu0 0
    %1929 = vmatpush1.bf16.msra.mxu0 0
    %1930 = vmatprep.subr.bf16.mxu0 0
    %1931 = vmatpush1.bf16.msra.mxu0 0
    %1932 = vmatprep.mubr.bf16.mxu0 0
    %1933 = vmatmul.mubr.bf16.gmra.mrb[0].mxu0 %v1898
    %v1934 = vpop.f32.mrb[0].mxu0
    %v1935 = vadd.f32 0.0, %v1934
    %v1936 = vpop.f32.mrb[0].mxu0
    %v1937 = vpop.f32.mrb[0].mxu0
    %v1938 = vadd.f32 0.0, %v1937
    %v1939 = vpop.f32.mrb[0].mxu0
    %1940 = vdwg.mxu0
    %v1941 = vlaneseq
    %v1942 = vshrl.u32 %v1941, 7
    %v1943 = vsub.s32 1, %v1942
    %v1944 = vrot.slane %v1831, %v1943
    %v1945 = vadd.f32 %v1935, %v1944
    %v1946 = vadd.f32 %v1938, %v1944
    %v1947 = vlaneseq
    %v1948 = vshrl.u32 %v1947, 7
    %v1949 = vsub.s32 2, %v1948
    %v1950 = vrot.slane %v1831, %v1949
    %1952 = vrot.lane.b32.xlu0 %v1950, 32
    %v1953 = vpop.permute.xlu0 %1952
    %v1955 = vadd.f32 %v1935, %v1953
    %v1956 = vadd.f32 %v1938, %v1953
    %v1958 = vsel %vm208, %v1885, 0
    %v1961 = vsel %vm208, %v1945, 0
    %1963 = vmatprep.subr.mxu0 0.0
    %1964 = vmatpush1.xpose.msra.mxu0 %v1961
    %1965 = vmatprep.subr.mxu0 0.0
    %1966 = vmatpush1.xpose.msra.mxu0 0.0
    %1967 = vmatprep.subr.mxu0 0.0
    %1968 = vmatpush1.xpose.msra.mxu0 0.0
    %1969 = vmatprep.subr.mxu0 0.0
    %1970 = vmatpush1.xpose.msra.mxu0 0.0
    %1971 = vmatprep.subr.mxu0 0.0
    %1972 = vmatpush1.xpose.msra.mxu0 0.0
    %1973 = vmatprep.subr.mxu0 0.0
    %1974 = vmatpush1.xpose.msra.mxu0 0.0
    %1975 = vmatprep.subr.mxu0 0.0
    %1976 = vmatpush1.xpose.msra.mxu0 0.0
    %1977 = vmatprep.subr.mxu0 0.0
    %1978 = vmatpush1.xpose.msra.mxu0 0.0
    %1979 = vmatprep.subr.mxu0 0.0
    %1980 = vmatpush1.xpose.msra.mxu0 0.0
    %1981 = vmatprep.subr.mxu0 0.0
    %1982 = vmatpush1.xpose.msra.mxu0 0.0
    %1983 = vmatprep.subr.mxu0 0.0
    %1984 = vmatpush1.xpose.msra.mxu0 0.0
    %1985 = vmatprep.subr.mxu0 0.0
    %1986 = vmatpush1.xpose.msra.mxu0 0.0
    %1987 = vmatprep.subr.mxu0 0.0
    %1988 = vmatpush1.xpose.msra.mxu0 0.0
    %1989 = vmatprep.subr.mxu0 0.0
    %1990 = vmatpush1.xpose.msra.mxu0 0.0
    %1991 = vmatprep.subr.mxu0 0.0
    %1992 = vmatpush1.xpose.msra.mxu0 0.0
    %1993 = vmatprep.subr.mxu0 0.0
    %1994 = vmatpush1.xpose.msra.mxu0 0.0
    %1995 = vmatprep.subr.mxu0 0.0
    %1996 = vmatpush1.xpose.msra.mxu0 0.0
    %1997 = vmatprep.subr.mxu0 0.0
    %1998 = vmatpush1.xpose.msra.mxu0 0.0
    %1999 = vmatprep.subr.mxu0 0.0
    %2000 = vmatpush1.xpose.msra.mxu0 0.0
    %2001 = vmatprep.subr.mxu0 0.0
    %2002 = vmatpush1.xpose.msra.mxu0 0.0
    %2003 = vmatprep.subr.mxu0 0.0
    %2004 = vmatpush1.xpose.msra.mxu0 0.0
    %2005 = vmatprep.subr.mxu0 0.0
    %2006 = vmatpush1.xpose.msra.mxu0 0.0
    %2007 = vmatprep.subr.mxu0 0.0
    %2008 = vmatpush1.xpose.msra.mxu0 0.0
    %2009 = vmatprep.subr.mxu0 0.0
    %2010 = vmatpush1.xpose.msra.mxu0 0.0
    %2011 = vmatprep.subr.mxu0 0.0
    %2012 = vmatpush1.xpose.msra.mxu0 0.0
    %2013 = vmatprep.subr.mxu0 0.0
    %2014 = vmatpush1.xpose.msra.mxu0 0.0
    %2015 = vmatprep.subr.mxu0 0.0
    %2016 = vmatpush1.xpose.msra.mxu0 0.0
    %2017 = vmatprep.subr.mxu0 0.0
    %2018 = vmatpush1.xpose.msra.mxu0 0.0
    %2019 = vmatprep.subr.mxu0 0.0
    %2020 = vmatpush1.xpose.msra.mxu0 0.0
    %2021 = vmatprep.subr.mxu0 0.0
    %2022 = vmatpush1.xpose.msra.mxu0 0.0
    %2023 = vmatprep.subr.mxu0 0.0
    %2024 = vmatpush1.xpose.msra.mxu0 0.0
    %2025 = vmatprep.subr.mxu0 0.0
    %2026 = vmatpush1.xpose.msra.mxu0 0.0
    %2027 = vmatprep.mubr.f32.mxu0 0.0
    %2028 = vmatmul.mubr.f32.gmra.mrb[0].mxu0 %v1958
    %v2029 = vpop.f32.mrb[0].mxu0
    %v2030 = vadd.f32 0.0, %v2029
    %v2031 = vpop.f32.mrb[0].mxu0
    %2032 = vdwg.mxu0
    %v2034 = vsel %vm208, %v1888, 0
    %v2037 = vsel %vm208, %v1946, 0
    %2039 = vmatprep.subr.mxu0 0.0
    %2040 = vmatpush1.xpose.msra.mxu0 %v2037
    %2041 = vmatprep.subr.mxu0 0.0
    %2042 = vmatpush1.xpose.msra.mxu0 0.0
    %2043 = vmatprep.subr.mxu0 0.0
    %2044 = vmatpush1.xpose.msra.mxu0 0.0
    %2045 = vmatprep.subr.mxu0 0.0
    %2046 = vmatpush1.xpose.msra.mxu0 0.0
    %2047 = vmatprep.subr.mxu0 0.0
    %2048 = vmatpush1.xpose.msra.mxu0 0.0
    %2049 = vmatprep.subr.mxu0 0.0
    %2050 = vmatpush1.xpose.msra.mxu0 0.0
    %2051 = vmatprep.subr.mxu0 0.0
    %2052 = vmatpush1.xpose.msra.mxu0 0.0
    %2053 = vmatprep.subr.mxu0 0.0
    %2054 = vmatpush1.xpose.msra.mxu0 0.0
    %2055 = vmatprep.subr.mxu0 0.0
    %2056 = vmatpush1.xpose.msra.mxu0 0.0
    %2057 = vmatprep.subr.mxu0 0.0
    %2058 = vmatpush1.xpose.msra.mxu0 0.0
    %2059 = vmatprep.subr.mxu0 0.0
    %2060 = vmatpush1.xpose.msra.mxu0 0.0
    %2061 = vmatprep.subr.mxu0 0.0
    %2062 = vmatpush1.xpose.msra.mxu0 0.0
    %2063 = vmatprep.subr.mxu0 0.0
    %2064 = vmatpush1.xpose.msra.mxu0 0.0
    %2065 = vmatprep.subr.mxu0 0.0
    %2066 = vmatpush1.xpose.msra.mxu0 0.0
    %2067 = vmatprep.subr.mxu0 0.0
    %2068 = vmatpush1.xpose.msra.mxu0 0.0
    %2069 = vmatprep.subr.mxu0 0.0
    %2070 = vmatpush1.xpose.msra.mxu0 0.0
    %2071 = vmatprep.subr.mxu0 0.0
    %2072 = vmatpush1.xpose.msra.mxu0 0.0
    %2073 = vmatprep.subr.mxu0 0.0
    %2074 = vmatpush1.xpose.msra.mxu0 0.0
    %2075 = vmatprep.subr.mxu0 0.0
    %2076 = vmatpush1.xpose.msra.mxu0 0.0
    %2077 = vmatprep.subr.mxu0 0.0
    %2078 = vmatpush1.xpose.msra.mxu0 0.0
    %2079 = vmatprep.subr.mxu0 0.0
    %2080 = vmatpush1.xpose.msra.mxu0 0.0
    %2081 = vmatprep.subr.mxu0 0.0
    %2082 = vmatpush1.xpose.msra.mxu0 0.0
    %2083 = vmatprep.subr.mxu0 0.0
    %2084 = vmatpush1.xpose.msra.mxu0 0.0
    %2085 = vmatprep.subr.mxu0 0.0
    %2086 = vmatpush1.xpose.msra.mxu0 0.0
    %2087 = vmatprep.subr.mxu0 0.0
    %2088 = vmatpush1.xpose.msra.mxu0 0.0
    %2089 = vmatprep.subr.mxu0 0.0
    %2090 = vmatpush1.xpose.msra.mxu0 0.0
    %2091 = vmatprep.subr.mxu0 0.0
    %2092 = vmatpush1.xpose.msra.mxu0 0.0
    %2093 = vmatprep.subr.mxu0 0.0
    %2094 = vmatpush1.xpose.msra.mxu0 0.0
    %2095 = vmatprep.subr.mxu0 0.0
    %2096 = vmatpush1.xpose.msra.mxu0 0.0
    %2097 = vmatprep.subr.mxu0 0.0
    %2098 = vmatpush1.xpose.msra.mxu0 0.0
    %2099 = vmatprep.subr.mxu0 0.0
    %2100 = vmatpush1.xpose.msra.mxu0 0.0
    %2101 = vmatprep.subr.mxu0 0.0
    %2102 = vmatpush1.xpose.msra.mxu0 0.0
    %2103 = vmatprep.mubr.f32.mxu0 0.0
    %2104 = vmatmul.mubr.f32.gmra.mrb[0].mxu0 %v2034
    %v2105 = vpop.f32.mrb[0].mxu0
    %v2106 = vadd.f32 0.0, %v2105
    %v2107 = vpop.f32.mrb[0].mxu0
    %2108 = vdwg.mxu0
    %v2109 = vmul.f32 %v2030, 0.35355338
    %v2110 = vmul.f32 %v2106, 0.35355338
    %v2111 = vadd.f32 %v2109, %v72
    %v2112 = vadd.f32 %v2110, %v73
    %v2113 = vsel %vm208, %v2111, -inf
    %2114 = vmax.xlane.f32.xlu0 %v2113
    %v2115 = vpop.xlane.xlu0 %2114
    %v2116 = vsel %vm208, %v2112, -inf
    %2117 = vmax.xlane.f32.xlu0 %v2116
    %v2118 = vpop.xlane.xlu0 %2117
    %v2119 = vsub.f32 %v2111, %v2115
    %v2120 = vsub.f32 %v2112, %v2118
    %v2121 = vmul.f32 %v2119, 1.442695
    %v2122 = vpow.pop %v2121
    %v2123 = vmul.f32 %v2120, 1.442695
    %v2124 = vpow.pop %v2123
    %v2125 = vsel %vm208, %v2122, 0.0
    %2126 = vadd.xlane.f32.xlu0 %v2125
    %v2127 = vpop.xlane.xlu0 %2126
    %v2128 = vsel %vm208, %v2124, 0.0
    %2129 = vadd.xlane.f32.xlu0 %v2128
    %v2130 = vpop.xlane.xlu0 %2129
    %v2131 = vrcp.pop %v2127
    %v2132 = vrcp.pop %v2130
    %v2133 = vmul.f32 %v2122, %v2131
    %v2134 = vmul.f32 %v2124, %v2132
    %2136 = vrot.lane.b32.xlu0 %v1955, 96
    %v2137 = vpop.permute.xlu0 %2136
    %v2140 = vsel %vm208, %v2133, 0
    %2142 = vmatprep.subr.mxu0 0.0
    %2143 = vmatpush1.msra.mxu0 %v2137
    %2144 = vmatprep.subr.mxu0 0.0
    %2145 = vmatpush1.msra.mxu0 0.0
    %2146 = vmatprep.subr.mxu0 0.0
    %2147 = vmatpush1.msra.mxu0 0.0
    %2148 = vmatprep.subr.mxu0 0.0
    %2149 = vmatpush1.msra.mxu0 0.0
    %2150 = vmatprep.subr.mxu0 0.0
    %2151 = vmatpush1.msra.mxu0 0.0
    %2152 = vmatprep.subr.mxu0 0.0
    %2153 = vmatpush1.msra.mxu0 0.0
    %2154 = vmatprep.subr.mxu0 0.0
    %2155 = vmatpush1.msra.mxu0 0.0
    %2156 = vmatprep.subr.mxu0 0.0
    %2157 = vmatpush1.msra.mxu0 0.0
    %2158 = vmatprep.subr.mxu0 0.0
    %2159 = vmatpush1.msra.mxu0 0.0
    %2160 = vmatprep.subr.mxu0 0.0
    %2161 = vmatpush1.msra.mxu0 0.0
    %2162 = vmatprep.subr.mxu0 0.0
    %2163 = vmatpush1.msra.mxu0 0.0
    %2164 = vmatprep.subr.mxu0 0.0
    %2165 = vmatpush1.msra.mxu0 0.0
    %2166 = vmatprep.subr.mxu0 0.0
    %2167 = vmatpush1.msra.mxu0 0.0
    %2168 = vmatprep.subr.mxu0 0.0
    %2169 = vmatpush1.msra.mxu0 0.0
    %2170 = vmatprep.subr.mxu0 0.0
    %2171 = vmatpush1.msra.mxu0 0.0
    %2172 = vmatprep.subr.mxu0 0.0
    %2173 = vmatpush1.msra.mxu0 0.0
    %2174 = vmatprep.subr.mxu0 0.0
    %2175 = vmatpush1.msra.mxu0 0.0
    %2176 = vmatprep.subr.mxu0 0.0
    %2177 = vmatpush1.msra.mxu0 0.0
    %2178 = vmatprep.subr.mxu0 0.0
    %2179 = vmatpush1.msra.mxu0 0.0
    %2180 = vmatprep.subr.mxu0 0.0
    %2181 = vmatpush1.msra.mxu0 0.0
    %2182 = vmatprep.subr.mxu0 0.0
    %2183 = vmatpush1.msra.mxu0 0.0
    %2184 = vmatprep.subr.mxu0 0.0
    %2185 = vmatpush1.msra.mxu0 0.0
    %2186 = vmatprep.subr.mxu0 0.0
    %2187 = vmatpush1.msra.mxu0 0.0
    %2188 = vmatprep.subr.mxu0 0.0
    %2189 = vmatpush1.msra.mxu0 0.0
    %2190 = vmatprep.subr.mxu0 0.0
    %2191 = vmatpush1.msra.mxu0 0.0
    %2192 = vmatprep.subr.mxu0 0.0
    %2193 = vmatpush1.msra.mxu0 0.0
    %2194 = vmatprep.subr.mxu0 0.0
    %2195 = vmatpush1.msra.mxu0 0.0
    %2196 = vmatprep.subr.mxu0 0.0
    %2197 = vmatpush1.msra.mxu0 0.0
    %2198 = vmatprep.subr.mxu0 0.0
    %2199 = vmatpush1.msra.mxu0 0.0
    %2200 = vmatprep.subr.mxu0 0.0
    %2201 = vmatpush1.msra.mxu0 0.0
    %2202 = vmatprep.subr.mxu0 0.0
    %2203 = vmatpush1.msra.mxu0 0.0
    %2204 = vmatprep.subr.mxu0 0.0
    %2205 = vmatpush1.msra.mxu0 0.0
    %2206 = vmatprep.mubr.f32.mxu0 0.0
    %2207 = vmatmul.mubr.f32.gmra.mrb[0].mxu0 %v2140
    %v2208 = vpop.f32.mrb[0].mxu0
    %v2209 = vadd.f32 0.0, %v2208
    %v2210 = vpop.f32.mrb[0].mxu0
    %2211 = vdwg.mxu0
    %2213 = vrot.lane.b32.xlu0 %v1956, 96
    %v2214 = vpop.permute.xlu0 %2213
    %v2217 = vsel %vm208, %v2134, 0
    %2219 = vmatprep.subr.mxu0 0.0
    %2220 = vmatpush1.msra.mxu0 %v2214
    %2221 = vmatprep.subr.mxu0 0.0
    %2222 = vmatpush1.msra.mxu0 0.0
    %2223 = vmatprep.subr.mxu0 0.0
    %2224 = vmatpush1.msra.mxu0 0.0
    %2225 = vmatprep.subr.mxu0 0.0
    %2226 = vmatpush1.msra.mxu0 0.0
    %2227 = vmatprep.subr.mxu0 0.0
    %2228 = vmatpush1.msra.mxu0 0.0
    %2229 = vmatprep.subr.mxu0 0.0
    %2230 = vmatpush1.msra.mxu0 0.0
    %2231 = vmatprep.subr.mxu0 0.0
    %2232 = vmatpush1.msra.mxu0 0.0
    %2233 = vmatprep.subr.mxu0 0.0
    %2234 = vmatpush1.msra.mxu0 0.0
    %2235 = vmatprep.subr.mxu0 0.0
    %2236 = vmatpush1.msra.mxu0 0.0
    %2237 = vmatprep.subr.mxu0 0.0
    %2238 = vmatpush1.msra.mxu0 0.0
    %2239 = vmatprep.subr.mxu0 0.0
    %2240 = vmatpush1.msra.mxu0 0.0
    %2241 = vmatprep.subr.mxu0 0.0
    %2242 = vmatpush1.msra.mxu0 0.0
    %2243 = vmatprep.subr.mxu0 0.0
    %2244 = vmatpush1.msra.mxu0 0.0
    %2245 = vmatprep.subr.mxu0 0.0
    %2246 = vmatpush1.msra.mxu0 0.0
    %2247 = vmatprep.subr.mxu0 0.0
    %2248 = vmatpush1.msra.mxu0 0.0
    %2249 = vmatprep.subr.mxu0 0.0
    %2250 = vmatpush1.msra.mxu0 0.0
    %2251 = vmatprep.subr.mxu0 0.0
    %2252 = vmatpush1.msra.mxu0 0.0
    %2253 = vmatprep.subr.mxu0 0.0
    %2254 = vmatpush1.msra.mxu0 0.0
    %2255 = vmatprep.subr.mxu0 0.0
    %2256 = vmatpush1.msra.mxu0 0.0
    %2257 = vmatprep.subr.mxu0 0.0
    %2258 = vmatpush1.msra.mxu0 0.0
    %2259 = vmatprep.subr.mxu0 0.0
    %2260 = vmatpush1.msra.mxu0 0.0
    %2261 = vmatprep.subr.mxu0 0.0
    %2262 = vmatpush1.msra.mxu0 0.0
    %2263 = vmatprep.subr.mxu0 0.0
    %2264 = vmatpush1.msra.mxu0 0.0
    %2265 = vmatprep.subr.mxu0 0.0
    %2266 = vmatpush1.msra.mxu0 0.0
    %2267 = vmatprep.subr.mxu0 0.0
    %2268 = vmatpush1.msra.mxu0 0.0
    %2269 = vmatprep.subr.mxu0 0.0
    %2270 = vmatpush1.msra.mxu0 0.0
    %2271 = vmatprep.subr.mxu0 0.0
    %2272 = vmatpush1.msra.mxu0 0.0
    %2273 = vmatprep.subr.mxu0 0.0
    %2274 = vmatpush1.msra.mxu0 0.0
    %2275 = vmatprep.subr.mxu0 0.0
    %2276 = vmatpush1.msra.mxu0 0.0
    %2277 = vmatprep.subr.mxu0 0.0
    %2278 = vmatpush1.msra.mxu0 0.0
    %2279 = vmatprep.subr.mxu0 0.0
    %2280 = vmatpush1.msra.mxu0 0.0
    %2281 = vmatprep.subr.mxu0 0.0
    %2282 = vmatpush1.msra.mxu0 0.0
    %2283 = vmatprep.mubr.f32.mxu0 0.0
    %2284 = vmatmul.mubr.f32.gmra.mrb[0].mxu0 %v2217
    %v2285 = vpop.f32.mrb[0].mxu0
    %v2286 = vadd.f32 0.0, %v2285
    %v2287 = vpop.f32.mrb[0].mxu0
    %2288 = vdwg.mxu0
    %2289 = vrot.lane.b32.xlu0 %v1885, 120
    %v2290 = vpop.permute.xlu0 %2289
    %2291 = vrot.lane.b32.xlu0 %v1945, 120
    %v2292 = vpop.permute.xlu0 %2291
    %v2293 = vsel %vm208, %v2290, 0
    %v2295 = vsel %vm208, %v2292, 0
    %2297 = vmatprep.subr.mxu0 0.0
    %2298 = vmatpush1.xpose.msra.mxu0 %v2295
    %2299 = vmatprep.subr.mxu0 0.0
    %2300 = vmatpush1.xpose.msra.mxu0 0.0
    %2301 = vmatprep.subr.mxu0 0.0
    %2302 = vmatpush1.xpose.msra.mxu0 0.0
    %2303 = vmatprep.subr.mxu0 0.0
    %2304 = vmatpush1.xpose.msra.mxu0 0.0
    %2305 = vmatprep.subr.mxu0 0.0
    %2306 = vmatpush1.xpose.msra.mxu0 0.0
    %2307 = vmatprep.subr.mxu0 0.0
    %2308 = vmatpush1.xpose.msra.mxu0 0.0
    %2309 = vmatprep.subr.mxu0 0.0
    %2310 = vmatpush1.xpose.msra.mxu0 0.0
    %2311 = vmatprep.subr.mxu0 0.0
    %2312 = vmatpush1.xpose.msra.mxu0 0.0
    %2313 = vmatprep.subr.mxu0 0.0
    %2314 = vmatpush1.xpose.msra.mxu0 0.0
    %2315 = vmatprep.subr.mxu0 0.0
    %2316 = vmatpush1.xpose.msra.mxu0 0.0
    %2317 = vmatprep.subr.mxu0 0.0
    %2318 = vmatpush1.xpose.msra.mxu0 0.0
    %2319 = vmatprep.subr.mxu0 0.0
    %2320 = vmatpush1.xpose.msra.mxu0 0.0
    %2321 = vmatprep.subr.mxu0 0.0
    %2322 = vmatpush1.xpose.msra.mxu0 0.0
    %2323 = vmatprep.subr.mxu0 0.0
    %2324 = vmatpush1.xpose.msra.mxu0 0.0
    %2325 = vmatprep.subr.mxu0 0.0
    %2326 = vmatpush1.xpose.msra.mxu0 0.0
    %2327 = vmatprep.subr.mxu0 0.0
    %2328 = vmatpush1.xpose.msra.mxu0 0.0
    %2329 = vmatprep.subr.mxu0 0.0
    %2330 = vmatpush1.xpose.msra.mxu0 0.0
    %2331 = vmatprep.subr.mxu0 0.0
    %2332 = vmatpush1.xpose.msra.mxu0 0.0
    %2333 = vmatprep.subr.mxu0 0.0
    %2334 = vmatpush1.xpose.msra.mxu0 0.0
    %2335 = vmatprep.subr.mxu0 0.0
    %2336 = vmatpush1.xpose.msra.mxu0 0.0
    %2337 = vmatprep.subr.mxu0 0.0
    %2338 = vmatpush1.xpose.msra.mxu0 0.0
    %2339 = vmatprep.subr.mxu0 0.0
    %2340 = vmatpush1.xpose.msra.mxu0 0.0
    %2341 = vmatprep.subr.mxu0 0.0
    %2342 = vmatpush1.xpose.msra.mxu0 0.0
    %2343 = vmatprep.subr.mxu0 0.0
    %2344 = vmatpush1.xpose.msra.mxu0 0.0
    %2345 = vmatprep.subr.mxu0 0.0
    %2346 = vmatpush1.xpose.msra.mxu0 0.0
    %2347 = vmatprep.subr.mxu0 0.0
    %2348 = vmatpush1.xpose.msra.mxu0 0.0
    %2349 = vmatprep.subr.mxu0 0.0
    %2350 = vmatpush1.xpose.msra.mxu0 0.0
    %2351 = vmatprep.subr.mxu0 0.0
    %2352 = vmatpush1.xpose.msra.mxu0 0.0
    %2353 = vmatprep.subr.mxu0 0.0
    %2354 = vmatpush1.xpose.msra.mxu0 0.0
    %2355 = vmatprep.subr.mxu0 0.0
    %2356 = vmatpush1.xpose.msra.mxu0 0.0
    %2357 = vmatprep.subr.mxu0 0.0
    %2358 = vmatpush1.xpose.msra.mxu0 0.0
    %2359 = vmatprep.subr.mxu0 0.0
    %2360 = vmatpush1.xpose.msra.mxu0 0.0
    %2361 = vmatprep.mubr.f32.mxu0 0.0
    %2362 = vmatmul.mubr.f32.gmra.mrb[0].mxu0 %v2293
    %v2363 = vpop.f32.mrb[0].mxu0
    %v2364 = vadd.f32 0.0, %v2363
    %v2365 = vpop.f32.mrb[0].mxu0
    %2366 = vdwg.mxu0
    %2367 = vrot.lane.b32.xlu0 %v1888, 120
    %v2368 = vpop.permute.xlu0 %2367
    %2369 = vrot.lane.b32.xlu0 %v1946, 120
    %v2370 = vpop.permute.xlu0 %2369
    %v2371 = vsel %vm208, %v2368, 0
    %v2373 = vsel %vm208, %v2370, 0
    %2375 = vmatprep.subr.mxu0 0.0
    %2376 = vmatpush1.xpose.msra.mxu0 %v2373
    %2377 = vmatprep.subr.mxu0 0.0
    %2378 = vmatpush1.xpose.msra.mxu0 0.0
    %2379 = vmatprep.subr.mxu0 0.0
    %2380 = vmatpush1.xpose.msra.mxu0 0.0
    %2381 = vmatprep.subr.mxu0 0.0
    %2382 = vmatpush1.xpose.msra.mxu0 0.0
    %2383 = vmatprep.subr.mxu0 0.0
    %2384 = vmatpush1.xpose.msra.mxu0 0.0
    %2385 = vmatprep.subr.mxu0 0.0
    %2386 = vmatpush1.xpose.msra.mxu0 0.0
    %2387 = vmatprep.subr.mxu0 0.0
    %2388 = vmatpush1.xpose.msra.mxu0 0.0
    %2389 = vmatprep.subr.mxu0 0.0
    %2390 = vmatpush1.xpose.msra.mxu0 0.0
    %2391 = vmatprep.subr.mxu0 0.0
    %2392 = vmatpush1.xpose.msra.mxu0 0.0
    %2393 = vmatprep.subr.mxu0 0.0
    %2394 = vmatpush1.xpose.msra.mxu0 0.0
    %2395 = vmatprep.subr.mxu0 0.0
    %2396 = vmatpush1.xpose.msra.mxu0 0.0
    %2397 = vmatprep.subr.mxu0 0.0
    %2398 = vmatpush1.xpose.msra.mxu0 0.0
    %2399 = vmatprep.subr.mxu0 0.0
    %2400 = vmatpush1.xpose.msra.mxu0 0.0
    %2401 = vmatprep.subr.mxu0 0.0
    %2402 = vmatpush1.xpose.msra.mxu0 0.0
    %2403 = vmatprep.subr.mxu0 0.0
    %2404 = vmatpush1.xpose.msra.mxu0 0.0
    %2405 = vmatprep.subr.mxu0 0.0
    %2406 = vmatpush1.xpose.msra.mxu0 0.0
    %2407 = vmatprep.subr.mxu0 0.0
    %2408 = vmatpush1.xpose.msra.mxu0 0.0
    %2409 = vmatprep.subr.mxu0 0.0
    %2410 = vmatpush1.xpose.msra.mxu0 0.0
    %2411 = vmatprep.subr.mxu0 0.0
    %2412 = vmatpush1.xpose.msra.mxu0 0.0
    %2413 = vmatprep.subr.mxu0 0.0
    %2414 = vmatpush1.xpose.msra.mxu0 0.0
    %2415 = vmatprep.subr.mxu0 0.0
    %2416 = vmatpush1.xpose.msra.mxu0 0.0
    %2417 = vmatprep.subr.mxu0 0.0
    %2418 = vmatpush1.xpose.msra.mxu0 0.0
    %2419 = vmatprep.subr.mxu0 0.0
    %2420 = vmatpush1.xpose.msra.mxu0 0.0
    %2421 = vmatprep.subr.mxu0 0.0
    %2422 = vmatpush1.xpose.msra.mxu0 0.0
    %2423 = vmatprep.subr.mxu0 0.0
    %2424 = vmatpush1.xpose.msra.mxu0 0.0
    %2425 = vmatprep.subr.mxu0 0.0
    %2426 = vmatpush1.xpose.msra.mxu0 0.0
    %2427 = vmatprep.subr.mxu0 0.0
    %2428 = vmatpush1.xpose.msra.mxu0 0.0
    %2429 = vmatprep.subr.mxu0 0.0
    %2430 = vmatpush1.xpose.msra.mxu0 0.0
    %2431 = vmatprep.subr.mxu0 0.0
    %2432 = vmatpush1.xpose.msra.mxu0 0.0
    %2433 = vmatprep.subr.mxu0 0.0
    %2434 = vmatpush1.xpose.msra.mxu0 0.0
    %2435 = vmatprep.subr.mxu0 0.0
    %2436 = vmatpush1.xpose.msra.mxu0 0.0
    %2437 = vmatprep.subr.mxu0 0.0
    %2438 = vmatpush1.xpose.msra.mxu0 0.0
    %2439 = vmatprep.mubr.f32.mxu0 0.0
    %2440 = vmatmul.mubr.f32.gmra.mrb[0].mxu0 %v2371
    %v2441 = vpop.f32.mrb[0].mxu0
    %v2442 = vadd.f32 0.0, %v2441
    %v2443 = vpop.f32.mrb[0].mxu0
    %2444 = vdwg.mxu0
    %v2445 = vmul.f32 %v2364, 0.35355338
    %v2446 = vmul.f32 %v2442, 0.35355338
    %v2447 = vadd.f32 %v2445, %v72
    %v2448 = vadd.f32 %v2446, %v73
    %v2449 = vsel %vm208, %v2447, -inf
    %2450 = vmax.xlane.f32.xlu0 %v2449
    %v2451 = vpop.xlane.xlu0 %2450
    %v2452 = vsel %vm208, %v2448, -inf
    %2453 = vmax.xlane.f32.xlu0 %v2452
    %v2454 = vpop.xlane.xlu0 %2453
    %v2455 = vsub.f32 %v2447, %v2451
    %v2456 = vsub.f32 %v2448, %v2454
    %v2457 = vmul.f32 %v2455, 1.442695
    %v2458 = vpow.pop %v2457
    %v2459 = vmul.f32 %v2456, 1.442695
    %v2460 = vpow.pop %v2459
    %v2461 = vsel %vm208, %v2458, 0.0
    %2462 = vadd.xlane.f32.xlu0 %v2461
    %v2463 = vpop.xlane.xlu0 %2462
    %v2464 = vsel %vm208, %v2460, 0.0
    %2465 = vadd.xlane.f32.xlu0 %v2464
    %v2466 = vpop.xlane.xlu0 %2465
    %v2467 = vrcp.pop %v2463
    %v2468 = vrcp.pop %v2466
    %v2469 = vmul.f32 %v2458, %v2467
    %v2470 = vmul.f32 %v2460, %v2468
    %2471 = vrot.lane.b32.xlu0 %v1955, 88
    %v2472 = vpop.permute.xlu0 %2471
    %v2475 = vsel %vm208, %v2469, 0
    %2477 = vmatprep.subr.mxu0 0.0
    %2478 = vmatpush1.msra.mxu0 %v2472
    %2479 = vmatprep.subr.mxu0 0.0
    %2480 = vmatpush1.msra.mxu0 0.0
    %2481 = vmatprep.subr.mxu0 0.0
    %2482 = vmatpush1.msra.mxu0 0.0
    %2483 = vmatprep.subr.mxu0 0.0
    %2484 = vmatpush1.msra.mxu0 0.0
    %2485 = vmatprep.subr.mxu0 0.0
    %2486 = vmatpush1.msra.mxu0 0.0
    %2487 = vmatprep.subr.mxu0 0.0
    %2488 = vmatpush1.msra.mxu0 0.0
    %2489 = vmatprep.subr.mxu0 0.0
    %2490 = vmatpush1.msra.mxu0 0.0
    %2491 = vmatprep.subr.mxu0 0.0
    %2492 = vmatpush1.msra.mxu0 0.0
    %2493 = vmatprep.subr.mxu0 0.0
    %2494 = vmatpush1.msra.mxu0 0.0
    %2495 = vmatprep.subr.mxu0 0.0
    %2496 = vmatpush1.msra.mxu0 0.0
    %2497 = vmatprep.subr.mxu0 0.0
    %2498 = vmatpush1.msra.mxu0 0.0
    %2499 = vmatprep.subr.mxu0 0.0
    %2500 = vmatpush1.msra.mxu0 0.0
    %2501 = vmatprep.subr.mxu0 0.0
    %2502 = vmatpush1.msra.mxu0 0.0
    %2503 = vmatprep.subr.mxu0 0.0
    %2504 = vmatpush1.msra.mxu0 0.0
    %2505 = vmatprep.subr.mxu0 0.0
    %2506 = vmatpush1.msra.mxu0 0.0
    %2507 = vmatprep.subr.mxu0 0.0
    %2508 = vmatpush1.msra.mxu0 0.0
    %2509 = vmatprep.subr.mxu0 0.0
    %2510 = vmatpush1.msra.mxu0 0.0
    %2511 = vmatprep.subr.mxu0 0.0
    %2512 = vmatpush1.msra.mxu0 0.0
    %2513 = vmatprep.subr.mxu0 0.0
    %2514 = vmatpush1.msra.mxu0 0.0
    %2515 = vmatprep.subr.mxu0 0.0
    %2516 = vmatpush1.msra.mxu0 0.0
    %2517 = vmatprep.subr.mxu0 0.0
    %2518 = vmatpush1.msra.mxu0 0.0
    %2519 = vmatprep.subr.mxu0 0.0
    %2520 = vmatpush1.msra.mxu0 0.0
    %2521 = vmatprep.subr.mxu0 0.0
    %2522 = vmatpush1.msra.mxu0 0.0
    %2523 = vmatprep.subr.mxu0 0.0
    %2524 = vmatpush1.msra.mxu0 0.0
    %2525 = vmatprep.subr.mxu0 0.0
    %2526 = vmatpush1.msra.mxu0 0.0
    %2527 = vmatprep.subr.mxu0 0.0
    %2528 = vmatpush1.msra.mxu0 0.0
    %2529 = vmatprep.subr.mxu0 0.0
    %2530 = vmatpush1.msra.mxu0 0.0
    %2531 = vmatprep.subr.mxu0 0.0
    %2532 = vmatpush1.msra.mxu0 0.0
    %2533 = vmatprep.subr.mxu0 0.0
    %2534 = vmatpush1.msra.mxu0 0.0
    %2535 = vmatprep.subr.mxu0 0.0
    %2536 = vmatpush1.msra.mxu0 0.0
    %2537 = vmatprep.subr.mxu0 0.0
    %2538 = vmatpush1.msra.mxu0 0.0
    %2539 = vmatprep.subr.mxu0 0.0
    %2540 = vmatpush1.msra.mxu0 0.0
    %2541 = vmatprep.mubr.f32.mxu0 0.0
    %2542 = vmatmul.mubr.f32.gmra.mrb[0].mxu0 %v2475
    %v2543 = vpop.f32.mrb[0].mxu0
    %v2544 = vadd.f32 0.0, %v2543
    %v2545 = vpop.f32.mrb[0].mxu0
    %2546 = vdwg.mxu0
    %2547 = vrot.lane.b32.xlu0 %v1956, 88
    %v2548 = vpop.permute.xlu0 %2547
    %v2551 = vsel %vm208, %v2470, 0
    %2553 = vmatprep.subr.mxu0 0.0
    %2554 = vmatpush1.msra.mxu0 %v2548
    %2555 = vmatprep.subr.mxu0 0.0
    %2556 = vmatpush1.msra.mxu0 0.0
    %2557 = vmatprep.subr.mxu0 0.0
    %2558 = vmatpush1.msra.mxu0 0.0
    %2559 = vmatprep.subr.mxu0 0.0
    %2560 = vmatpush1.msra.mxu0 0.0
    %2561 = vmatprep.subr.mxu0 0.0
    %2562 = vmatpush1.msra.mxu0 0.0
    %2563 = vmatprep.subr.mxu0 0.0
    %2564 = vmatpush1.msra.mxu0 0.0
    %2565 = vmatprep.subr.mxu0 0.0
    %2566 = vmatpush1.msra.mxu0 0.0
    %2567 = vmatprep.subr.mxu0 0.0
    %2568 = vmatpush1.msra.mxu0 0.0
    %2569 = vmatprep.subr.mxu0 0.0
    %2570 = vmatpush1.msra.mxu0 0.0
    %2571 = vmatprep.subr.mxu0 0.0
    %2572 = vmatpush1.msra.mxu0 0.0
    %2573 = vmatprep.subr.mxu0 0.0
    %2574 = vmatpush1.msra.mxu0 0.0
    %2575 = vmatprep.subr.mxu0 0.0
    %2576 = vmatpush1.msra.mxu0 0.0
    %2577 = vmatprep.subr.mxu0 0.0
    %2578 = vmatpush1.msra.mxu0 0.0
    %2579 = vmatprep.subr.mxu0 0.0
    %2580 = vmatpush1.msra.mxu0 0.0
    %2581 = vmatprep.subr.mxu0 0.0
    %2582 = vmatpush1.msra.mxu0 0.0
    %2583 = vmatprep.subr.mxu0 0.0
    %2584 = vmatpush1.msra.mxu0 0.0
    %2585 = vmatprep.subr.mxu0 0.0
    %2586 = vmatpush1.msra.mxu0 0.0
    %2587 = vmatprep.subr.mxu0 0.0
    %2588 = vmatpush1.msra.mxu0 0.0
    %2589 = vmatprep.subr.mxu0 0.0
    %2590 = vmatpush1.msra.mxu0 0.0
    %2591 = vmatprep.subr.mxu0 0.0
    %2592 = vmatpush1.msra.mxu0 0.0
    %2593 = vmatprep.subr.mxu0 0.0
    %2594 = vmatpush1.msra.mxu0 0.0
    %2595 = vmatprep.subr.mxu0 0.0
    %2596 = vmatpush1.msra.mxu0 0.0
    %2597 = vmatprep.subr.mxu0 0.0
    %2598 = vmatpush1.msra.mxu0 0.0
    %2599 = vmatprep.subr.mxu0 0.0
    %2600 = vmatpush1.msra.mxu0 0.0
    %2601 = vmatprep.subr.mxu0 0.0
    %2602 = vmatpush1.msra.mxu0 0.0
    %2603 = vmatprep.subr.mxu0 0.0
    %2604 = vmatpush1.msra.mxu0 0.0
    %2605 = vmatprep.subr.mxu0 0.0
    %2606 = vmatpush1.msra.mxu0 0.0
    %2607 = vmatprep.subr.mxu0 0.0
    %2608 = vmatpush1.msra.mxu0 0.0
    %2609 = vmatprep.subr.mxu0 0.0
    %2610 = vmatpush1.msra.mxu0 0.0
    %2611 = vmatprep.subr.mxu0 0.0
    %2612 = vmatpush1.msra.mxu0 0.0
    %2613 = vmatprep.subr.mxu0 0.0
    %2614 = vmatpush1.msra.mxu0 0.0
    %2615 = vmatprep.subr.mxu0 0.0
    %2616 = vmatpush1.msra.mxu0 0.0
    %2617 = vmatprep.mubr.f32.mxu0 0.0
    %2618 = vmatmul.mubr.f32.gmra.mrb[0].mxu0 %v2551
    %v2619 = vpop.f32.mrb[0].mxu0
    %v2620 = vadd.f32 0.0, %v2619
    %v2621 = vpop.f32.mrb[0].mxu0
    %2622 = vdwg.mxu0
    %2623 = vrot.lane.b32.xlu0 %v1885, 112
    %v2624 = vpop.permute.xlu0 %2623
    %2625 = vrot.lane.b32.xlu0 %v1945, 112
    %v2626 = vpop.permute.xlu0 %2625
    %v2627 = vsel %vm208, %v2624, 0
    %v2629 = vsel %vm208, %v2626, 0
    %2631 = vmatprep.subr.mxu0 0.0
    %2632 = vmatpush1.xpose.msra.mxu0 %v2629
    %2633 = vmatprep.subr.mxu0 0.0
    %2634 = vmatpush1.xpose.msra.mxu0 0.0
    %2635 = vmatprep.subr.mxu0 0.0
    %2636 = vmatpush1.xpose.msra.mxu0 0.0
    %2637 = vmatprep.subr.mxu0 0.0
    %2638 = vmatpush1.xpose.msra.mxu0 0.0
    %2639 = vmatprep.subr.mxu0 0.0
    %2640 = vmatpush1.xpose.msra.mxu0 0.0
    %2641 = vmatprep.subr.mxu0 0.0
    %2642 = vmatpush1.xpose.msra.mxu0 0.0
    %2643 = vmatprep.subr.mxu0 0.0
    %2644 = vmatpush1.xpose.msra.mxu0 0.0
    %2645 = vmatprep.subr.mxu0 0.0
    %2646 = vmatpush1.xpose.msra.mxu0 0.0
    %2647 = vmatprep.subr.mxu0 0.0
    %2648 = vmatpush1.xpose.msra.mxu0 0.0
    %2649 = vmatprep.subr.mxu0 0.0
    %2650 = vmatpush1.xpose.msra.mxu0 0.0
    %2651 = vmatprep.subr.mxu0 0.0
    %2652 = vmatpush1.xpose.msra.mxu0 0.0
    %2653 = vmatprep.subr.mxu0 0.0
    %2654 = vmatpush1.xpose.msra.mxu0 0.0
    %2655 = vmatprep.subr.mxu0 0.0
    %2656 = vmatpush1.xpose.msra.mxu0 0.0
    %2657 = vmatprep.subr.mxu0 0.0
    %2658 = vmatpush1.xpose.msra.mxu0 0.0
    %2659 = vmatprep.subr.mxu0 0.0
    %2660 = vmatpush1.xpose.msra.mxu0 0.0
    %2661 = vmatprep.subr.mxu0 0.0
    %2662 = vmatpush1.xpose.msra.mxu0 0.0
    %2663 = vmatprep.subr.mxu0 0.0
    %2664 = vmatpush1.xpose.msra.mxu0 0.0
    %2665 = vmatprep.subr.mxu0 0.0
    %2666 = vmatpush1.xpose.msra.mxu0 0.0
    %2667 = vmatprep.subr.mxu0 0.0
    %2668 = vmatpush1.xpose.msra.mxu0 0.0
    %2669 = vmatprep.subr.mxu0 0.0
    %2670 = vmatpush1.xpose.msra.mxu0 0.0
    %2671 = vmatprep.subr.mxu0 0.0
    %2672 = vmatpush1.xpose.msra.mxu0 0.0
    %2673 = vmatprep.subr.mxu0 0.0
    %2674 = vmatpush1.xpose.msra.mxu0 0.0
    %2675 = vmatprep.subr.mxu0 0.0
    %2676 = vmatpush1.xpose.msra.mxu0 0.0
    %2677 = vmatprep.subr.mxu0 0.0
    %2678 = vmatpush1.xpose.msra.mxu0 0.0
    %2679 = vmatprep.subr.mxu0 0.0
    %2680 = vmatpush1.xpose.msra.mxu0 0.0
    %2681 = vmatprep.subr.mxu0 0.0
    %2682 = vmatpush1.xpose.msra.mxu0 0.0
    %2683 = vmatprep.subr.mxu0 0.0
    %2684 = vmatpush1.xpose.msra.mxu0 0.0
    %2685 = vmatprep.subr.mxu0 0.0
    %2686 = vmatpush1.xpose.msra.mxu0 0.0
    %2687 = vmatprep.subr.mxu0 0.0
    %2688 = vmatpush1.xpose.msra.mxu0 0.0
    %2689 = vmatprep.subr.mxu0 0.0
    %2690 = vmatpush1.xpose.msra.mxu0 0.0
    %2691 = vmatprep.subr.mxu0 0.0
    %2692 = vmatpush1.xpose.msra.mxu0 0.0
    %2693 = vmatprep.subr.mxu0 0.0
    %2694 = vmatpush1.xpose.msra.mxu0 0.0
    %2695 = vmatprep.mubr.f32.mxu0 0.0
    %2696 = vmatmul.mubr.f32.gmra.mrb[0].mxu0 %v2627
    %v2697 = vpop.f32.mrb[0].mxu0
    %v2698 = vadd.f32 0.0, %v2697
    %v2699 = vpop.f32.mrb[0].mxu0
    %2700 = vdwg.mxu0
    %2701 = vrot.lane.b32.xlu0 %v1888, 112
    %v2702 = vpop.permute.xlu0 %2701
    %2703 = vrot.lane.b32.xlu0 %v1946, 112
    %v2704 = vpop.permute.xlu0 %2703
    %v2705 = vsel %vm208, %v2702, 0
    %v2707 = vsel %vm208, %v2704, 0
    %2709 = vmatprep.subr.mxu0 0.0
    %2710 = vmatpush1.xpose.msra.mxu0 %v2707
    %2711 = vmatprep.subr.mxu0 0.0
    %2712 = vmatpush1.xpose.msra.mxu0 0.0
    %2713 = vmatprep.subr.mxu0 0.0
    %2714 = vmatpush1.xpose.msra.mxu0 0.0
    %2715 = vmatprep.subr.mxu0 0.0
    %2716 = vmatpush1.xpose.msra.mxu0 0.0
    %2717 = vmatprep.subr.mxu0 0.0
    %2718 = vmatpush1.xpose.msra.mxu0 0.0
    %2719 = vmatprep.subr.mxu0 0.0
    %2720 = vmatpush1.xpose.msra.mxu0 0.0
    %2721 = vmatprep.subr.mxu0 0.0
    %2722 = vmatpush1.xpose.msra.mxu0 0.0
    %2723 = vmatprep.subr.mxu0 0.0
    %2724 = vmatpush1.xpose.msra.mxu0 0.0
    %2725 = vmatprep.subr.mxu0 0.0
    %2726 = vmatpush1.xpose.msra.mxu0 0.0
    %2727 = vmatprep.subr.mxu0 0.0
    %2728 = vmatpush1.xpose.msra.mxu0 0.0
    %2729 = vmatprep.subr.mxu0 0.0
    %2730 = vmatpush1.xpose.msra.mxu0 0.0
    %2731 = vmatprep.subr.mxu0 0.0
    %2732 = vmatpush1.xpose.msra.mxu0 0.0
    %2733 = vmatprep.subr.mxu0 0.0
    %2734 = vmatpush1.xpose.msra.mxu0 0.0
    %2735 = vmatprep.subr.mxu0 0.0
    %2736 = vmatpush1.xpose.msra.mxu0 0.0
    %2737 = vmatprep.subr.mxu0 0.0
    %2738 = vmatpush1.xpose.msra.mxu0 0.0
    %2739 = vmatprep.subr.mxu0 0.0
    %2740 = vmatpush1.xpose.msra.mxu0 0.0
    %2741 = vmatprep.subr.mxu0 0.0
    %2742 = vmatpush1.xpose.msra.mxu0 0.0
    %2743 = vmatprep.subr.mxu0 0.0
    %2744 = vmatpush1.xpose.msra.mxu0 0.0
    %2745 = vmatprep.subr.mxu0 0.0
    %2746 = vmatpush1.xpose.msra.mxu0 0.0
    %2747 = vmatprep.subr.mxu0 0.0
    %2748 = vmatpush1.xpose.msra.mxu0 0.0
    %2749 = vmatprep.subr.mxu0 0.0
    %2750 = vmatpush1.xpose.msra.mxu0 0.0
    %2751 = vmatprep.subr.mxu0 0.0
    %2752 = vmatpush1.xpose.msra.mxu0 0.0
    %2753 = vmatprep.subr.mxu0 0.0
    %2754 = vmatpush1.xpose.msra.mxu0 0.0
    %2755 = vmatprep.subr.mxu0 0.0
    %2756 = vmatpush1.xpose.msra.mxu0 0.0
    %2757 = vmatprep.subr.mxu0 0.0
    %2758 = vmatpush1.xpose.msra.mxu0 0.0
    %2759 = vmatprep.subr.mxu0 0.0
    %2760 = vmatpush1.xpose.msra.mxu0 0.0
    %2761 = vmatprep.subr.mxu0 0.0
    %2762 = vmatpush1.xpose.msra.mxu0 0.0
    %2763 = vmatprep.subr.mxu0 0.0
    %2764 = vmatpush1.xpose.msra.mxu0 0.0
    %2765 = vmatprep.subr.mxu0 0.0
    %2766 = vmatpush1.xpose.msra.mxu0 0.0
    %2767 = vmatprep.subr.mxu0 0.0
    %2768 = vmatpush1.xpose.msra.mxu0 0.0
    %2769 = vmatprep.subr.mxu0 0.0
    %2770 = vmatpush1.xpose.msra.mxu0 0.0
    %2771 = vmatprep.subr.mxu0 0.0
    %2772 = vmatpush1.xpose.msra.mxu0 0.0
    %2773 = vmatprep.mubr.f32.mxu0 0.0
    %2774 = vmatmul.mubr.f32.gmra.mrb[0].mxu0 %v2705
    %v2775 = vpop.f32.mrb[0].mxu0
    %v2776 = vadd.f32 0.0, %v2775
    %v2777 = vpop.f32.mrb[0].mxu0
    %2778 = vdwg.mxu0
    %v2779 = vmul.f32 %v2698, 0.35355338
    %v2780 = vmul.f32 %v2776, 0.35355338
    %v2781 = vadd.f32 %v2779, %v72
    %v2782 = vadd.f32 %v2780, %v73
    %v2783 = vsel %vm208, %v2781, -inf
    %2784 = vmax.xlane.f32.xlu0 %v2783
    %v2785 = vpop.xlane.xlu0 %2784
    %v2786 = vsel %vm208, %v2782, -inf
    %2787 = vmax.xlane.f32.xlu0 %v2786
    %v2788 = vpop.xlane.xlu0 %2787
    %v2789 = vsub.f32 %v2781, %v2785
    %v2790 = vsub.f32 %v2782, %v2788
    %v2791 = vmul.f32 %v2789, 1.442695
    %v2792 = vpow.pop %v2791
    %v2793 = vmul.f32 %v2790, 1.442695
    %v2794 = vpow.pop %v2793
    %v2795 = vsel %vm208, %v2792, 0.0
    %2796 = vadd.xlane.f32.xlu0 %v2795
    %v2797 = vpop.xlane.xlu0 %2796
    %v2798 = vsel %vm208, %v2794, 0.0
    %2799 = vadd.xlane.f32.xlu0 %v2798
    %v2800 = vpop.xlane.xlu0 %2799
    %v2801 = vrcp.pop %v2797
    %v2802 = vrcp.pop %v2800
    %v2803 = vmul.f32 %v2792, %v2801
    %v2804 = vmul.f32 %v2794, %v2802
    %2805 = vrot.lane.b32.xlu0 %v1955, 80
    %v2806 = vpop.permute.xlu0 %2805
    %v2809 = vsel %vm208, %v2803, 0
    %2811 = vmatprep.subr.mxu0 0.0
    %2812 = vmatpush1.msra.mxu0 %v2806
    %2813 = vmatprep.subr.mxu0 0.0
    %2814 = vmatpush1.msra.mxu0 0.0
    %2815 = vmatprep.subr.mxu0 0.0
    %2816 = vmatpush1.msra.mxu0 0.0
    %2817 = vmatprep.subr.mxu0 0.0
    %2818 = vmatpush1.msra.mxu0 0.0
    %2819 = vmatprep.subr.mxu0 0.0
    %2820 = vmatpush1.msra.mxu0 0.0
    %2821 = vmatprep.subr.mxu0 0.0
    %2822 = vmatpush1.msra.mxu0 0.0
    %2823 = vmatprep.subr.mxu0 0.0
    %2824 = vmatpush1.msra.mxu0 0.0
    %2825 = vmatprep.subr.mxu0 0.0
    %2826 = vmatpush1.msra.mxu0 0.0
    %2827 = vmatprep.subr.mxu0 0.0
    %2828 = vmatpush1.msra.mxu0 0.0
    %2829 = vmatprep.subr.mxu0 0.0
    %2830 = vmatpush1.msra.mxu0 0.0
    %2831 = vmatprep.subr.mxu0 0.0
    %2832 = vmatpush1.msra.mxu0 0.0
    %2833 = vmatprep.subr.mxu0 0.0
    %2834 = vmatpush1.msra.mxu0 0.0
    %2835 = vmatprep.subr.mxu0 0.0
    %2836 = vmatpush1.msra.mxu0 0.0
    %2837 = vmatprep.subr.mxu0 0.0
    %2838 = vmatpush1.msra.mxu0 0.0
    %2839 = vmatprep.subr.mxu0 0.0
    %2840 = vmatpush1.msra.mxu0 0.0
    %2841 = vmatprep.subr.mxu0 0.0
    %2842 = vmatpush1.msra.mxu0 0.0
    %2843 = vmatprep.subr.mxu0 0.0
    %2844 = vmatpush1.msra.mxu0 0.0
    %2845 = vmatprep.subr.mxu0 0.0
    %2846 = vmatpush1.msra.mxu0 0.0
    %2847 = vmatprep.subr.mxu0 0.0
    %2848 = vmatpush1.msra.mxu0 0.0
    %2849 = vmatprep.subr.mxu0 0.0
    %2850 = vmatpush1.msra.mxu0 0.0
    %2851 = vmatprep.subr.mxu0 0.0
    %2852 = vmatpush1.msra.mxu0 0.0
    %2853 = vmatprep.subr.mxu0 0.0
    %2854 = vmatpush1.msra.mxu0 0.0
    %2855 = vmatprep.subr.mxu0 0.0
    %2856 = vmatpush1.msra.mxu0 0.0
    %2857 = vmatprep.subr.mxu0 0.0
    %2858 = vmatpush1.msra.mxu0 0.0
    %2859 = vmatprep.subr.mxu0 0.0
    %2860 = vmatpush1.msra.mxu0 0.0
    %2861 = vmatprep.subr.mxu0 0.0
    %2862 = vmatpush1.msra.mxu0 0.0
    %2863 = vmatprep.subr.mxu0 0.0
    %2864 = vmatpush1.msra.mxu0 0.0
    %2865 = vmatprep.subr.mxu0 0.0
    %2866 = vmatpush1.msra.mxu0 0.0
    %2867 = vmatprep.subr.mxu0 0.0
    %2868 = vmatpush1.msra.mxu0 0.0
    %2869 = vmatprep.subr.mxu0 0.0
    %2870 = vmatpush1.msra.mxu0 0.0
    %2871 = vmatprep.subr.mxu0 0.0
    %2872 = vmatpush1.msra.mxu0 0.0
    %2873 = vmatprep.subr.mxu0 0.0
    %2874 = vmatpush1.msra.mxu0 0.0
    %2875 = vmatprep.mubr.f32.mxu0 0.0
    %2876 = vmatmul.mubr.f32.gmra.mrb[0].mxu0 %v2809
    %v2877 = vpop.f32.mrb[0].mxu0
    %v2878 = vadd.f32 0.0, %v2877
    %v2879 = vpop.f32.mrb[0].mxu0
    %2880 = vdwg.mxu0
    %2881 = vrot.lane.b32.xlu0 %v1956, 80
    %v2882 = vpop.permute.xlu0 %2881
    %v2885 = vsel %vm208, %v2804, 0
    %2887 = vmatprep.subr.mxu0 0.0
    %2888 = vmatpush1.msra.mxu0 %v2882
    %2889 = vmatprep.subr.mxu0 0.0
    %2890 = vmatpush1.msra.mxu0 0.0
    %2891 = vmatprep.subr.mxu0 0.0
    %2892 = vmatpush1.msra.mxu0 0.0
    %2893 = vmatprep.subr.mxu0 0.0
    %2894 = vmatpush1.msra.mxu0 0.0
    %2895 = vmatprep.subr.mxu0 0.0
    %2896 = vmatpush1.msra.mxu0 0.0
    %2897 = vmatprep.subr.mxu0 0.0
    %2898 = vmatpush1.msra.mxu0 0.0
    %2899 = vmatprep.subr.mxu0 0.0
    %2900 = vmatpush1.msra.mxu0 0.0
    %2901 = vmatprep.subr.mxu0 0.0
    %2902 = vmatpush1.msra.mxu0 0.0
    %2903 = vmatprep.subr.mxu0 0.0
    %2904 = vmatpush1.msra.mxu0 0.0
    %2905 = vmatprep.subr.mxu0 0.0
    %2906 = vmatpush1.msra.mxu0 0.0
    %2907 = vmatprep.subr.mxu0 0.0
    %2908 = vmatpush1.msra.mxu0 0.0
    %2909 = vmatprep.subr.mxu0 0.0
    %2910 = vmatpush1.msra.mxu0 0.0
    %2911 = vmatprep.subr.mxu0 0.0
    %2912 = vmatpush1.msra.mxu0 0.0
    %2913 = vmatprep.subr.mxu0 0.0
    %2914 = vmatpush1.msra.mxu0 0.0
    %2915 = vmatprep.subr.mxu0 0.0
    %2916 = vmatpush1.msra.mxu0 0.0
    %2917 = vmatprep.subr.mxu0 0.0
    %2918 = vmatpush1.msra.mxu0 0.0
    %2919 = vmatprep.subr.mxu0 0.0
    %2920 = vmatpush1.msra.mxu0 0.0
    %2921 = vmatprep.subr.mxu0 0.0
    %2922 = vmatpush1.msra.mxu0 0.0
    %2923 = vmatprep.subr.mxu0 0.0
    %2924 = vmatpush1.msra.mxu0 0.0
    %2925 = vmatprep.subr.mxu0 0.0
    %2926 = vmatpush1.msra.mxu0 0.0
    %2927 = vmatprep.subr.mxu0 0.0
    %2928 = vmatpush1.msra.mxu0 0.0
    %2929 = vmatprep.subr.mxu0 0.0
    %2930 = vmatpush1.msra.mxu0 0.0
    %2931 = vmatprep.subr.mxu0 0.0
    %2932 = vmatpush1.msra.mxu0 0.0
    %2933 = vmatprep.subr.mxu0 0.0
    %2934 = vmatpush1.msra.mxu0 0.0
    %2935 = vmatprep.subr.mxu0 0.0
    %2936 = vmatpush1.msra.mxu0 0.0
    %2937 = vmatprep.subr.mxu0 0.0
    %2938 = vmatpush1.msra.mxu0 0.0
    %2939 = vmatprep.subr.mxu0 0.0
    %2940 = vmatpush1.msra.mxu0 0.0
    %2941 = vmatprep.subr.mxu0 0.0
    %2942 = vmatpush1.msra.mxu0 0.0
    %2943 = vmatprep.subr.mxu0 0.0
    %2944 = vmatpush1.msra.mxu0 0.0
    %2945 = vmatprep.subr.mxu0 0.0
    %2946 = vmatpush1.msra.mxu0 0.0
    %2947 = vmatprep.subr.mxu0 0.0
    %2948 = vmatpush1.msra.mxu0 0.0
    %2949 = vmatprep.subr.mxu0 0.0
    %2950 = vmatpush1.msra.mxu0 0.0
    %2951 = vmatprep.mubr.f32.mxu0 0.0
    %2952 = vmatmul.mubr.f32.gmra.mrb[0].mxu0 %v2885
    %v2953 = vpop.f32.mrb[0].mxu0
    %v2954 = vadd.f32 0.0, %v2953
    %v2955 = vpop.f32.mrb[0].mxu0
    %2956 = vdwg.mxu0
    %2957 = vrot.lane.b32.xlu0 %v1885, 104
    %v2958 = vpop.permute.xlu0 %2957
    %2959 = vrot.lane.b32.xlu0 %v1945, 104
    %v2960 = vpop.permute.xlu0 %2959
    %v2961 = vsel %vm208, %v2958, 0
    %v2963 = vsel %vm208, %v2960, 0
    %2965 = vmatprep.subr.mxu0 0.0
    %2966 = vmatpush1.xpose.msra.mxu0 %v2963
    %2967 = vmatprep.subr.mxu0 0.0
    %2968 = vmatpush1.xpose.msra.mxu0 0.0
    %2969 = vmatprep.subr.mxu0 0.0
    %2970 = vmatpush1.xpose.msra.mxu0 0.0
    %2971 = vmatprep.subr.mxu0 0.0
    %2972 = vmatpush1.xpose.msra.mxu0 0.0
    %2973 = vmatprep.subr.mxu0 0.0
    %2974 = vmatpush1.xpose.msra.mxu0 0.0
    %2975 = vmatprep.subr.mxu0 0.0
    %2976 = vmatpush1.xpose.msra.mxu0 0.0
    %2977 = vmatprep.subr.mxu0 0.0
    %2978 = vmatpush1.xpose.msra.mxu0 0.0
    %2979 = vmatprep.subr.mxu0 0.0
    %2980 = vmatpush1.xpose.msra.mxu0 0.0
    %2981 = vmatprep.subr.mxu0 0.0
    %2982 = vmatpush1.xpose.msra.mxu0 0.0
    %2983 = vmatprep.subr.mxu0 0.0
    %2984 = vmatpush1.xpose.msra.mxu0 0.0
    %2985 = vmatprep.subr.mxu0 0.0
    %2986 = vmatpush1.xpose.msra.mxu0 0.0
    %2987 = vmatprep.subr.mxu0 0.0
    %2988 = vmatpush1.xpose.msra.mxu0 0.0
    %2989 = vmatprep.subr.mxu0 0.0
    %2990 = vmatpush1.xpose.msra.mxu0 0.0
    %2991 = vmatprep.subr.mxu0 0.0
    %2992 = vmatpush1.xpose.msra.mxu0 0.0
    %2993 = vmatprep.subr.mxu0 0.0
    %2994 = vmatpush1.xpose.msra.mxu0 0.0
    %2995 = vmatprep.subr.mxu0 0.0
    %2996 = vmatpush1.xpose.msra.mxu0 0.0
    %2997 = vmatprep.subr.mxu0 0.0
    %2998 = vmatpush1.xpose.msra.mxu0 0.0
    %2999 = vmatprep.subr.mxu0 0.0
    %3000 = vmatpush1.xpose.msra.mxu0 0.0
    %3001 = vmatprep.subr.mxu0 0.0
    %3002 = vmatpush1.xpose.msra.mxu0 0.0
    %3003 = vmatprep.subr.mxu0 0.0
    %3004 = vmatpush1.xpose.msra.mxu0 0.0
    %3005 = vmatprep.subr.mxu0 0.0
    %3006 = vmatpush1.xpose.msra.mxu0 0.0
    %3007 = vmatprep.subr.mxu0 0.0
    %3008 = vmatpush1.xpose.msra.mxu0 0.0
    %3009 = vmatprep.subr.mxu0 0.0
    %3010 = vmatpush1.xpose.msra.mxu0 0.0
    %3011 = vmatprep.subr.mxu0 0.0
    %3012 = vmatpush1.xpose.msra.mxu0 0.0
    %3013 = vmatprep.subr.mxu0 0.0
    %3014 = vmatpush1.xpose.msra.mxu0 0.0
    %3015 = vmatprep.subr.mxu0 0.0
    %3016 = vmatpush1.xpose.msra.mxu0 0.0
    %3017 = vmatprep.subr.mxu0 0.0
    %3018 = vmatpush1.xpose.msra.mxu0 0.0
    %3019 = vmatprep.subr.mxu0 0.0
    %3020 = vmatpush1.xpose.msra.mxu0 0.0
    %3021 = vmatprep.subr.mxu0 0.0
    %3022 = vmatpush1.xpose.msra.mxu0 0.0
    %3023 = vmatprep.subr.mxu0 0.0
    %3024 = vmatpush1.xpose.msra.mxu0 0.0
    %3025 = vmatprep.subr.mxu0 0.0
    %3026 = vmatpush1.xpose.msra.mxu0 0.0
    %3027 = vmatprep.subr.mxu0 0.0
    %3028 = vmatpush1.xpose.msra.mxu0 0.0
    %3029 = vmatprep.mubr.f32.mxu0 0.0
    %3030 = vmatmul.mubr.f32.gmra.mrb[0].mxu0 %v2961
    %v3031 = vpop.f32.mrb[0].mxu0
    %v3032 = vadd.f32 0.0, %v3031
    %v3033 = vpop.f32.mrb[0].mxu0
    %3034 = vdwg.mxu0
    %3035 = vrot.lane.b32.xlu0 %v1888, 104
    %v3036 = vpop.permute.xlu0 %3035
    %3037 = vrot.lane.b32.xlu0 %v1946, 104
    %v3038 = vpop.permute.xlu0 %3037
    %v3039 = vsel %vm208, %v3036, 0
    %v3041 = vsel %vm208, %v3038, 0
    %3043 = vmatprep.subr.mxu0 0.0
    %3044 = vmatpush1.xpose.msra.mxu0 %v3041
    %3045 = vmatprep.subr.mxu0 0.0
    %3046 = vmatpush1.xpose.msra.mxu0 0.0
    %3047 = vmatprep.subr.mxu0 0.0
    %3048 = vmatpush1.xpose.msra.mxu0 0.0
    %3049 = vmatprep.subr.mxu0 0.0
    %3050 = vmatpush1.xpose.msra.mxu0 0.0
    %3051 = vmatprep.subr.mxu0 0.0
    %3052 = vmatpush1.xpose.msra.mxu0 0.0
    %3053 = vmatprep.subr.mxu0 0.0
    %3054 = vmatpush1.xpose.msra.mxu0 0.0
    %3055 = vmatprep.subr.mxu0 0.0
    %3056 = vmatpush1.xpose.msra.mxu0 0.0
    %3057 = vmatprep.subr.mxu0 0.0
    %3058 = vmatpush1.xpose.msra.mxu0 0.0
    %3059 = vmatprep.subr.mxu0 0.0
    %3060 = vmatpush1.xpose.msra.mxu0 0.0
    %3061 = vmatprep.subr.mxu0 0.0
    %3062 = vmatpush1.xpose.msra.mxu0 0.0
    %3063 = vmatprep.subr.mxu0 0.0
    %3064 = vmatpush1.xpose.msra.mxu0 0.0
    %3065 = vmatprep.subr.mxu0 0.0
    %3066 = vmatpush1.xpose.msra.mxu0 0.0
    %3067 = vmatprep.subr.mxu0 0.0
    %3068 = vmatpush1.xpose.msra.mxu0 0.0
    %3069 = vmatprep.subr.mxu0 0.0
    %3070 = vmatpush1.xpose.msra.mxu0 0.0
    %3071 = vmatprep.subr.mxu0 0.0
    %3072 = vmatpush1.xpose.msra.mxu0 0.0
    %3073 = vmatprep.subr.mxu0 0.0
    %3074 = vmatpush1.xpose.msra.mxu0 0.0
    %3075 = vmatprep.subr.mxu0 0.0
    %3076 = vmatpush1.xpose.msra.mxu0 0.0
    %3077 = vmatprep.subr.mxu0 0.0
    %3078 = vmatpush1.xpose.msra.mxu0 0.0
    %3079 = vmatprep.subr.mxu0 0.0
    %3080 = vmatpush1.xpose.msra.mxu0 0.0
    %3081 = vmatprep.subr.mxu0 0.0
    %3082 = vmatpush1.xpose.msra.mxu0 0.0
    %3083 = vmatprep.subr.mxu0 0.0
    %3084 = vmatpush1.xpose.msra.mxu0 0.0
    %3085 = vmatprep.subr.mxu0 0.0
    %3086 = vmatpush1.xpose.msra.mxu0 0.0
    %3087 = vmatprep.subr.mxu0 0.0
    %3088 = vmatpush1.xpose.msra.mxu0 0.0
    %3089 = vmatprep.subr.mxu0 0.0
    %3090 = vmatpush1.xpose.msra.mxu0 0.0
    %3091 = vmatprep.subr.mxu0 0.0
    %3092 = vmatpush1.xpose.msra.mxu0 0.0
    %3093 = vmatprep.subr.mxu0 0.0
    %3094 = vmatpush1.xpose.msra.mxu0 0.0
    %3095 = vmatprep.subr.mxu0 0.0
    %3096 = vmatpush1.xpose.msra.mxu0 0.0
    %3097 = vmatprep.subr.mxu0 0.0
    %3098 = vmatpush1.xpose.msra.mxu0 0.0
    %3099 = vmatprep.subr.mxu0 0.0
    %3100 = vmatpush1.xpose.msra.mxu0 0.0
    %3101 = vmatprep.subr.mxu0 0.0
    %3102 = vmatpush1.xpose.msra.mxu0 0.0
    %3103 = vmatprep.subr.mxu0 0.0
    %3104 = vmatpush1.xpose.msra.mxu0 0.0
    %3105 = vmatprep.subr.mxu0 0.0
    %3106 = vmatpush1.xpose.msra.mxu0 0.0
    %3107 = vmatprep.mubr.f32.mxu0 0.0
    %3108 = vmatmul.mubr.f32.gmra.mrb[0].mxu0 %v3039
    %v3109 = vpop.f32.mrb[0].mxu0
    %v3110 = vadd.f32 0.0, %v3109
    %v3111 = vpop.f32.mrb[0].mxu0
    %3112 = vdwg.mxu0
    %v3113 = vmul.f32 %v3032, 0.35355338
    %v3114 = vmul.f32 %v3110, 0.35355338
    %v3115 = vadd.f32 %v3113, %v72
    %v3116 = vadd.f32 %v3114, %v73
    %v3117 = vsel %vm208, %v3115, -inf
    %3118 = vmax.xlane.f32.xlu0 %v3117
    %v3119 = vpop.xlane.xlu0 %3118
    %v3120 = vsel %vm208, %v3116, -inf
    %3121 = vmax.xlane.f32.xlu0 %v3120
    %v3122 = vpop.xlane.xlu0 %3121
    %v3123 = vsub.f32 %v3115, %v3119
    %v3124 = vsub.f32 %v3116, %v3122
    %v3125 = vmul.f32 %v3123, 1.442695
    %v3126 = vpow.pop %v3125
    %v3127 = vmul.f32 %v3124, 1.442695
    %v3128 = vpow.pop %v3127
    %v3129 = vsel %vm208, %v3126, 0.0
    %3130 = vadd.xlane.f32.xlu0 %v3129
    %v3131 = vpop.xlane.xlu0 %3130
    %v3132 = vsel %vm208, %v3128, 0.0
    %3133 = vadd.xlane.f32.xlu0 %v3132
    %v3134 = vpop.xlane.xlu0 %3133
    %v3135 = vrcp.pop %v3131
    %v3136 = vrcp.pop %v3134
    %v3137 = vmul.f32 %v3126, %v3135
    %v3138 = vmul.f32 %v3128, %v3136
    %3139 = vrot.lane.b32.xlu0 %v1955, 72
    %v3140 = vpop.permute.xlu0 %3139
    %v3143 = vsel %vm208, %v3137, 0
    %3145 = vmatprep.subr.mxu0 0.0
    %3146 = vmatpush1.msra.mxu0 %v3140
    %3147 = vmatprep.subr.mxu0 0.0
    %3148 = vmatpush1.msra.mxu0 0.0
    %3149 = vmatprep.subr.mxu0 0.0
    %3150 = vmatpush1.msra.mxu0 0.0
    %3151 = vmatprep.subr.mxu0 0.0
    %3152 = vmatpush1.msra.mxu0 0.0
    %3153 = vmatprep.subr.mxu0 0.0
    %3154 = vmatpush1.msra.mxu0 0.0
    %3155 = vmatprep.subr.mxu0 0.0
    %3156 = vmatpush1.msra.mxu0 0.0
    %3157 = vmatprep.subr.mxu0 0.0
    %3158 = vmatpush1.msra.mxu0 0.0
    %3159 = vmatprep.subr.mxu0 0.0
    %3160 = vmatpush1.msra.mxu0 0.0
    %3161 = vmatprep.subr.mxu0 0.0
    %3162 = vmatpush1.msra.mxu0 0.0
    %3163 = vmatprep.subr.mxu0 0.0
    %3164 = vmatpush1.msra.mxu0 0.0
    %3165 = vmatprep.subr.mxu0 0.0
    %3166 = vmatpush1.msra.mxu0 0.0
    %3167 = vmatprep.subr.mxu0 0.0
    %3168 = vmatpush1.msra.mxu0 0.0
    %3169 = vmatprep.subr.mxu0 0.0
    %3170 = vmatpush1.msra.mxu0 0.0
    %3171 = vmatprep.subr.mxu0 0.0
    %3172 = vmatpush1.msra.mxu0 0.0
    %3173 = vmatprep.subr.mxu0 0.0
    %3174 = vmatpush1.msra.mxu0 0.0
    %3175 = vmatprep.subr.mxu0 0.0
    %3176 = vmatpush1.msra.mxu0 0.0
    %3177 = vmatprep.subr.mxu0 0.0
    %3178 = vmatpush1.msra.mxu0 0.0
    %3179 = vmatprep.subr.mxu0 0.0
    %3180 = vmatpush1.msra.mxu0 0.0
    %3181 = vmatprep.subr.mxu0 0.0
    %3182 = vmatpush1.msra.mxu0 0.0
    %3183 = vmatprep.subr.mxu0 0.0
    %3184 = vmatpush1.msra.mxu0 0.0
    %3185 = vmatprep.subr.mxu0 0.0
    %3186 = vmatpush1.msra.mxu0 0.0
    %3187 = vmatprep.subr.mxu0 0.0
    %3188 = vmatpush1.msra.mxu0 0.0
    %3189 = vmatprep.subr.mxu0 0.0
    %3190 = vmatpush1.msra.mxu0 0.0
    %3191 = vmatprep.subr.mxu0 0.0
    %3192 = vmatpush1.msra.mxu0 0.0
    %3193 = vmatprep.subr.mxu0 0.0
    %3194 = vmatpush1.msra.mxu0 0.0
    %3195 = vmatprep.subr.mxu0 0.0
    %3196 = vmatpush1.msra.mxu0 0.0
    %3197 = vmatprep.subr.mxu0 0.0
    %3198 = vmatpush1.msra.mxu0 0.0
    %3199 = vmatprep.subr.mxu0 0.0
    %3200 = vmatpush1.msra.mxu0 0.0
    %3201 = vmatprep.subr.mxu0 0.0
    %3202 = vmatpush1.msra.mxu0 0.0
    %3203 = vmatprep.subr.mxu0 0.0
    %3204 = vmatpush1.msra.mxu0 0.0
    %3205 = vmatprep.subr.mxu0 0.0
    %3206 = vmatpush1.msra.mxu0 0.0
    %3207 = vmatprep.subr.mxu0 0.0
    %3208 = vmatpush1.msra.mxu0 0.0
    %3209 = vmatprep.mubr.f32.mxu0 0.0
    %3210 = vmatmul.mubr.f32.gmra.mrb[0].mxu0 %v3143
    %v3211 = vpop.f32.mrb[0].mxu0
    %v3212 = vadd.f32 0.0, %v3211
    %v3213 = vpop.f32.mrb[0].mxu0
    %3214 = vdwg.mxu0
    %3215 = vrot.lane.b32.xlu0 %v1956, 72
    %v3216 = vpop.permute.xlu0 %3215
    %v3219 = vsel %vm208, %v3138, 0
    %3221 = vmatprep.subr.mxu0 0.0
    %3222 = vmatpush1.msra.mxu0 %v3216
    %3223 = vmatprep.subr.mxu0 0.0
    %3224 = vmatpush1.msra.mxu0 0.0
    %3225 = vmatprep.subr.mxu0 0.0
    %3226 = vmatpush1.msra.mxu0 0.0
    %3227 = vmatprep.subr.mxu0 0.0
    %3228 = vmatpush1.msra.mxu0 0.0
    %3229 = vmatprep.subr.mxu0 0.0
    %3230 = vmatpush1.msra.mxu0 0.0
    %3231 = vmatprep.subr.mxu0 0.0
    %3232 = vmatpush1.msra.mxu0 0.0
    %3233 = vmatprep.subr.mxu0 0.0
    %3234 = vmatpush1.msra.mxu0 0.0
    %3235 = vmatprep.subr.mxu0 0.0
    %3236 = vmatpush1.msra.mxu0 0.0
    %3237 = vmatprep.subr.mxu0 0.0
    %3238 = vmatpush1.msra.mxu0 0.0
    %3239 = vmatprep.subr.mxu0 0.0
    %3240 = vmatpush1.msra.mxu0 0.0
    %3241 = vmatprep.subr.mxu0 0.0
    %3242 = vmatpush1.msra.mxu0 0.0
    %3243 = vmatprep.subr.mxu0 0.0
    %3244 = vmatpush1.msra.mxu0 0.0
    %3245 = vmatprep.subr.mxu0 0.0
    %3246 = vmatpush1.msra.mxu0 0.0
    %3247 = vmatprep.subr.mxu0 0.0
    %3248 = vmatpush1.msra.mxu0 0.0
    %3249 = vmatprep.subr.mxu0 0.0
    %3250 = vmatpush1.msra.mxu0 0.0
    %3251 = vmatprep.subr.mxu0 0.0
    %3252 = vmatpush1.msra.mxu0 0.0
    %3253 = vmatprep.subr.mxu0 0.0
    %3254 = vmatpush1.msra.mxu0 0.0
    %3255 = vmatprep.subr.mxu0 0.0
    %3256 = vmatpush1.msra.mxu0 0.0
    %3257 = vmatprep.subr.mxu0 0.0
    %3258 = vmatpush1.msra.mxu0 0.0
    %3259 = vmatprep.subr.mxu0 0.0
    %3260 = vmatpush1.msra.mxu0 0.0
    %3261 = vmatprep.subr.mxu0 0.0
    %3262 = vmatpush1.msra.mxu0 0.0
    %3263 = vmatprep.subr.mxu0 0.0
    %3264 = vmatpush1.msra.mxu0 0.0
    %3265 = vmatprep.subr.mxu0 0.0
    %3266 = vmatpush1.msra.mxu0 0.0
    %3267 = vmatprep.subr.mxu0 0.0
    %3268 = vmatpush1.msra.mxu0 0.0
    %3269 = vmatprep.subr.mxu0 0.0
    %3270 = vmatpush1.msra.mxu0 0.0
    %3271 = vmatprep.subr.mxu0 0.0
    %3272 = vmatpush1.msra.mxu0 0.0
    %3273 = vmatprep.subr.mxu0 0.0
    %3274 = vmatpush1.msra.mxu0 0.0
    %3275 = vmatprep.subr.mxu0 0.0
    %3276 = vmatpush1.msra.mxu0 0.0
    %3277 = vmatprep.subr.mxu0 0.0
    %3278 = vmatpush1.msra.mxu0 0.0
    %3279 = vmatprep.subr.mxu0 0.0
    %3280 = vmatpush1.msra.mxu0 0.0
    %3281 = vmatprep.subr.mxu0 0.0
    %3282 = vmatpush1.msra.mxu0 0.0
    %3283 = vmatprep.subr.mxu0 0.0
    %3284 = vmatpush1.msra.mxu0 0.0
    %3285 = vmatprep.mubr.f32.mxu0 0.0
    %3286 = vmatmul.mubr.f32.gmra.mrb[0].mxu0 %v3219
    %v3287 = vpop.f32.mrb[0].mxu0
    %v3288 = vadd.f32 0.0, %v3287
    %v3289 = vpop.f32.mrb[0].mxu0
    %3290 = vdwg.mxu0
    %3293 = vrot.lane.b32.xlu0 %v2544, 8
    %v3294 = vpop.permute.xlu0 %3293
    %3295 = vrot.lane.b32.xlu0 %v2620, 8
    %v3296 = vpop.permute.xlu0 %3295
    %3301 = vrot.lane.b32.xlu0 %v2878, 16
    %v3302 = vpop.permute.xlu0 %3301
    %3303 = vrot.lane.b32.xlu0 %v2954, 16
    %v3304 = vpop.permute.xlu0 %3303
    %3309 = vrot.lane.b32.xlu0 %v3212, 24
    %v3310 = vpop.permute.xlu0 %3309
    %3311 = vrot.lane.b32.xlu0 %v3288, 24
    %v3312 = vpop.permute.xlu0 %3311
    %v3315 = vsel %vm208, %v2209, %v3294
    %v3316 = vsel %vm208, %v2286, %v3296
    %v3317 = vsel %vm1569, %v3315, %v3302
    %v3318 = vsel %vm1569, %v3316, %v3304
    %v3319 = vsel %vm1572, %v3317, %v3310
    %v3320 = vsel %vm1572, %v3318, %v3312
    %v3321 = vpack.c.bf16 %v3320, %v3319
    %v3322 = vlaneseq
    %v3323 = vshrl.u32 %v3322, 7
    %v3324 = vsub.s32 3, %v3323
    %v3325 = vrot.slane %v1831, %v3324
    %3326 = vrot.lane.b32.xlu0 %v1846, 32
    %v3327 = vpop.permute.xlu0 %3326
    %3328 = vrot.lane.b32.xlu0 %v1847, 32
    %v3329 = vpop.permute.xlu0 %3328
    %v3333 = vsel %vm97, %v3321, 0
    %3335 = vmatprep.subr.bf16.mxu0 0
    %3336 = vmatpush1.bf16.msra.mxu0 %v3327
    %3337 = vmatprep.subr.bf16.mxu0 0
    %3338 = vmatpush1.bf16.msra.mxu0 %v3329
    %3339 = vmatprep.subr.bf16.mxu0 0
    %3340 = vmatpush1.bf16.msra.mxu0 0
    %3341 = vmatprep.subr.bf16.mxu0 0
    %3342 = vmatpush1.bf16.msra.mxu0 0
    %3343 = vmatprep.subr.bf16.mxu0 0
    %3344 = vmatpush1.bf16.msra.mxu0 0
    %3345 = vmatprep.subr.bf16.mxu0 0
    %3346 = vmatpush1.bf16.msra.mxu0 0
    %3347 = vmatprep.subr.bf16.mxu0 0
    %3348 = vmatpush1.bf16.msra.mxu0 0
    %3349 = vmatprep.subr.bf16.mxu0 0
    %3350 = vmatpush1.bf16.msra.mxu0 0
    %3351 = vmatprep.subr.bf16.mxu0 0
    %3352 = vmatpush1.bf16.msra.mxu0 0
    %3353 = vmatprep.subr.bf16.mxu0 0
    %3354 = vmatpush1.bf16.msra.mxu0 0
    %3355 = vmatprep.subr.bf16.mxu0 0
    %3356 = vmatpush1.bf16.msra.mxu0 0
    %3357 = vmatprep.subr.bf16.mxu0 0
    %3358 = vmatpush1.bf16.msra.mxu0 0
    %3359 = vmatprep.subr.bf16.mxu0 0
    %3360 = vmatpush1.bf16.msra.mxu0 0
    %3361 = vmatprep.subr.bf16.mxu0 0
    %3362 = vmatpush1.bf16.msra.mxu0 0
    %3363 = vmatprep.subr.bf16.mxu0 0
    %3364 = vmatpush1.bf16.msra.mxu0 0
    %3365 = vmatprep.subr.bf16.mxu0 0
    %3366 = vmatpush1.bf16.msra.mxu0 0
    %3367 = vmatprep.mubr.bf16.mxu0 0
    %3368 = vmatmul.mubr.bf16.gmra.mrb[0].mxu0 %v3333
    %v3369 = vpop.f32.mrb[0].mxu0
    %v3370 = vadd.f32 %v3325, %v3369
    %v3371 = vpop.f32.mrb[0].mxu0
    %v3372 = vpop.f32.mrb[0].mxu0
    %v3373 = vadd.f32 %v3325, %v3372
    %v3374 = vpop.f32.mrb[0].mxu0
    %3375 = vdwg.mxu0
    %v3376 = vadd.f32 %v42, %v3370
    %v3377 = vadd.f32 %v43, %v3373
    %v3378 = vsel %vm97, %v3376, 0.0
    %3379 = vadd.xlane.f32.xlu0 %v3378
    %v3380 = vpop.xlane.xlu0 %3379
    %v3381 = vsel %vm97, %v3377, 0.0
    %3382 = vadd.xlane.f32.xlu0 %v3381
    %v3383 = vpop.xlane.xlu0 %3382
    %v3384 = vmul.f32 %v3380, %v1638
    %v3385 = vmul.f32 %v3383, %v1638
    %v3386 = vsub.f32 %v3376, %v3384
    %v3387 = vsub.f32 %v3377, %v3385
    %v3388 = vmul.f32 %v3386, %v3386
    %v3389 = vmul.f32 %v3387, %v3387
    %v3390 = vsel %vm97, %v3388, 0.0
    %3391 = vadd.xlane.f32.xlu0 %v3390
    %v3392 = vpop.xlane.xlu0 %3391
    %v3393 = vsel %vm97, %v3389, 0.0
    %3394 = vadd.xlane.f32.xlu0 %v3393
    %v3395 = vpop.xlane.xlu0 %3394
    %v3396 = vmul.f32 %v3392, %v1638
    %v3397 = vmul.f32 %v3395, %v1638
    %v3398 = vadd.f32 %v3396, 1e-05
    %v3399 = vadd.f32 %v3397, 1e-05
    %v3400 = vrsqrt.pop %v3398
    %v3401 = vrsqrt.pop %v3399
    %v3402 = vmul.f32 %v3386, %v3400
    %v3403 = vmul.f32 %v3387, %v3401
    %v3404 = vlaneseq
    %v3405 = vshrl.u32 %v3404, 7
    %v3406 = vsub.s32 4, %v3405
    %v3407 = vrot.slane %v1831, %v3406
    %v3408 = vmul.f32 %v3402, %v3407
    %v3409 = vmul.f32 %v3403, %v3407
    %v3410 = vlaneseq
    %v3411 = vshrl.u32 %v3410, 7
    %v3412 = vsub.s32 5, %v3411
    %v3413 = vrot.slane %v1831, %v3412
    %v3414 = vadd.f32 %v3408, %v3413
    %v3415 = vadd.f32 %v3409, %v3413
    %v3416 = vpack.c.bf16 %v3415, %v3414
    %v3417 = vlaneseq
    %v3418 = vshrl.u32 %v3417, 7
    %v3419 = vsub.s32 6, %v3418
    %v3420 = vrot.slane %v1831, %v3419
    %v3421 = vunpack.c.h.b16 %v1826
    %v3422 = vunpack.c.h.b16 %v1827
    %v3423 = vunpack.c.h.b16 %v1828
    %v3424 = vunpack.c.h.b16 %v1829
    %v3425 = vpack.c.b16 %v3422, %v3421
    %v3426 = vpack.c.b16 %v3424, %v3423
    %v3430 = vsel %vm97, %v3416, 0
    %3432 = vmatprep.subr.bf16.mxu0 0
    %3433 = vmatpush1.bf16.msra.mxu0 %v3425
    %3434 = vmatprep.subr.bf16.mxu0 0
    %3435 = vmatpush1.bf16.msra.mxu0 %v3426
    %3436 = vmatprep.subr.bf16.mxu0 0
    %3437 = vmatpush1.bf16.msra.mxu0 0
    %3438 = vmatprep.subr.bf16.mxu0 0
    %3439 = vmatpush1.bf16.msra.mxu0 0
    %3440 = vmatprep.subr.bf16.mxu0 0
    %3441 = vmatpush1.bf16.msra.mxu0 0
    %3442 = vmatprep.subr.bf16.mxu0 0
    %3443 = vmatpush1.bf16.msra.mxu0 0
    %3444 = vmatprep.subr.bf16.mxu0 0
    %3445 = vmatpush1.bf16.msra.mxu0 0
    %3446 = vmatprep.subr.bf16.mxu0 0
    %3447 = vmatpush1.bf16.msra.mxu0 0
    %3448 = vmatprep.subr.bf16.mxu0 0
    %3449 = vmatpush1.bf16.msra.mxu0 0
    %3450 = vmatprep.subr.bf16.mxu0 0
    %3451 = vmatpush1.bf16.msra.mxu0 0
    %3452 = vmatprep.subr.bf16.mxu0 0
    %3453 = vmatpush1.bf16.msra.mxu0 0
    %3454 = vmatprep.subr.bf16.mxu0 0
    %3455 = vmatpush1.bf16.msra.mxu0 0
    %3456 = vmatprep.subr.bf16.mxu0 0
    %3457 = vmatpush1.bf16.msra.mxu0 0
    %3458 = vmatprep.subr.bf16.mxu0 0
    %3459 = vmatpush1.bf16.msra.mxu0 0
    %3460 = vmatprep.subr.bf16.mxu0 0
    %3461 = vmatpush1.bf16.msra.mxu0 0
    %3462 = vmatprep.subr.bf16.mxu0 0
    %3463 = vmatpush1.bf16.msra.mxu0 0
    %3464 = vmatprep.mubr.bf16.mxu0 0
    %3465 = vmatmul.mubr.bf16.gmra.mrb[0].mxu0 %v3430
    %v3466 = vpop.f32.mrb[0].mxu0
    %v3467 = vadd.f32 %v3420, %v3466
    %v3468 = vpop.f32.mrb[0].mxu0
    %v3469 = vpop.f32.mrb[0].mxu0
    %v3470 = vadd.f32 %v3420, %v3469
    %v3471 = vpop.f32.mrb[0].mxu0
    %3472 = vdwg.mxu0
    %v3473 = vmax.f32 %v3467, 0.0
    %v3474 = vmax.f32 %v3470, 0.0
    %v3475 = vpack.c.bf16 %v3474, %v3473
    %v3476 = vlaneseq
    %v3477 = vshrl.u32 %v3476, 7
    %v3478 = vsub.s32 7, %v3477
    %v3479 = vrot.slane %v1831, %v3478
    %3480 = vrot.lane.b32.xlu0 %v3425, 96
    %v3481 = vpop.permute.xlu0 %3480
    %3482 = vrot.lane.b32.xlu0 %v3426, 96
    %v3483 = vpop.permute.xlu0 %3482
    %v3487 = vsel %vm97, %v3475, 0
    %3489 = vmatprep.subr.bf16.mxu0 0
    %3490 = vmatpush1.bf16.msra.mxu0 %v3481
    %3491 = vmatprep.subr.bf16.mxu0 0
    %3492 = vmatpush1.bf16.msra.mxu0 %v3483
    %3493 = vmatprep.subr.bf16.mxu0 0
    %3494 = vmatpush1.bf16.msra.mxu0 0
    %3495 = vmatprep.subr.bf16.mxu0 0
    %3496 = vmatpush1.bf16.msra.mxu0 0
    %3497 = vmatprep.subr.bf16.mxu0 0
    %3498 = vmatpush1.bf16.msra.mxu0 0
    %3499 = vmatprep.subr.bf16.mxu0 0
    %3500 = vmatpush1.bf16.msra.mxu0 0
    %3501 = vmatprep.subr.bf16.mxu0 0
    %3502 = vmatpush1.bf16.msra.mxu0 0
    %3503 = vmatprep.subr.bf16.mxu0 0
    %3504 = vmatpush1.bf16.msra.mxu0 0
    %3505 = vmatprep.subr.bf16.mxu0 0
    %3506 = vmatpush1.bf16.msra.mxu0 0
    %3507 = vmatprep.subr.bf16.mxu0 0
    %3508 = vmatpush1.bf16.msra.mxu0 0
    %3509 = vmatprep.subr.bf16.mxu0 0
    %3510 = vmatpush1.bf16.msra.mxu0 0
    %3511 = vmatprep.subr.bf16.mxu0 0
    %3512 = vmatpush1.bf16.msra.mxu0 0
    %3513 = vmatprep.subr.bf16.mxu0 0
    %3514 = vmatpush1.bf16.msra.mxu0 0
    %3515 = vmatprep.subr.bf16.mxu0 0
    %3516 = vmatpush1.bf16.msra.mxu0 0
    %3517 = vmatprep.subr.bf16.mxu0 0
    %3518 = vmatpush1.bf16.msra.mxu0 0
    %3519 = vmatprep.subr.bf16.mxu0 0
    %3520 = vmatpush1.bf16.msra.mxu0 0
    %3521 = vmatprep.mubr.bf16.mxu0 0
    %3522 = vmatmul.mubr.bf16.gmra.mrb[0].mxu0 %v3487
    %v3523 = vpop.f32.mrb[0].mxu0
    %v3524 = vadd.f32 %v3479, %v3523
    %v3525 = vpop.f32.mrb[0].mxu0
    %v3526 = vpop.f32.mrb[0].mxu0
    %v3527 = vadd.f32 %v3479, %v3526
    %v3528 = vpop.f32.mrb[0].mxu0
    %3529 = vdwg.mxu0
    %v3530 = vadd.f32 %v3414, %v3524
    %v3531 = vadd.f32 %v3415, %v3527
    %v3532 = vsel %vm97, %v3530, 0.0
    %3533 = vadd.xlane.f32.xlu0 %v3532
    %v3534 = vpop.xlane.xlu0 %3533
    %v3535 = vsel %vm97, %v3531, 0.0
    %3536 = vadd.xlane.f32.xlu0 %v3535
    %v3537 = vpop.xlane.xlu0 %3536
    %v3538 = vmul.f32 %v3534, %v1638
    %v3539 = vmul.f32 %v3537, %v1638
    %v3540 = vsub.f32 %v3530, %v3538
    %v3541 = vsub.f32 %v3531, %v3539
    %v3542 = vmul.f32 %v3540, %v3540
    %v3543 = vmul.f32 %v3541, %v3541
    %v3544 = vsel %vm97, %v3542, 0.0
    %3545 = vadd.xlane.f32.xlu0 %v3544
    %v3546 = vpop.xlane.xlu0 %3545
    %v3547 = vsel %vm97, %v3543, 0.0
    %3548 = vadd.xlane.f32.xlu0 %v3547
    %v3549 = vpop.xlane.xlu0 %3548
    %v3550 = vmul.f32 %v3546, %v1638
    %v3551 = vmul.f32 %v3549, %v1638
    %v3552 = vadd.f32 %v3550, 1e-05
    %v3553 = vadd.f32 %v3551, 1e-05
    %v3554 = vrsqrt.pop %v3552
    %v3555 = vrsqrt.pop %v3553
    %v3556 = vmul.f32 %v3540, %v3554
    %v3557 = vmul.f32 %v3541, %v3555
    %v3558 = vlaneseq
    %v3559 = vshrl.u32 %v3558, 7
    %v3560 = vsub.s32 0, %v3559
    %v3561 = vrot.slane %v1832, %v3560
    %v3562 = vmul.f32 %v3556, %v3561
    %v3563 = vmul.f32 %v3557, %v3561
    %v3564 = vlaneseq
    %v3565 = vshrl.u32 %v3564, 7
    %v3566 = vsub.s32 1, %v3565
    %v3567 = vrot.slane %v1832, %v3566
    %v3568 = vadd.f32 %v3562, %v3567
    %v3569 = vadd.f32 %v3563, %v3567
    %v3570 = vpack.c.bf16 %v3569, %v3568
    %v3571 = vld [vmem:[%s5] sm:$0xf]
    %v3572 = vld [vmem:[%s5 + $0x4] sm:$0xf]
    %v3573 = vld [vmem:[%s5 + $0x8] sm:$0xf]
    %v3574 = vld [vmem:[%s5 + $0xc] sm:$0xf]
    %v3575 = vld [vmem:[%s6] sm:$0x1]
    %v3577 = vlaneseq
    %v3578 = vshrl.u32 %v3577, 7
    %v3579 = vsub.s32 0, %v3578
    %v3580 = vrot.slane %v3575, %v3579
    %v3586 = vunpack.c.l.b16 %v3571
    %v3587 = vunpack.c.l.b16 %v3572
    %v3588 = vunpack.c.l.b16 %v3573
    %v3589 = vunpack.c.l.b16 %v3574
    %v3590 = vpack.c.b16 %v3587, %v3586
    %v3591 = vpack.c.b16 %v3589, %v3588
    %v3595 = vsel %vm97, %v3570, 0
    %3597 = vmatprep.subr.bf16.mxu0 0
    %3598 = vmatpush1.bf16.msra.mxu0 %v3590
    %3599 = vmatprep.subr.bf16.mxu0 0
    %3600 = vmatpush1.bf16.msra.mxu0 %v3591
    %3601 = vmatprep.subr.bf16.mxu0 0
    %3602 = vmatpush1.bf16.msra.mxu0 0
    %3603 = vmatprep.subr.bf16.mxu0 0
    %3604 = vmatpush1.bf16.msra.mxu0 0
    %3605 = vmatprep.subr.bf16.mxu0 0
    %3606 = vmatpush1.bf16.msra.mxu0 0
    %3607 = vmatprep.subr.bf16.mxu0 0
    %3608 = vmatpush1.bf16.msra.mxu0 0
    %3609 = vmatprep.subr.bf16.mxu0 0
    %3610 = vmatpush1.bf16.msra.mxu0 0
    %3611 = vmatprep.subr.bf16.mxu0 0
    %3612 = vmatpush1.bf16.msra.mxu0 0
    %3613 = vmatprep.subr.bf16.mxu0 0
    %3614 = vmatpush1.bf16.msra.mxu0 0
    %3615 = vmatprep.subr.bf16.mxu0 0
    %3616 = vmatpush1.bf16.msra.mxu0 0
    %3617 = vmatprep.subr.bf16.mxu0 0
    %3618 = vmatpush1.bf16.msra.mxu0 0
    %3619 = vmatprep.subr.bf16.mxu0 0
    %3620 = vmatpush1.bf16.msra.mxu0 0
    %3621 = vmatprep.subr.bf16.mxu0 0
    %3622 = vmatpush1.bf16.msra.mxu0 0
    %3623 = vmatprep.subr.bf16.mxu0 0
    %3624 = vmatpush1.bf16.msra.mxu0 0
    %3625 = vmatprep.subr.bf16.mxu0 0
    %3626 = vmatpush1.bf16.msra.mxu0 0
    %3627 = vmatprep.subr.bf16.mxu0 0
    %3628 = vmatpush1.bf16.msra.mxu0 0
    %3629 = vmatprep.mubr.bf16.mxu0 0
    %3630 = vmatmul.mubr.bf16.gmra.mrb[0].mxu0 %v3595
    %v3631 = vpop.f32.mrb[0].mxu0
    %v3632 = vadd.f32 %v3580, %v3631
    %v3633 = vpop.f32.mrb[0].mxu0
    %v3634 = vpop.f32.mrb[0].mxu0
    %v3635 = vadd.f32 %v3580, %v3634
    %v3636 = vpop.f32.mrb[0].mxu0
    %3637 = vdwg.mxu0
    %v3638 = vsub.f32 0.0, %v3632
    %v3639 = vsub.f32 0.0, %v3635
    %v3640 = vmul.f32 %v3638, 1.442695
    %v3641 = vpow.pop %v3640
    %v3642 = vmul.f32 %v3639, 1.442695
    %v3643 = vpow.pop %v3642
    %v3644 = vadd.f32 %v3641, 1.0
    %v3645 = vadd.f32 %v3643, 1.0
    %v3646 = vrcp.pop %v3644
    %v3647 = vrcp.pop %v3645
    %3648 = vst [vmem:[#allocation5] sm:$0xff] %v3646
    %3649 = vst [vmem:[#allocation5 + $0x8] sm:$0xff] %v3647
    // Predicated region
    $region34: #{tpu_custom_call.1} parent=1 // pred_check
      _
    $region35: #{tpu_custom_call.1} parent=1 // pred_check_branch
      %3651 = sbr.rel (0) target = $region37
    $region36: #{tpu_custom_call.1} parent=1 // pred_region
      %s3653 = ssub.s32 256, 256
      %3654 = vsyncadd [#allocation4], %s3653
      %s3655 = sshll.u32 [#allocation5], 4
      %s3656 = int_to_ptr.vmem [resolvable:$true] %s3655
      %3661 = dma.vmem_to_hbm [thread:$0]  %s3656, 256, %s7, [#allocation4], 128, 128, 8
    $region37: #{tpu_custom_call.1} parent=1 // pred_fallthru
      _
    // Predicated region
    $region38: #{tpu_custom_call.1} parent=1 // pred_check
      _
    $region39: #{tpu_custom_call.1} parent=1 // pred_check_branch
      %3663 = sbr.rel (0) target = $region41
    $region40: #{tpu_custom_call.1} parent=1 // pred_region
      %3664 = dma.done [#allocation4], 256
    $region41: #{tpu_custom_call.1} parent=1 // pred_fallthru
      _
    %3665 = vsyncpa [#allocation3], 1
    %3666 = vsyncpa [#allocation4], 1

</llo_original>
